<compile_context>
chip_gen: v7x
topology: tpu7x:2x2x1
jax: 0.10.0
libtpu: 0.0.40
codegen_flags: <defaults>
</compile_context>

<pallas_src>
import functools

import jax
import jax.numpy as jnp
from jax.experimental import pallas as pl
from jax.experimental.pallas import tpu as pltpu

IN_FEATURES = 6670
HIDDEN = 100
NUM_CLASSES = 10
BATCH = 8

HP = 128                      # lane-padded hidden / class width
K_PAD = 53 * 128              # 6784 >= 6670, lane-aligned reduction width


def _mlp_kernel(x_ref, w1_ref, wsmall_ref, bias_ref, out_ref):
    """Single-shot 5-layer MLP: one big W1 dot + four 128x128 dots."""
    b = bias_ref[...]                                    # [8, HP] f32, rows 0..4 = b1..b5

    # fc1: bf16 operands on the MXU, f32 accumulation, f32 bias add + ReLU.
    h = jnp.dot(x_ref[...], w1_ref[...], preferred_element_type=jnp.float32)
    h = jnp.maximum(h + b[0:1, :], 0.0)

    # fc2, fc3, fc4 (+ ReLU)
    for layer in range(3):
        w = wsmall_ref[layer * HP:(layer + 1) * HP, :]
        h = jnp.dot(h.astype(jnp.bfloat16), w, preferred_element_type=jnp.float32)
        h = jnp.maximum(h + b[layer + 1:layer + 2, :], 0.0)

    # fc5 (padded classes, no activation)
    w5 = wsmall_ref[3 * HP:4 * HP, :]
    out_ref[...] = jnp.dot(h.astype(jnp.bfloat16), w5,
                           preferred_element_type=jnp.float32) + b[4:5, :]


@functools.partial(jax.jit, static_argnames=("num_classes",))
def roixroi_forward(x, packed, num_classes=NUM_CLASSES):
    w1, w_small, biases = packed
    batch, k_in = x.shape
    # Zero-pad K to the lane-aligned width and cast to bf16 in one fused op.
    x_pad = jnp.pad(x, ((0, 0), (0, K_PAD - k_in))).astype(jnp.bfloat16)

    vmem = pl.BlockSpec(memory_space=pltpu.MemorySpace.VMEM)   # whole array in VMEM
    out_pad = pl.pallas_call(
        _mlp_kernel,
        out_shape=jax.ShapeDtypeStruct((batch, HP), jnp.float32),
        in_specs=[vmem, vmem, vmem, vmem],
        out_specs=vmem,
        # grid omitted (single invocation) — working set ~1.9 MiB, far under
        # the default scoped VMEM on every TPU generation (incl. v7x 64 MiB).
    )(x_pad, w1, w_small, biases)

    return out_pad[:, :num_classes]


def init_params(key, num_classes=NUM_CLASSES):
    """Logical f32 params mimicking nn.Linear's U(-1/sqrt(fan_in), 1/sqrt(fan_in))."""
    dims = [(IN_FEATURES, HIDDEN), (HIDDEN, HIDDEN), (HIDDEN, HIDDEN),
            (HIDDEN, HIDDEN), (HIDDEN, num_classes)]
    params = []
    keys = jax.random.split(key, 2 * len(dims))
    for i, (fan_in, fan_out) in enumerate(dims):
        bound = 1.0 / (fan_in ** 0.5)
        w = jax.random.uniform(keys[2 * i], (fan_in, fan_out),
                               minval=-bound, maxval=bound, dtype=jnp.float32)
        b = jax.random.uniform(keys[2 * i + 1], (fan_out,),
                               minval=-bound, maxval=bound, dtype=jnp.float32)
        params.extend([w, b])
    return tuple(params)


def pack_params(params, num_classes=NUM_CLASSES):
    """Zero-pad to lane-aligned shapes and pack into 3 DMA-friendly buffers.

    Invariant: every padded row/column is exactly zero, so the padded lanes of
    every hidden activation stay 0 (bias 0 -> ReLU 0) and the padded math is
    identical to the logical 100-wide model.
    """
    (w1, b1, w2, b2, w3, b3, w4, b4, w5, b5) = params
    assert HIDDEN <= HP, "hidden width must fit the 128-lane padding"
    assert num_classes <= HP, "num_classes must fit the 128-lane padding"
    assert IN_FEATURES <= K_PAD, "input features must fit the padded K"
    assert w1.shape == (IN_FEATURES, HIDDEN) and w5.shape == (HIDDEN, num_classes)

    w1p = jnp.zeros((K_PAD, HP), jnp.float32)
    w1p = w1p.at[:IN_FEATURES, :HIDDEN].set(w1).astype(jnp.bfloat16)

    def pad_sq(w):
        out = jnp.zeros((HP, HP), jnp.float32)
        return out.at[:w.shape[0], :w.shape[1]].set(w)

    w_small = jnp.concatenate(
        [pad_sq(w2), pad_sq(w3), pad_sq(w4), pad_sq(w5)], axis=0
    ).astype(jnp.bfloat16)                                      # [512, 128]

    biases = jnp.zeros((8, HP), jnp.float32)
    for i, b in enumerate((b1, b2, b3, b4, b5)):
        biases = biases.at[i, :b.shape[-1]].set(b.reshape(-1))

    return (w1p, w_small, biases)


def reference_forward_packed(x, packed, num_classes=NUM_CLASSES):
    """Pure-JAX mirror of the kernel math (same bf16 weights/x, f32 accumulation)."""
    w1, w_small, biases = packed
    x_pad = jnp.pad(x, ((0, 0), (0, K_PAD - x.shape[1]))).astype(jnp.bfloat16)
    h = jnp.dot(x_pad, w1, preferred_element_type=jnp.float32) + biases[0:1, :]
    h = jnp.maximum(h, 0.0)
    for layer in range(3):
        w = w_small[layer * HP:(layer + 1) * HP, :]
        h = jnp.dot(h.astype(jnp.bfloat16), w,
                    preferred_element_type=jnp.float32) + biases[layer + 1:layer + 2, :]
        h = jnp.maximum(h, 0.0)
    out = jnp.dot(h.astype(jnp.bfloat16), w_small[3 * HP:4 * HP, :],
                  preferred_element_type=jnp.float32) + biases[4:5, :]
    return out[:, :num_classes]


def reference_forward_f32(x, params, num_classes=NUM_CLASSES):
    """True f32-weight baseline (matches the PyTorch eval-mode roixroi forward)."""
    (w1, b1, w2, b2, w3, b3, w4, b4, w5, b5) = params
    h = jnp.maximum(x @ w1 + b1, 0.0)
    h = jnp.maximum(h @ w2 + b2, 0.0)
    h = jnp.maximum(h @ w3 + b3, 0.0)
    h = jnp.maximum(h @ w4 + b4, 0.0)
    return h @ w5 + b5


if __name__ == "__main__":
    key = jax.random.PRNGKey(0)
    k_x, k_p = jax.random.split(key)

    x = jax.random.normal(k_x, (BATCH, IN_FEATURES), dtype=jnp.float32)
    params = init_params(k_p, NUM_CLASSES)
    packed = pack_params(params, NUM_CLASSES)

    out = roixroi_forward(x, packed, NUM_CLASSES)
    out = jax.block_until_ready(out)
    assert out.shape == (BATCH, NUM_CLASSES)

    # 1) Kernel vs identical packed-bf16 math (tight tolerance).
    ref_packed = reference_forward_packed(x, packed, NUM_CLASSES)
    assert jnp.allclose(out, ref_packed, atol=1e-2, rtol=1e-2), \
        "mismatch vs packed bf16 reference"

    # 2) Kernel vs the true f32-weight model (validates bf16 quantization error).
    ref_f32 = reference_forward_f32(x, params, NUM_CLASSES)
    assert jnp.allclose(out, ref_f32, atol=5e-2, rtol=5e-2), \
        "mismatch vs f32 baseline (quantization error too large)"

    print("KERNEL_OK")
</pallas_src>

<mosaic_0001>
module attributes {stable_mosaic.version = 11 : i64} {
  func.func @_mlp_kernel(%arg0: memref<8x6784xbf16, #tpu.memory_space<vmem>>, %arg1: memref<6784x128xbf16, #tpu.memory_space<vmem>>, %arg2: memref<512x128xbf16, #tpu.memory_space<vmem>>, %arg3: memref<8x128xf32, #tpu.memory_space<vmem>>, %arg4: memref<8x128xf32, #tpu.memory_space<vmem>>) attributes {dimension_semantics = [], scalar_prefetch = 0 : i64, scratch_operands = 0 : i64, tpu.core_type = #tpu.core_type<tc>} {
    %c0 = arith.constant 0 : index
    %c0_0 = arith.constant 0 : index
    %0 = vector.load %arg3[%c0, %c0_0] : memref<8x128xf32, #tpu.memory_space<vmem>>, vector<8x128xf32>
    %c0_1 = arith.constant 0 : index
    %c0_2 = arith.constant 0 : index
    %1 = vector.load %arg0[%c0_1, %c0_2] : memref<8x6784xbf16, #tpu.memory_space<vmem>>, vector<8x6784xbf16>
    %c0_3 = arith.constant 0 : index
    %c0_4 = arith.constant 0 : index
    %2 = vector.load %arg1[%c0_3, %c0_4] : memref<6784x128xbf16, #tpu.memory_space<vmem>>, vector<6784x128xbf16>
    %cst = arith.constant dense<0.000000e+00> : vector<8x128xf32>
    %3 = tpu.matmul %1, %2, %cst {dimension_numbers = #tpu.dot_dimension_numbers<[1], [0], [0], [1], [0, 0, 1, 1], [], []>} : vector<8x6784xbf16>, vector<6784x128xbf16>, vector<8x128xf32> -> vector<8x128xf32>
    %4 = vector.extract_strided_slice %0 {offsets = [0, 0], sizes = [1, 128], strides = [1, 1]} : vector<8x128xf32> to vector<1x128xf32>
    %5 = vector.broadcast %4 : vector<1x128xf32> to vector<8x128xf32>
    %6 = arith.addf %3, %5 : vector<8x128xf32>
    %cst_5 = arith.constant 0.000000e+00 : f32
    %7 = vector.broadcast %cst_5 : f32 to vector<8x128xf32>
    %8 = arith.maximumf %6, %7 : vector<8x128xf32>
    %c0_6 = arith.constant 0 : index
    %c0_7 = arith.constant 0 : index
    %9 = vector.load %arg2[%c0_6, %c0_7] : memref<512x128xbf16, #tpu.memory_space<vmem>>, vector<128x128xbf16>
    %10 = arith.truncf %8 : vector<8x128xf32> to vector<8x128xbf16>
    %cst_8 = arith.constant dense<0.000000e+00> : vector<8x128xf32>
    %11 = tpu.matmul %10, %9, %cst_8 {dimension_numbers = #tpu.dot_dimension_numbers<[1], [0], [0], [1], [0, 0, 1, 1], [], []>} : vector<8x128xbf16>, vector<128x128xbf16>, vector<8x128xf32> -> vector<8x128xf32>
    %12 = vector.extract_strided_slice %0 {offsets = [1, 0], sizes = [1, 128], strides = [1, 1]} : vector<8x128xf32> to vector<1x128xf32>
    %13 = vector.broadcast %12 : vector<1x128xf32> to vector<8x128xf32>
    %14 = arith.addf %11, %13 : vector<8x128xf32>
    %cst_9 = arith.constant 0.000000e+00 : f32
    %15 = vector.broadcast %cst_9 : f32 to vector<8x128xf32>
    %16 = arith.maximumf %14, %15 : vector<8x128xf32>
    %c128 = arith.constant 128 : index
    %c0_10 = arith.constant 0 : index
    %17 = vector.load %arg2[%c128, %c0_10] : memref<512x128xbf16, #tpu.memory_space<vmem>>, vector<128x128xbf16>
    %18 = arith.truncf %16 : vector<8x128xf32> to vector<8x128xbf16>
    %cst_11 = arith.constant dense<0.000000e+00> : vector<8x128xf32>
    %19 = tpu.matmul %18, %17, %cst_11 {dimension_numbers = #tpu.dot_dimension_numbers<[1], [0], [0], [1], [0, 0, 1, 1], [], []>} : vector<8x128xbf16>, vector<128x128xbf16>, vector<8x128xf32> -> vector<8x128xf32>
    %20 = vector.extract_strided_slice %0 {offsets = [2, 0], sizes = [1, 128], strides = [1, 1]} : vector<8x128xf32> to vector<1x128xf32>
    %21 = vector.broadcast %20 : vector<1x128xf32> to vector<8x128xf32>
    %22 = arith.addf %19, %21 : vector<8x128xf32>
    %cst_12 = arith.constant 0.000000e+00 : f32
    %23 = vector.broadcast %cst_12 : f32 to vector<8x128xf32>
    %24 = arith.maximumf %22, %23 : vector<8x128xf32>
    %c256 = arith.constant 256 : index
    %c0_13 = arith.constant 0 : index
    %25 = vector.load %arg2[%c256, %c0_13] : memref<512x128xbf16, #tpu.memory_space<vmem>>, vector<128x128xbf16>
    %26 = arith.truncf %24 : vector<8x128xf32> to vector<8x128xbf16>
    %cst_14 = arith.constant dense<0.000000e+00> : vector<8x128xf32>
    %27 = tpu.matmul %26, %25, %cst_14 {dimension_numbers = #tpu.dot_dimension_numbers<[1], [0], [0], [1], [0, 0, 1, 1], [], []>} : vector<8x128xbf16>, vector<128x128xbf16>, vector<8x128xf32> -> vector<8x128xf32>
    %28 = vector.extract_strided_slice %0 {offsets = [3, 0], sizes = [1, 128], strides = [1, 1]} : vector<8x128xf32> to vector<1x128xf32>
    %29 = vector.broadcast %28 : vector<1x128xf32> to vector<8x128xf32>
    %30 = arith.addf %27, %29 : vector<8x128xf32>
    %cst_15 = arith.constant 0.000000e+00 : f32
    %31 = vector.broadcast %cst_15 : f32 to vector<8x128xf32>
    %32 = arith.maximumf %30, %31 : vector<8x128xf32>
    %c384 = arith.constant 384 : index
    %c0_16 = arith.constant 0 : index
    %33 = vector.load %arg2[%c384, %c0_16] : memref<512x128xbf16, #tpu.memory_space<vmem>>, vector<128x128xbf16>
    %34 = arith.truncf %32 : vector<8x128xf32> to vector<8x128xbf16>
    %cst_17 = arith.constant dense<0.000000e+00> : vector<8x128xf32>
    %35 = tpu.matmul %34, %33, %cst_17 {dimension_numbers = #tpu.dot_dimension_numbers<[1], [0], [0], [1], [0, 0, 1, 1], [], []>} : vector<8x128xbf16>, vector<128x128xbf16>, vector<8x128xf32> -> vector<8x128xf32>
    %36 = vector.extract_strided_slice %0 {offsets = [4, 0], sizes = [1, 128], strides = [1, 1]} : vector<8x128xf32> to vector<1x128xf32>
    %37 = vector.broadcast %36 : vector<1x128xf32> to vector<8x128xf32>
    %38 = arith.addf %35, %37 : vector<8x128xf32>
    %c0_18 = arith.constant 0 : index
    %c0_19 = arith.constant 0 : index
    %39 = vector.load %arg4[%c0_18, %c0_19] : memref<8x128xf32, #tpu.memory_space<vmem>>, vector<8x128xf32>
    tpu.vector_store %arg4[%c0_18, %c0_19], %38 {strides = array<i32>} : memref<8x128xf32, #tpu.memory_space<vmem>>, vector<8x128xf32>,
    return
  }
}

</mosaic_0001>

<llo_original>
// kernel: roixroi_forward.1
$region0: #{roixroi_forward.1}
  #allocation0 [shape = 'u32[]', space=smem, size = 0x4, offset = 0x4, fixed_abs, tag = 'smem constant byte address 0x4 - core index']
  #allocation1 [shape = 'u32[144,128]{1,0:T(1,128)}', space=vmem, size = 0x12000, scoped, tag = 'internal scratch']
  %s0 = inlined_call_operand.vmem [shape: bf16[8,6784], index: 0, kind: input, shape index: {}]
  %s1 = inlined_call_operand.hbm [shape: bf16[6784,128], index: 1, kind: input, shape index: {}]
  %s2 = inlined_call_operand.hbm [shape: bf16[512,128], index: 2, kind: input, shape index: {}]
  %s3 = inlined_call_operand.hbm [shape: f32[8,128], index: 3, kind: input, shape index: {}]
  %s4 = inlined_call_operand.hbm [shape: f32[8,128], index: 4, kind: output, shape index: {}]
  %s5 = sld [smem:[#allocation0]]
  $region38: #{roixroi_forward.1} parent=0
    _
  %s7 = ssub.s32 1, %s5
  %s8 = scalar_select 0, %s7, %s5
  $region1: #{roixroi_forward.1} parent=0
    #allocation2 [shape = 'u8[1736704]{0}', space=vmem, size = 0x1a8000, scoped, tag = 'input window, operand 1, single buffered']
    #allocation3 [shape = 's32[1]{0}', space=sflag, size = 0x4, scoped, tag = 'scoped memory for roixroi_forward.1']
    #allocation4 [shape = 's32[1]{0}', space=sflag, size = 0x4, scoped, tag = 'scoped memory for roixroi_forward.1']
    #allocation5 [shape = 'u8[131072]{0}', space=vmem, size = 0x20000, scoped, tag = 'input window, operand 2, single buffered']
    #allocation6 [shape = 's32[1]{0}', space=sflag, size = 0x4, scoped, tag = 'scoped memory for roixroi_forward.1']
    #allocation7 [shape = 'u8[4096]{0}', space=vmem, size = 0x1000, scoped, tag = 'input window, operand 3, single buffered']
    #allocation8 [shape = 'u8[4096]{0}', space=vmem, size = 0x1000, scoped, tag = 'output window, operand 0, single buffered']
    %9 = vsyncpa [#allocation3], 0
    %10 = vsyncpa [#allocation6], 0
    %11 = vsyncpa [#allocation4], 0
    // Predicated region
    $region2: #{roixroi_forward.1} parent=1 // pred_check
      _
    $region3: #{roixroi_forward.1} parent=1 // pred_check_branch
      %13 = sbr.rel (0) target = $region5
    $region4: #{roixroi_forward.1} parent=1 // pred_region
      _
    $region5: #{roixroi_forward.1} parent=1 // pred_fallthru
      _
    // Predicated region
    $region6: #{roixroi_forward.1} parent=1 // pred_check
      _
    $region7: #{roixroi_forward.1} parent=1 // pred_check_branch
      %15 = sbr.rel (0) target = $region9
    $region8: #{roixroi_forward.1} parent=1 // pred_region
      %s17 = ssub.s32 54272, 54272
      %18 = vsyncadd [#allocation3], %s17
      %s19 = sshll.u32 [#allocation2], 4
      %s20 = int_to_ptr.vmem [resolvable:$true] %s19
      %25 = dma.hbm_to_vmem [thread:$0]  %s1, 54272, %s20, [#allocation3], 64, 64, 4
    $region9: #{roixroi_forward.1} parent=1 // pred_fallthru
      _
    // Predicated region
    $region10: #{roixroi_forward.1} parent=1 // pred_check
      _
    $region11: #{roixroi_forward.1} parent=1 // pred_check_branch
      %27 = sbr.rel (0) target = $region13
    $region12: #{roixroi_forward.1} parent=1 // pred_region
      %s29 = ssub.s32 4096, 4096
      %30 = vsyncadd [#allocation6], %s29
      %s31 = sshll.u32 [#allocation5], 4
      %s32 = int_to_ptr.vmem [resolvable:$true] %s31
      %37 = dma.hbm_to_vmem [thread:$0]  %s2, 4096, %s32, [#allocation6], 64, 64, 4
    $region13: #{roixroi_forward.1} parent=1 // pred_fallthru
      _
    // Predicated region
    $region14: #{roixroi_forward.1} parent=1 // pred_check
      _
    $region15: #{roixroi_forward.1} parent=1 // pred_check_branch
      %39 = sbr.rel (0) target = $region17
    $region16: #{roixroi_forward.1} parent=1 // pred_region
      %s41 = ssub.s32 128, 128
      %42 = vsyncadd [#allocation6], %s41
      %s44 = sshll.u32 [#allocation7], 4
      %s45 = int_to_ptr.vmem [resolvable:$true] %s44
      %47 = dma.hbm_to_vmem [thread:$0]  %s3, 128, %s45, [#allocation6]
    $region17: #{roixroi_forward.1} parent=1 // pred_fallthru
      _
    // Predicated region
    $region18: #{roixroi_forward.1} parent=1 // pred_check
      _
    $region19: #{roixroi_forward.1} parent=1 // pred_check_branch
      %49 = sbr.rel (0) target = $region21
    $region20: #{roixroi_forward.1} parent=1 // pred_region
      %50 = dma.done [#allocation3], 54272
    $region21: #{roixroi_forward.1} parent=1 // pred_fallthru
      _
    // Predicated region
    $region22: #{roixroi_forward.1} parent=1 // pred_check
      _
    $region23: #{roixroi_forward.1} parent=1 // pred_check_branch
      %52 = sbr.rel (0) target = $region25
    $region24: #{roixroi_forward.1} parent=1 // pred_region
      %53 = dma.done [#allocation6], 4096
    $region25: #{roixroi_forward.1} parent=1 // pred_fallthru
      _
    // Predicated region
    $region26: #{roixroi_forward.1} parent=1 // pred_check
      _
    $region27: #{roixroi_forward.1} parent=1 // pred_check_branch
      %55 = sbr.rel (0) target = $region29
    $region28: #{roixroi_forward.1} parent=1 // pred_region
      %56 = dma.done [#allocation6], 128
    $region29: #{roixroi_forward.1} parent=1 // pred_fallthru
      _
    %v58 = vld [vmem:[#allocation7] sm:$0xff]
    %v59 = vld [vmem:[%s0] sm:$0xff]
    %v60 = vld [vmem:[%s0 + $0x8] sm:$0xff]
    %v61 = vld [vmem:[%s0 + $0x10] sm:$0xff]
    %v62 = vld [vmem:[%s0 + $0x18] sm:$0xff]
    %v63 = vld [vmem:[%s0 + $0x20] sm:$0xff]
    %v64 = vld [vmem:[%s0 + $0x28] sm:$0xff]
    %v65 = vld [vmem:[%s0 + $0x30] sm:$0xff]
    %v66 = vld [vmem:[%s0 + $0x38] sm:$0xff]
    %v67 = vld [vmem:[%s0 + $0x40] sm:$0xff]
    %v68 = vld [vmem:[%s0 + $0x48] sm:$0xff]
    %v69 = vld [vmem:[%s0 + $0x50] sm:$0xff]
    %v70 = vld [vmem:[%s0 + $0x58] sm:$0xff]
    %v71 = vld [vmem:[%s0 + $0x60] sm:$0xff]
    %v72 = vld [vmem:[%s0 + $0x68] sm:$0xff]
    %v73 = vld [vmem:[%s0 + $0x70] sm:$0xff]
    %v74 = vld [vmem:[%s0 + $0x78] sm:$0xff]
    %v75 = vld [vmem:[%s0 + $0x80] sm:$0xff]
    %v76 = vld [vmem:[%s0 + $0x88] sm:$0xff]
    %v77 = vld [vmem:[%s0 + $0x90] sm:$0xff]
    %v78 = vld [vmem:[%s0 + $0x98] sm:$0xff]
    %v79 = vld [vmem:[%s0 + $0xa0] sm:$0xff]
    %v80 = vld [vmem:[%s0 + $0xa8] sm:$0xff]
    %v81 = vld [vmem:[%s0 + $0xb0] sm:$0xff]
    %v82 = vld [vmem:[%s0 + $0xb8] sm:$0xff]
    %v83 = vld [vmem:[%s0 + $0xc0] sm:$0xff]
    %v84 = vld [vmem:[%s0 + $0xc8] sm:$0xff]
    %v85 = vld [vmem:[%s0 + $0xd0] sm:$0xf]
    %v86 = vld [vmem:[#allocation2] sm:$0xf]
    %v87 = vld [vmem:[#allocation2 + $0x4] sm:$0xf]
    %v88 = vld [vmem:[#allocation2 + $0x8] sm:$0xf]
    %v89 = vld [vmem:[#allocation2 + $0xc] sm:$0xf]
    %v90 = vld [vmem:[#allocation2 + $0x10] sm:$0xf]
    %v91 = vld [vmem:[#allocation2 + $0x14] sm:$0xf]
    %v92 = vld [vmem:[#allocation2 + $0x18] sm:$0xf]
    %v93 = vld [vmem:[#allocation2 + $0x1c] sm:$0xf]
    %v94 = vld [vmem:[#allocation2 + $0x20] sm:$0xf]
    %v95 = vld [vmem:[#allocation2 + $0x24] sm:$0xf]
    %v96 = vld [vmem:[#allocation2 + $0x28] sm:$0xf]
    %v97 = vld [vmem:[#allocation2 + $0x2c] sm:$0xf]
    %v98 = vld [vmem:[#allocation2 + $0x30] sm:$0xf]
    %v99 = vld [vmem:[#allocation2 + $0x34] sm:$0xf]
    %v100 = vld [vmem:[#allocation2 + $0x38] sm:$0xf]
    %v101 = vld [vmem:[#allocation2 + $0x3c] sm:$0xf]
    %v102 = vld [vmem:[#allocation2 + $0x40] sm:$0xf]
    %v103 = vld [vmem:[#allocation2 + $0x44] sm:$0xf]
    %v104 = vld [vmem:[#allocation2 + $0x48] sm:$0xf]
    %v105 = vld [vmem:[#allocation2 + $0x4c] sm:$0xf]
    %v106 = vld [vmem:[#allocation2 + $0x50] sm:$0xf]
    %v107 = vld [vmem:[#allocation2 + $0x54] sm:$0xf]
    %v108 = vld [vmem:[#allocation2 + $0x58] sm:$0xf]
    %v109 = vld [vmem:[#allocation2 + $0x5c] sm:$0xf]
    %v110 = vld [vmem:[#allocation2 + $0x60] sm:$0xf]
    %v111 = vld [vmem:[#allocation2 + $0x64] sm:$0xf]
    %v112 = vld [vmem:[#allocation2 + $0x68] sm:$0xf]
    %v113 = vld [vmem:[#allocation2 + $0x6c] sm:$0xf]
    %v114 = vld [vmem:[#allocation2 + $0x70] sm:$0xf]
    %v115 = vld [vmem:[#allocation2 + $0x74] sm:$0xf]
    %v116 = vld [vmem:[#allocation2 + $0x78] sm:$0xf]
    %v117 = vld [vmem:[#allocation2 + $0x7c] sm:$0xf]
    %v118 = vld [vmem:[#allocation2 + $0x80] sm:$0xf]
    %v119 = vld [vmem:[#allocation2 + $0x84] sm:$0xf]
    %v120 = vld [vmem:[#allocation2 + $0x88] sm:$0xf]
    %v121 = vld [vmem:[#allocation2 + $0x8c] sm:$0xf]
    %v122 = vld [vmem:[#allocation2 + $0x90] sm:$0xf]
    %v123 = vld [vmem:[#allocation2 + $0x94] sm:$0xf]
    %v124 = vld [vmem:[#allocation2 + $0x98] sm:$0xf]
    %v125 = vld [vmem:[#allocation2 + $0x9c] sm:$0xf]
    %v126 = vld [vmem:[#allocation2 + $0xa0] sm:$0xf]
    %v127 = vld [vmem:[#allocation2 + $0xa4] sm:$0xf]
    %v128 = vld [vmem:[#allocation2 + $0xa8] sm:$0xf]
    %v129 = vld [vmem:[#allocation2 + $0xac] sm:$0xf]
    %v130 = vld [vmem:[#allocation2 + $0xb0] sm:$0xf]
    %v131 = vld [vmem:[#allocation2 + $0xb4] sm:$0xf]
    %v132 = vld [vmem:[#allocation2 + $0xb8] sm:$0xf]
    %v133 = vld [vmem:[#allocation2 + $0xbc] sm:$0xf]
    %v134 = vld [vmem:[#allocation2 + $0xc0] sm:$0xf]
    %v135 = vld [vmem:[#allocation2 + $0xc4] sm:$0xf]
    %v136 = vld [vmem:[#allocation2 + $0xc8] sm:$0xf]
    %v137 = vld [vmem:[#allocation2 + $0xcc] sm:$0xf]
    %v138 = vld [vmem:[#allocation2 + $0xd0] sm:$0xf]
    %v139 = vld [vmem:[#allocation2 + $0xd4] sm:$0xf]
    %v140 = vld [vmem:[#allocation2 + $0xd8] sm:$0xf]
    %v141 = vld [vmem:[#allocation2 + $0xdc] sm:$0xf]
    %v142 = vld [vmem:[#allocation2 + $0xe0] sm:$0xf]
    %v143 = vld [vmem:[#allocation2 + $0xe4] sm:$0xf]
    %v144 = vld [vmem:[#allocation2 + $0xe8] sm:$0xf]
    %v145 = vld [vmem:[#allocation2 + $0xec] sm:$0xf]
    %v146 = vld [vmem:[#allocation2 + $0xf0] sm:$0xf]
    %v147 = vld [vmem:[#allocation2 + $0xf4] sm:$0xf]
    %v148 = vld [vmem:[#allocation2 + $0xf8] sm:$0xf]
    %v149 = vld [vmem:[#allocation2 + $0xfc] sm:$0xf]
    %v150 = vld [vmem:[#allocation2 + $0x100] sm:$0xf]
    %v151 = vld [vmem:[#allocation2 + $0x104] sm:$0xf]
    %v152 = vld [vmem:[#allocation2 + $0x108] sm:$0xf]
    %v153 = vld [vmem:[#allocation2 + $0x10c] sm:$0xf]
    %v154 = vld [vmem:[#allocation2 + $0x110] sm:$0xf]
    %v155 = vld [vmem:[#allocation2 + $0x114] sm:$0xf]
    %v156 = vld [vmem:[#allocation2 + $0x118] sm:$0xf]
    %v157 = vld [vmem:[#allocation2 + $0x11c] sm:$0xf]
    %v158 = vld [vmem:[#allocation2 + $0x120] sm:$0xf]
    %v159 = vld [vmem:[#allocation2 + $0x124] sm:$0xf]
    %v160 = vld [vmem:[#allocation2 + $0x128] sm:$0xf]
    %v161 = vld [vmem:[#allocation2 + $0x12c] sm:$0xf]
    %v162 = vld [vmem:[#allocation2 + $0x130] sm:$0xf]
    %v163 = vld [vmem:[#allocation2 + $0x134] sm:$0xf]
    %v164 = vld [vmem:[#allocation2 + $0x138] sm:$0xf]
    %v165 = vld [vmem:[#allocation2 + $0x13c] sm:$0xf]
    %v166 = vld [vmem:[#allocation2 + $0x140] sm:$0xf]
    %v167 = vld [vmem:[#allocation2 + $0x144] sm:$0xf]
    %v168 = vld [vmem:[#allocation2 + $0x148] sm:$0xf]
    %v169 = vld [vmem:[#allocation2 + $0x14c] sm:$0xf]
    %v170 = vld [vmem:[#allocation2 + $0x150] sm:$0xf]
    %v171 = vld [vmem:[#allocation2 + $0x154] sm:$0xf]
    %v172 = vld [vmem:[#allocation2 + $0x158] sm:$0xf]
    %v173 = vld [vmem:[#allocation2 + $0x15c] sm:$0xf]
    %v174 = vld [vmem:[#allocation2 + $0x160] sm:$0xf]
    %v175 = vld [vmem:[#allocation2 + $0x164] sm:$0xf]
    %v176 = vld [vmem:[#allocation2 + $0x168] sm:$0xf]
    %v177 = vld [vmem:[#allocation2 + $0x16c] sm:$0xf]
    %v178 = vld [vmem:[#allocation2 + $0x170] sm:$0xf]
    %v179 = vld [vmem:[#allocation2 + $0x174] sm:$0xf]
    %v180 = vld [vmem:[#allocation2 + $0x178] sm:$0xf]
    %v181 = vld [vmem:[#allocation2 + $0x17c] sm:$0xf]
    %v182 = vld [vmem:[#allocation2 + $0x180] sm:$0xf]
    %v183 = vld [vmem:[#allocation2 + $0x184] sm:$0xf]
    %v184 = vld [vmem:[#allocation2 + $0x188] sm:$0xf]
    %v185 = vld [vmem:[#allocation2 + $0x18c] sm:$0xf]
    %v186 = vld [vmem:[#allocation2 + $0x190] sm:$0xf]
    %v187 = vld [vmem:[#allocation2 + $0x194] sm:$0xf]
    %v188 = vld [vmem:[#allocation2 + $0x198] sm:$0xf]
    %v189 = vld [vmem:[#allocation2 + $0x19c] sm:$0xf]
    %v190 = vld [vmem:[#allocation2 + $0x1a0] sm:$0xf]
    %v191 = vld [vmem:[#allocation2 + $0x1a4] sm:$0xf]
    %v192 = vld [vmem:[#allocation2 + $0x1a8] sm:$0xf]
    %v193 = vld [vmem:[#allocation2 + $0x1ac] sm:$0xf]
    %v194 = vld [vmem:[#allocation2 + $0x1b0] sm:$0xf]
    %v195 = vld [vmem:[#allocation2 + $0x1b4] sm:$0xf]
    %v196 = vld [vmem:[#allocation2 + $0x1b8] sm:$0xf]
    %v197 = vld [vmem:[#allocation2 + $0x1bc] sm:$0xf]
    %v198 = vld [vmem:[#allocation2 + $0x1c0] sm:$0xf]
    %v199 = vld [vmem:[#allocation2 + $0x1c4] sm:$0xf]
    %v200 = vld [vmem:[#allocation2 + $0x1c8] sm:$0xf]
    %v201 = vld [vmem:[#allocation2 + $0x1cc] sm:$0xf]
    %v202 = vld [vmem:[#allocation2 + $0x1d0] sm:$0xf]
    %v203 = vld [vmem:[#allocation2 + $0x1d4] sm:$0xf]
    %v204 = vld [vmem:[#allocation2 + $0x1d8] sm:$0xf]
    %v205 = vld [vmem:[#allocation2 + $0x1dc] sm:$0xf]
    %v206 = vld [vmem:[#allocation2 + $0x1e0] sm:$0xf]
    %v207 = vld [vmem:[#allocation2 + $0x1e4] sm:$0xf]
    %v208 = vld [vmem:[#allocation2 + $0x1e8] sm:$0xf]
    %v209 = vld [vmem:[#allocation2 + $0x1ec] sm:$0xf]
    %v210 = vld [vmem:[#allocation2 + $0x1f0] sm:$0xf]
    %v211 = vld [vmem:[#allocation2 + $0x1f4] sm:$0xf]
    %v212 = vld [vmem:[#allocation2 + $0x1f8] sm:$0xf]
    %v213 = vld [vmem:[#allocation2 + $0x1fc] sm:$0xf]
    %v214 = vld [vmem:[#allocation2 + $0x200] sm:$0xf]
    %v215 = vld [vmem:[#allocation2 + $0x204] sm:$0xf]
    %v216 = vld [vmem:[#allocation2 + $0x208] sm:$0xf]
    %v217 = vld [vmem:[#allocation2 + $0x20c] sm:$0xf]
    %v218 = vld [vmem:[#allocation2 + $0x210] sm:$0xf]
    %v219 = vld [vmem:[#allocation2 + $0x214] sm:$0xf]
    %v220 = vld [vmem:[#allocation2 + $0x218] sm:$0xf]
    %v221 = vld [vmem:[#allocation2 + $0x21c] sm:$0xf]
    %v222 = vld [vmem:[#allocation2 + $0x220] sm:$0xf]
    %v223 = vld [vmem:[#allocation2 + $0x224] sm:$0xf]
    %v224 = vld [vmem:[#allocation2 + $0x228] sm:$0xf]
    %v225 = vld [vmem:[#allocation2 + $0x22c] sm:$0xf]
    %v226 = vld [vmem:[#allocation2 + $0x230] sm:$0xf]
    %v227 = vld [vmem:[#allocation2 + $0x234] sm:$0xf]
    %v228 = vld [vmem:[#allocation2 + $0x238] sm:$0xf]
    %v229 = vld [vmem:[#allocation2 + $0x23c] sm:$0xf]
    %v230 = vld [vmem:[#allocation2 + $0x240] sm:$0xf]
    %v231 = vld [vmem:[#allocation2 + $0x244] sm:$0xf]
    %v232 = vld [vmem:[#allocation2 + $0x248] sm:$0xf]
    %v233 = vld [vmem:[#allocation2 + $0x24c] sm:$0xf]
    %v234 = vld [vmem:[#allocation2 + $0x250] sm:$0xf]
    %v235 = vld [vmem:[#allocation2 + $0x254] sm:$0xf]
    %v236 = vld [vmem:[#allocation2 + $0x258] sm:$0xf]
    %v237 = vld [vmem:[#allocation2 + $0x25c] sm:$0xf]
    %v238 = vld [vmem:[#allocation2 + $0x260] sm:$0xf]
    %v239 = vld [vmem:[#allocation2 + $0x264] sm:$0xf]
    %v240 = vld [vmem:[#allocation2 + $0x268] sm:$0xf]
    %v241 = vld [vmem:[#allocation2 + $0x26c] sm:$0xf]
    %v242 = vld [vmem:[#allocation2 + $0x270] sm:$0xf]
    %v243 = vld [vmem:[#allocation2 + $0x274] sm:$0xf]
    %v244 = vld [vmem:[#allocation2 + $0x278] sm:$0xf]
    %v245 = vld [vmem:[#allocation2 + $0x27c] sm:$0xf]
    %v246 = vld [vmem:[#allocation2 + $0x280] sm:$0xf]
    %v247 = vld [vmem:[#allocation2 + $0x284] sm:$0xf]
    %v248 = vld [vmem:[#allocation2 + $0x288] sm:$0xf]
    %v249 = vld [vmem:[#allocation2 + $0x28c] sm:$0xf]
    %v250 = vld [vmem:[#allocation2 + $0x290] sm:$0xf]
    %v251 = vld [vmem:[#allocation2 + $0x294] sm:$0xf]
    %v252 = vld [vmem:[#allocation2 + $0x298] sm:$0xf]
    %v253 = vld [vmem:[#allocation2 + $0x29c] sm:$0xf]
    %v254 = vld [vmem:[#allocation2 + $0x2a0] sm:$0xf]
    %v255 = vld [vmem:[#allocation2 + $0x2a4] sm:$0xf]
    %v256 = vld [vmem:[#allocation2 + $0x2a8] sm:$0xf]
    %v257 = vld [vmem:[#allocation2 + $0x2ac] sm:$0xf]
    %v258 = vld [vmem:[#allocation2 + $0x2b0] sm:$0xf]
    %v259 = vld [vmem:[#allocation2 + $0x2b4] sm:$0xf]
    %v260 = vld [vmem:[#allocation2 + $0x2b8] sm:$0xf]
    %v261 = vld [vmem:[#allocation2 + $0x2bc] sm:$0xf]
    %v262 = vld [vmem:[#allocation2 + $0x2c0] sm:$0xf]
    %v263 = vld [vmem:[#allocation2 + $0x2c4] sm:$0xf]
    %v264 = vld [vmem:[#allocation2 + $0x2c8] sm:$0xf]
    %v265 = vld [vmem:[#allocation2 + $0x2cc] sm:$0xf]
    %v266 = vld [vmem:[#allocation2 + $0x2d0] sm:$0xf]
    %v267 = vld [vmem:[#allocation2 + $0x2d4] sm:$0xf]
    %v268 = vld [vmem:[#allocation2 + $0x2d8] sm:$0xf]
    %v269 = vld [vmem:[#allocation2 + $0x2dc] sm:$0xf]
    %v270 = vld [vmem:[#allocation2 + $0x2e0] sm:$0xf]
    %v271 = vld [vmem:[#allocation2 + $0x2e4] sm:$0xf]
    %v272 = vld [vmem:[#allocation2 + $0x2e8] sm:$0xf]
    %v273 = vld [vmem:[#allocation2 + $0x2ec] sm:$0xf]
    %v274 = vld [vmem:[#allocation2 + $0x2f0] sm:$0xf]
    %v275 = vld [vmem:[#allocation2 + $0x2f4] sm:$0xf]
    %v276 = vld [vmem:[#allocation2 + $0x2f8] sm:$0xf]
    %v277 = vld [vmem:[#allocation2 + $0x2fc] sm:$0xf]
    %v278 = vld [vmem:[#allocation2 + $0x300] sm:$0xf]
    %v279 = vld [vmem:[#allocation2 + $0x304] sm:$0xf]
    %v280 = vld [vmem:[#allocation2 + $0x308] sm:$0xf]
    %v281 = vld [vmem:[#allocation2 + $0x30c] sm:$0xf]
    %v282 = vld [vmem:[#allocation2 + $0x310] sm:$0xf]
    %v283 = vld [vmem:[#allocation2 + $0x314] sm:$0xf]
    %v284 = vld [vmem:[#allocation2 + $0x318] sm:$0xf]
    %v285 = vld [vmem:[#allocation2 + $0x31c] sm:$0xf]
    %v286 = vld [vmem:[#allocation2 + $0x320] sm:$0xf]
    %v287 = vld [vmem:[#allocation2 + $0x324] sm:$0xf]
    %v288 = vld [vmem:[#allocation2 + $0x328] sm:$0xf]
    %v289 = vld [vmem:[#allocation2 + $0x32c] sm:$0xf]
    %v290 = vld [vmem:[#allocation2 + $0x330] sm:$0xf]
    %v291 = vld [vmem:[#allocation2 + $0x334] sm:$0xf]
    %v292 = vld [vmem:[#allocation2 + $0x338] sm:$0xf]
    %v293 = vld [vmem:[#allocation2 + $0x33c] sm:$0xf]
    %v294 = vld [vmem:[#allocation2 + $0x340] sm:$0xf]
    %v295 = vld [vmem:[#allocation2 + $0x344] sm:$0xf]
    %v296 = vld [vmem:[#allocation2 + $0x348] sm:$0xf]
    %v297 = vld [vmem:[#allocation2 + $0x34c] sm:$0xf]
    %v298 = vld [vmem:[#allocation2 + $0x350] sm:$0xf]
    %v299 = vld [vmem:[#allocation2 + $0x354] sm:$0xf]
    %v300 = vld [vmem:[#allocation2 + $0x358] sm:$0xf]
    %v301 = vld [vmem:[#allocation2 + $0x35c] sm:$0xf]
    %v302 = vld [vmem:[#allocation2 + $0x360] sm:$0xf]
    %v303 = vld [vmem:[#allocation2 + $0x364] sm:$0xf]
    %v304 = vld [vmem:[#allocation2 + $0x368] sm:$0xf]
    %v305 = vld [vmem:[#allocation2 + $0x36c] sm:$0xf]
    %v306 = vld [vmem:[#allocation2 + $0x370] sm:$0xf]
    %v307 = vld [vmem:[#allocation2 + $0x374] sm:$0xf]
    %v308 = vld [vmem:[#allocation2 + $0x378] sm:$0xf]
    %v309 = vld [vmem:[#allocation2 + $0x37c] sm:$0xf]
    %v310 = vld [vmem:[#allocation2 + $0x380] sm:$0xf]
    %v311 = vld [vmem:[#allocation2 + $0x384] sm:$0xf]
    %v312 = vld [vmem:[#allocation2 + $0x388] sm:$0xf]
    %v313 = vld [vmem:[#allocation2 + $0x38c] sm:$0xf]
    %v314 = vld [vmem:[#allocation2 + $0x390] sm:$0xf]
    %v315 = vld [vmem:[#allocation2 + $0x394] sm:$0xf]
    %v316 = vld [vmem:[#allocation2 + $0x398] sm:$0xf]
    %v317 = vld [vmem:[#allocation2 + $0x39c] sm:$0xf]
    %v318 = vld [vmem:[#allocation2 + $0x3a0] sm:$0xf]
    %v319 = vld [vmem:[#allocation2 + $0x3a4] sm:$0xf]
    %v320 = vld [vmem:[#allocation2 + $0x3a8] sm:$0xf]
    %v321 = vld [vmem:[#allocation2 + $0x3ac] sm:$0xf]
    %v322 = vld [vmem:[#allocation2 + $0x3b0] sm:$0xf]
    %v323 = vld [vmem:[#allocation2 + $0x3b4] sm:$0xf]
    %v324 = vld [vmem:[#allocation2 + $0x3b8] sm:$0xf]
    %v325 = vld [vmem:[#allocation2 + $0x3bc] sm:$0xf]
    %v326 = vld [vmem:[#allocation2 + $0x3c0] sm:$0xf]
    %v327 = vld [vmem:[#allocation2 + $0x3c4] sm:$0xf]
    %v328 = vld [vmem:[#allocation2 + $0x3c8] sm:$0xf]
    %v329 = vld [vmem:[#allocation2 + $0x3cc] sm:$0xf]
    %v330 = vld [vmem:[#allocation2 + $0x3d0] sm:$0xf]
    %v331 = vld [vmem:[#allocation2 + $0x3d4] sm:$0xf]
    %v332 = vld [vmem:[#allocation2 + $0x3d8] sm:$0xf]
    %v333 = vld [vmem:[#allocation2 + $0x3dc] sm:$0xf]
    %v334 = vld [vmem:[#allocation2 + $0x3e0] sm:$0xf]
    %v335 = vld [vmem:[#allocation2 + $0x3e4] sm:$0xf]
    %v336 = vld [vmem:[#allocation2 + $0x3e8] sm:$0xf]
    %v337 = vld [vmem:[#allocation2 + $0x3ec] sm:$0xf]
    %v338 = vld [vmem:[#allocation2 + $0x3f0] sm:$0xf]
    %v339 = vld [vmem:[#allocation2 + $0x3f4] sm:$0xf]
    %v340 = vld [vmem:[#allocation2 + $0x3f8] sm:$0xf]
    %v341 = vld [vmem:[#allocation2 + $0x3fc] sm:$0xf]
    %v342 = vld [vmem:[#allocation2 + $0x400] sm:$0xf]
    %v343 = vld [vmem:[#allocation2 + $0x404] sm:$0xf]
    %v344 = vld [vmem:[#allocation2 + $0x408] sm:$0xf]
    %v345 = vld [vmem:[#allocation2 + $0x40c] sm:$0xf]
    %v346 = vld [vmem:[#allocation2 + $0x410] sm:$0xf]
    %v347 = vld [vmem:[#allocation2 + $0x414] sm:$0xf]
    %v348 = vld [vmem:[#allocation2 + $0x418] sm:$0xf]
    %v349 = vld [vmem:[#allocation2 + $0x41c] sm:$0xf]
    %v350 = vld [vmem:[#allocation2 + $0x420] sm:$0xf]
    %v351 = vld [vmem:[#allocation2 + $0x424] sm:$0xf]
    %v352 = vld [vmem:[#allocation2 + $0x428] sm:$0xf]
    %v353 = vld [vmem:[#allocation2 + $0x42c] sm:$0xf]
    %v354 = vld [vmem:[#allocation2 + $0x430] sm:$0xf]
    %v355 = vld [vmem:[#allocation2 + $0x434] sm:$0xf]
    %v356 = vld [vmem:[#allocation2 + $0x438] sm:$0xf]
    %v357 = vld [vmem:[#allocation2 + $0x43c] sm:$0xf]
    %v358 = vld [vmem:[#allocation2 + $0x440] sm:$0xf]
    %v359 = vld [vmem:[#allocation2 + $0x444] sm:$0xf]
    %v360 = vld [vmem:[#allocation2 + $0x448] sm:$0xf]
    %v361 = vld [vmem:[#allocation2 + $0x44c] sm:$0xf]
    %v362 = vld [vmem:[#allocation2 + $0x450] sm:$0xf]
    %v363 = vld [vmem:[#allocation2 + $0x454] sm:$0xf]
    %v364 = vld [vmem:[#allocation2 + $0x458] sm:$0xf]
    %v365 = vld [vmem:[#allocation2 + $0x45c] sm:$0xf]
    %v366 = vld [vmem:[#allocation2 + $0x460] sm:$0xf]
    %v367 = vld [vmem:[#allocation2 + $0x464] sm:$0xf]
    %v368 = vld [vmem:[#allocation2 + $0x468] sm:$0xf]
    %v369 = vld [vmem:[#allocation2 + $0x46c] sm:$0xf]
    %v370 = vld [vmem:[#allocation2 + $0x470] sm:$0xf]
    %v371 = vld [vmem:[#allocation2 + $0x474] sm:$0xf]
    %v372 = vld [vmem:[#allocation2 + $0x478] sm:$0xf]
    %v373 = vld [vmem:[#allocation2 + $0x47c] sm:$0xf]
    %v374 = vld [vmem:[#allocation2 + $0x480] sm:$0xf]
    %v375 = vld [vmem:[#allocation2 + $0x484] sm:$0xf]
    %v376 = vld [vmem:[#allocation2 + $0x488] sm:$0xf]
    %v377 = vld [vmem:[#allocation2 + $0x48c] sm:$0xf]
    %v378 = vld [vmem:[#allocation2 + $0x490] sm:$0xf]
    %v379 = vld [vmem:[#allocation2 + $0x494] sm:$0xf]
    %v380 = vld [vmem:[#allocation2 + $0x498] sm:$0xf]
    %v381 = vld [vmem:[#allocation2 + $0x49c] sm:$0xf]
    %v382 = vld [vmem:[#allocation2 + $0x4a0] sm:$0xf]
    %v383 = vld [vmem:[#allocation2 + $0x4a4] sm:$0xf]
    %v384 = vld [vmem:[#allocation2 + $0x4a8] sm:$0xf]
    %v385 = vld [vmem:[#allocation2 + $0x4ac] sm:$0xf]
    %v386 = vld [vmem:[#allocation2 + $0x4b0] sm:$0xf]
    %v387 = vld [vmem:[#allocation2 + $0x4b4] sm:$0xf]
    %v388 = vld [vmem:[#allocation2 + $0x4b8] sm:$0xf]
    %v389 = vld [vmem:[#allocation2 + $0x4bc] sm:$0xf]
    %v390 = vld [vmem:[#allocation2 + $0x4c0] sm:$0xf]
    %v391 = vld [vmem:[#allocation2 + $0x4c4] sm:$0xf]
    %v392 = vld [vmem:[#allocation2 + $0x4c8] sm:$0xf]
    %v393 = vld [vmem:[#allocation2 + $0x4cc] sm:$0xf]
    %v394 = vld [vmem:[#allocation2 + $0x4d0] sm:$0xf]
    %v395 = vld [vmem:[#allocation2 + $0x4d4] sm:$0xf]
    %v396 = vld [vmem:[#allocation2 + $0x4d8] sm:$0xf]
    %v397 = vld [vmem:[#allocation2 + $0x4dc] sm:$0xf]
    %v398 = vld [vmem:[#allocation2 + $0x4e0] sm:$0xf]
    %v399 = vld [vmem:[#allocation2 + $0x4e4] sm:$0xf]
    %v400 = vld [vmem:[#allocation2 + $0x4e8] sm:$0xf]
    %v401 = vld [vmem:[#allocation2 + $0x4ec] sm:$0xf]
    %v402 = vld [vmem:[#allocation2 + $0x4f0] sm:$0xf]
    %v403 = vld [vmem:[#allocation2 + $0x4f4] sm:$0xf]
    %v404 = vld [vmem:[#allocation2 + $0x4f8] sm:$0xf]
    %v405 = vld [vmem:[#allocation2 + $0x4fc] sm:$0xf]
    %v406 = vld [vmem:[#allocation2 + $0x500] sm:$0xf]
    %v407 = vld [vmem:[#allocation2 + $0x504] sm:$0xf]
    %v408 = vld [vmem:[#allocation2 + $0x508] sm:$0xf]
    %v409 = vld [vmem:[#allocation2 + $0x50c] sm:$0xf]
    %v410 = vld [vmem:[#allocation2 + $0x510] sm:$0xf]
    %v411 = vld [vmem:[#allocation2 + $0x514] sm:$0xf]
    %v412 = vld [vmem:[#allocation2 + $0x518] sm:$0xf]
    %v413 = vld [vmem:[#allocation2 + $0x51c] sm:$0xf]
    %v414 = vld [vmem:[#allocation2 + $0x520] sm:$0xf]
    %v415 = vld [vmem:[#allocation2 + $0x524] sm:$0xf]
    %v416 = vld [vmem:[#allocation2 + $0x528] sm:$0xf]
    %v417 = vld [vmem:[#allocation2 + $0x52c] sm:$0xf]
    %v418 = vld [vmem:[#allocation2 + $0x530] sm:$0xf]
    %v419 = vld [vmem:[#allocation2 + $0x534] sm:$0xf]
    %v420 = vld [vmem:[#allocation2 + $0x538] sm:$0xf]
    %v421 = vld [vmem:[#allocation2 + $0x53c] sm:$0xf]
    %v422 = vld [vmem:[#allocation2 + $0x540] sm:$0xf]
    %v423 = vld [vmem:[#allocation2 + $0x544] sm:$0xf]
    %v424 = vld [vmem:[#allocation2 + $0x548] sm:$0xf]
    %v425 = vld [vmem:[#allocation2 + $0x54c] sm:$0xf]
    %v426 = vld [vmem:[#allocation2 + $0x550] sm:$0xf]
    %v427 = vld [vmem:[#allocation2 + $0x554] sm:$0xf]
    %v428 = vld [vmem:[#allocation2 + $0x558] sm:$0xf]
    %v429 = vld [vmem:[#allocation2 + $0x55c] sm:$0xf]
    %v430 = vld [vmem:[#allocation2 + $0x560] sm:$0xf]
    %v431 = vld [vmem:[#allocation2 + $0x564] sm:$0xf]
    %v432 = vld [vmem:[#allocation2 + $0x568] sm:$0xf]
    %v433 = vld [vmem:[#allocation2 + $0x56c] sm:$0xf]
    %v434 = vld [vmem:[#allocation2 + $0x570] sm:$0xf]
    %v435 = vld [vmem:[#allocation2 + $0x574] sm:$0xf]
    %v436 = vld [vmem:[#allocation2 + $0x578] sm:$0xf]
    %v437 = vld [vmem:[#allocation2 + $0x57c] sm:$0xf]
    %v438 = vld [vmem:[#allocation2 + $0x580] sm:$0xf]
    %v439 = vld [vmem:[#allocation2 + $0x584] sm:$0xf]
    %v440 = vld [vmem:[#allocation2 + $0x588] sm:$0xf]
    %v441 = vld [vmem:[#allocation2 + $0x58c] sm:$0xf]
    %v442 = vld [vmem:[#allocation2 + $0x590] sm:$0xf]
    %v443 = vld [vmem:[#allocation2 + $0x594] sm:$0xf]
    %v444 = vld [vmem:[#allocation2 + $0x598] sm:$0xf]
    %v445 = vld [vmem:[#allocation2 + $0x59c] sm:$0xf]
    %v446 = vld [vmem:[#allocation2 + $0x5a0] sm:$0xf]
    %v447 = vld [vmem:[#allocation2 + $0x5a4] sm:$0xf]
    %v448 = vld [vmem:[#allocation2 + $0x5a8] sm:$0xf]
    %v449 = vld [vmem:[#allocation2 + $0x5ac] sm:$0xf]
    %v450 = vld [vmem:[#allocation2 + $0x5b0] sm:$0xf]
    %v451 = vld [vmem:[#allocation2 + $0x5b4] sm:$0xf]
    %v452 = vld [vmem:[#allocation2 + $0x5b8] sm:$0xf]
    %v453 = vld [vmem:[#allocation2 + $0x5bc] sm:$0xf]
    %v454 = vld [vmem:[#allocation2 + $0x5c0] sm:$0xf]
    %v455 = vld [vmem:[#allocation2 + $0x5c4] sm:$0xf]
    %v456 = vld [vmem:[#allocation2 + $0x5c8] sm:$0xf]
    %v457 = vld [vmem:[#allocation2 + $0x5cc] sm:$0xf]
    %v458 = vld [vmem:[#allocation2 + $0x5d0] sm:$0xf]
    %v459 = vld [vmem:[#allocation2 + $0x5d4] sm:$0xf]
    %v460 = vld [vmem:[#allocation2 + $0x5d8] sm:$0xf]
    %v461 = vld [vmem:[#allocation2 + $0x5dc] sm:$0xf]
    %v462 = vld [vmem:[#allocation2 + $0x5e0] sm:$0xf]
    %v463 = vld [vmem:[#allocation2 + $0x5e4] sm:$0xf]
    %v464 = vld [vmem:[#allocation2 + $0x5e8] sm:$0xf]
    %v465 = vld [vmem:[#allocation2 + $0x5ec] sm:$0xf]
    %v466 = vld [vmem:[#allocation2 + $0x5f0] sm:$0xf]
    %v467 = vld [vmem:[#allocation2 + $0x5f4] sm:$0xf]
    %v468 = vld [vmem:[#allocation2 + $0x5f8] sm:$0xf]
    %v469 = vld [vmem:[#allocation2 + $0x5fc] sm:$0xf]
    %v470 = vld [vmem:[#allocation2 + $0x600] sm:$0xf]
    %v471 = vld [vmem:[#allocation2 + $0x604] sm:$0xf]
    %v472 = vld [vmem:[#allocation2 + $0x608] sm:$0xf]
    %v473 = vld [vmem:[#allocation2 + $0x60c] sm:$0xf]
    %v474 = vld [vmem:[#allocation2 + $0x610] sm:$0xf]
    %v475 = vld [vmem:[#allocation2 + $0x614] sm:$0xf]
    %v476 = vld [vmem:[#allocation2 + $0x618] sm:$0xf]
    %v477 = vld [vmem:[#allocation2 + $0x61c] sm:$0xf]
    %v478 = vld [vmem:[#allocation2 + $0x620] sm:$0xf]
    %v479 = vld [vmem:[#allocation2 + $0x624] sm:$0xf]
    %v480 = vld [vmem:[#allocation2 + $0x628] sm:$0xf]
    %v481 = vld [vmem:[#allocation2 + $0x62c] sm:$0xf]
    %v482 = vld [vmem:[#allocation2 + $0x630] sm:$0xf]
    %v483 = vld [vmem:[#allocation2 + $0x634] sm:$0xf]
    %v484 = vld [vmem:[#allocation2 + $0x638] sm:$0xf]
    %v485 = vld [vmem:[#allocation2 + $0x63c] sm:$0xf]
    %v486 = vld [vmem:[#allocation2 + $0x640] sm:$0xf]
    %v487 = vld [vmem:[#allocation2 + $0x644] sm:$0xf]
    %v488 = vld [vmem:[#allocation2 + $0x648] sm:$0xf]
    %v489 = vld [vmem:[#allocation2 + $0x64c] sm:$0xf]
    %v490 = vld [vmem:[#allocation2 + $0x650] sm:$0xf]
    %v491 = vld [vmem:[#allocation2 + $0x654] sm:$0xf]
    %v492 = vld [vmem:[#allocation2 + $0x658] sm:$0xf]
    %v493 = vld [vmem:[#allocation2 + $0x65c] sm:$0xf]
    %v494 = vld [vmem:[#allocation2 + $0x660] sm:$0xf]
    %v495 = vld [vmem:[#allocation2 + $0x664] sm:$0xf]
    %v496 = vld [vmem:[#allocation2 + $0x668] sm:$0xf]
    %v497 = vld [vmem:[#allocation2 + $0x66c] sm:$0xf]
    %v498 = vld [vmem:[#allocation2 + $0x670] sm:$0xf]
    %v499 = vld [vmem:[#allocation2 + $0x674] sm:$0xf]
    %v500 = vld [vmem:[#allocation2 + $0x678] sm:$0xf]
    %v501 = vld [vmem:[#allocation2 + $0x67c] sm:$0xf]
    %v502 = vld [vmem:[#allocation2 + $0x680] sm:$0xf]
    %v503 = vld [vmem:[#allocation2 + $0x684] sm:$0xf]
    %v504 = vld [vmem:[#allocation2 + $0x688] sm:$0xf]
    %v505 = vld [vmem:[#allocation2 + $0x68c] sm:$0xf]
    %v506 = vld [vmem:[#allocation2 + $0x690] sm:$0xf]
    %v507 = vld [vmem:[#allocation2 + $0x694] sm:$0xf]
    %v508 = vld [vmem:[#allocation2 + $0x698] sm:$0xf]
    %v509 = vld [vmem:[#allocation2 + $0x69c] sm:$0xf]
    %v510 = vld [vmem:[#allocation2 + $0x6a0] sm:$0xf]
    %v511 = vld [vmem:[#allocation2 + $0x6a4] sm:$0xf]
    %v512 = vld [vmem:[#allocation2 + $0x6a8] sm:$0xf]
    %v513 = vld [vmem:[#allocation2 + $0x6ac] sm:$0xf]
    %v514 = vld [vmem:[#allocation2 + $0x6b0] sm:$0xf]
    %v515 = vld [vmem:[#allocation2 + $0x6b4] sm:$0xf]
    %v516 = vld [vmem:[#allocation2 + $0x6b8] sm:$0xf]
    %v517 = vld [vmem:[#allocation2 + $0x6bc] sm:$0xf]
    %v518 = vld [vmem:[#allocation2 + $0x6c0] sm:$0xf]
    %v519 = vld [vmem:[#allocation2 + $0x6c4] sm:$0xf]
    %v520 = vld [vmem:[#allocation2 + $0x6c8] sm:$0xf]
    %v521 = vld [vmem:[#allocation2 + $0x6cc] sm:$0xf]
    %v522 = vld [vmem:[#allocation2 + $0x6d0] sm:$0xf]
    %v523 = vld [vmem:[#allocation2 + $0x6d4] sm:$0xf]
    %v524 = vld [vmem:[#allocation2 + $0x6d8] sm:$0xf]
    %v525 = vld [vmem:[#allocation2 + $0x6dc] sm:$0xf]
    %v526 = vld [vmem:[#allocation2 + $0x6e0] sm:$0xf]
    %v527 = vld [vmem:[#allocation2 + $0x6e4] sm:$0xf]
    %v528 = vld [vmem:[#allocation2 + $0x6e8] sm:$0xf]
    %v529 = vld [vmem:[#allocation2 + $0x6ec] sm:$0xf]
    %v530 = vld [vmem:[#allocation2 + $0x6f0] sm:$0xf]
    %v531 = vld [vmem:[#allocation2 + $0x6f4] sm:$0xf]
    %v532 = vld [vmem:[#allocation2 + $0x6f8] sm:$0xf]
    %v533 = vld [vmem:[#allocation2 + $0x6fc] sm:$0xf]
    %v534 = vld [vmem:[#allocation2 + $0x700] sm:$0xf]
    %v535 = vld [vmem:[#allocation2 + $0x704] sm:$0xf]
    %v536 = vld [vmem:[#allocation2 + $0x708] sm:$0xf]
    %v537 = vld [vmem:[#allocation2 + $0x70c] sm:$0xf]
    %v538 = vld [vmem:[#allocation2 + $0x710] sm:$0xf]
    %v539 = vld [vmem:[#allocation2 + $0x714] sm:$0xf]
    %v540 = vld [vmem:[#allocation2 + $0x718] sm:$0xf]
    %v541 = vld [vmem:[#allocation2 + $0x71c] sm:$0xf]
    %v542 = vld [vmem:[#allocation2 + $0x720] sm:$0xf]
    %v543 = vld [vmem:[#allocation2 + $0x724] sm:$0xf]
    %v544 = vld [vmem:[#allocation2 + $0x728] sm:$0xf]
    %v545 = vld [vmem:[#allocation2 + $0x72c] sm:$0xf]
    %v546 = vld [vmem:[#allocation2 + $0x730] sm:$0xf]
    %v547 = vld [vmem:[#allocation2 + $0x734] sm:$0xf]
    %v548 = vld [vmem:[#allocation2 + $0x738] sm:$0xf]
    %v549 = vld [vmem:[#allocation2 + $0x73c] sm:$0xf]
    %v550 = vld [vmem:[#allocation2 + $0x740] sm:$0xf]
    %v551 = vld [vmem:[#allocation2 + $0x744] sm:$0xf]
    %v552 = vld [vmem:[#allocation2 + $0x748] sm:$0xf]
    %v553 = vld [vmem:[#allocation2 + $0x74c] sm:$0xf]
    %v554 = vld [vmem:[#allocation2 + $0x750] sm:$0xf]
    %v555 = vld [vmem:[#allocation2 + $0x754] sm:$0xf]
    %v556 = vld [vmem:[#allocation2 + $0x758] sm:$0xf]
    %v557 = vld [vmem:[#allocation2 + $0x75c] sm:$0xf]
    %v558 = vld [vmem:[#allocation2 + $0x760] sm:$0xf]
    %v559 = vld [vmem:[#allocation2 + $0x764] sm:$0xf]
    %v560 = vld [vmem:[#allocation2 + $0x768] sm:$0xf]
    %v561 = vld [vmem:[#allocation2 + $0x76c] sm:$0xf]
    %v562 = vld [vmem:[#allocation2 + $0x770] sm:$0xf]
    %v563 = vld [vmem:[#allocation2 + $0x774] sm:$0xf]
    %v564 = vld [vmem:[#allocation2 + $0x778] sm:$0xf]
    %v565 = vld [vmem:[#allocation2 + $0x77c] sm:$0xf]
    %v566 = vld [vmem:[#allocation2 + $0x780] sm:$0xf]
    %v567 = vld [vmem:[#allocation2 + $0x784] sm:$0xf]
    %v568 = vld [vmem:[#allocation2 + $0x788] sm:$0xf]
    %v569 = vld [vmem:[#allocation2 + $0x78c] sm:$0xf]
    %v570 = vld [vmem:[#allocation2 + $0x790] sm:$0xf]
    %v571 = vld [vmem:[#allocation2 + $0x794] sm:$0xf]
    %v572 = vld [vmem:[#allocation2 + $0x798] sm:$0xf]
    %v573 = vld [vmem:[#allocation2 + $0x79c] sm:$0xf]
    %v574 = vld [vmem:[#allocation2 + $0x7a0] sm:$0xf]
    %v575 = vld [vmem:[#allocation2 + $0x7a4] sm:$0xf]
    %v576 = vld [vmem:[#allocation2 + $0x7a8] sm:$0xf]
    %v577 = vld [vmem:[#allocation2 + $0x7ac] sm:$0xf]
    %v578 = vld [vmem:[#allocation2 + $0x7b0] sm:$0xf]
    %v579 = vld [vmem:[#allocation2 + $0x7b4] sm:$0xf]
    %v580 = vld [vmem:[#allocation2 + $0x7b8] sm:$0xf]
    %v581 = vld [vmem:[#allocation2 + $0x7bc] sm:$0xf]
    %v582 = vld [vmem:[#allocation2 + $0x7c0] sm:$0xf]
    %v583 = vld [vmem:[#allocation2 + $0x7c4] sm:$0xf]
    %v584 = vld [vmem:[#allocation2 + $0x7c8] sm:$0xf]
    %v585 = vld [vmem:[#allocation2 + $0x7cc] sm:$0xf]
    %v586 = vld [vmem:[#allocation2 + $0x7d0] sm:$0xf]
    %v587 = vld [vmem:[#allocation2 + $0x7d4] sm:$0xf]
    %v588 = vld [vmem:[#allocation2 + $0x7d8] sm:$0xf]
    %v589 = vld [vmem:[#allocation2 + $0x7dc] sm:$0xf]
    %v590 = vld [vmem:[#allocation2 + $0x7e0] sm:$0xf]
    %v591 = vld [vmem:[#allocation2 + $0x7e4] sm:$0xf]
    %v592 = vld [vmem:[#allocation2 + $0x7e8] sm:$0xf]
    %v593 = vld [vmem:[#allocation2 + $0x7ec] sm:$0xf]
    %v594 = vld [vmem:[#allocation2 + $0x7f0] sm:$0xf]
    %v595 = vld [vmem:[#allocation2 + $0x7f4] sm:$0xf]
    %v596 = vld [vmem:[#allocation2 + $0x7f8] sm:$0xf]
    %v597 = vld [vmem:[#allocation2 + $0x7fc] sm:$0xf]
    %v598 = vld [vmem:[#allocation2 + $0x800] sm:$0xf]
    %v599 = vld [vmem:[#allocation2 + $0x804] sm:$0xf]
    %v600 = vld [vmem:[#allocation2 + $0x808] sm:$0xf]
    %v601 = vld [vmem:[#allocation2 + $0x80c] sm:$0xf]
    %v602 = vld [vmem:[#allocation2 + $0x810] sm:$0xf]
    %v603 = vld [vmem:[#allocation2 + $0x814] sm:$0xf]
    %v604 = vld [vmem:[#allocation2 + $0x818] sm:$0xf]
    %v605 = vld [vmem:[#allocation2 + $0x81c] sm:$0xf]
    %v606 = vld [vmem:[#allocation2 + $0x820] sm:$0xf]
    %v607 = vld [vmem:[#allocation2 + $0x824] sm:$0xf]
    %v608 = vld [vmem:[#allocation2 + $0x828] sm:$0xf]
    %v609 = vld [vmem:[#allocation2 + $0x82c] sm:$0xf]
    %v610 = vld [vmem:[#allocation2 + $0x830] sm:$0xf]
    %v611 = vld [vmem:[#allocation2 + $0x834] sm:$0xf]
    %v612 = vld [vmem:[#allocation2 + $0x838] sm:$0xf]
    %v613 = vld [vmem:[#allocation2 + $0x83c] sm:$0xf]
    %v614 = vld [vmem:[#allocation2 + $0x840] sm:$0xf]
    %v615 = vld [vmem:[#allocation2 + $0x844] sm:$0xf]
    %v616 = vld [vmem:[#allocation2 + $0x848] sm:$0xf]
    %v617 = vld [vmem:[#allocation2 + $0x84c] sm:$0xf]
    %v618 = vld [vmem:[#allocation2 + $0x850] sm:$0xf]
    %v619 = vld [vmem:[#allocation2 + $0x854] sm:$0xf]
    %v620 = vld [vmem:[#allocation2 + $0x858] sm:$0xf]
    %v621 = vld [vmem:[#allocation2 + $0x85c] sm:$0xf]
    %v622 = vld [vmem:[#allocation2 + $0x860] sm:$0xf]
    %v623 = vld [vmem:[#allocation2 + $0x864] sm:$0xf]
    %v624 = vld [vmem:[#allocation2 + $0x868] sm:$0xf]
    %v625 = vld [vmem:[#allocation2 + $0x86c] sm:$0xf]
    %v626 = vld [vmem:[#allocation2 + $0x870] sm:$0xf]
    %v627 = vld [vmem:[#allocation2 + $0x874] sm:$0xf]
    %v628 = vld [vmem:[#allocation2 + $0x878] sm:$0xf]
    %v629 = vld [vmem:[#allocation2 + $0x87c] sm:$0xf]
    %v630 = vld [vmem:[#allocation2 + $0x880] sm:$0xf]
    %v631 = vld [vmem:[#allocation2 + $0x884] sm:$0xf]
    %v632 = vld [vmem:[#allocation2 + $0x888] sm:$0xf]
    %v633 = vld [vmem:[#allocation2 + $0x88c] sm:$0xf]
    %v634 = vld [vmem:[#allocation2 + $0x890] sm:$0xf]
    %v635 = vld [vmem:[#allocation2 + $0x894] sm:$0xf]
    %v636 = vld [vmem:[#allocation2 + $0x898] sm:$0xf]
    %v637 = vld [vmem:[#allocation2 + $0x89c] sm:$0xf]
    %v638 = vld [vmem:[#allocation2 + $0x8a0] sm:$0xf]
    %v639 = vld [vmem:[#allocation2 + $0x8a4] sm:$0xf]
    %v640 = vld [vmem:[#allocation2 + $0x8a8] sm:$0xf]
    %v641 = vld [vmem:[#allocation2 + $0x8ac] sm:$0xf]
    %v642 = vld [vmem:[#allocation2 + $0x8b0] sm:$0xf]
    %v643 = vld [vmem:[#allocation2 + $0x8b4] sm:$0xf]
    %v644 = vld [vmem:[#allocation2 + $0x8b8] sm:$0xf]
    %v645 = vld [vmem:[#allocation2 + $0x8bc] sm:$0xf]
    %v646 = vld [vmem:[#allocation2 + $0x8c0] sm:$0xf]
    %v647 = vld [vmem:[#allocation2 + $0x8c4] sm:$0xf]
    %v648 = vld [vmem:[#allocation2 + $0x8c8] sm:$0xf]
    %v649 = vld [vmem:[#allocation2 + $0x8cc] sm:$0xf]
    %v650 = vld [vmem:[#allocation2 + $0x8d0] sm:$0xf]
    %v651 = vld [vmem:[#allocation2 + $0x8d4] sm:$0xf]
    %v652 = vld [vmem:[#allocation2 + $0x8d8] sm:$0xf]
    %v653 = vld [vmem:[#allocation2 + $0x8dc] sm:$0xf]
    %v654 = vld [vmem:[#allocation2 + $0x8e0] sm:$0xf]
    %v655 = vld [vmem:[#allocation2 + $0x8e4] sm:$0xf]
    %v656 = vld [vmem:[#allocation2 + $0x8e8] sm:$0xf]
    %v657 = vld [vmem:[#allocation2 + $0x8ec] sm:$0xf]
    %v658 = vld [vmem:[#allocation2 + $0x8f0] sm:$0xf]
    %v659 = vld [vmem:[#allocation2 + $0x8f4] sm:$0xf]
    %v660 = vld [vmem:[#allocation2 + $0x8f8] sm:$0xf]
    %v661 = vld [vmem:[#allocation2 + $0x8fc] sm:$0xf]
    %v662 = vld [vmem:[#allocation2 + $0x900] sm:$0xf]
    %v663 = vld [vmem:[#allocation2 + $0x904] sm:$0xf]
    %v664 = vld [vmem:[#allocation2 + $0x908] sm:$0xf]
    %v665 = vld [vmem:[#allocation2 + $0x90c] sm:$0xf]
    %v666 = vld [vmem:[#allocation2 + $0x910] sm:$0xf]
    %v667 = vld [vmem:[#allocation2 + $0x914] sm:$0xf]
    %v668 = vld [vmem:[#allocation2 + $0x918] sm:$0xf]
    %v669 = vld [vmem:[#allocation2 + $0x91c] sm:$0xf]
    %v670 = vld [vmem:[#allocation2 + $0x920] sm:$0xf]
    %v671 = vld [vmem:[#allocation2 + $0x924] sm:$0xf]
    %v672 = vld [vmem:[#allocation2 + $0x928] sm:$0xf]
    %v673 = vld [vmem:[#allocation2 + $0x92c] sm:$0xf]
    %v674 = vld [vmem:[#allocation2 + $0x930] sm:$0xf]
    %v675 = vld [vmem:[#allocation2 + $0x934] sm:$0xf]
    %v676 = vld [vmem:[#allocation2 + $0x938] sm:$0xf]
    %v677 = vld [vmem:[#allocation2 + $0x93c] sm:$0xf]
    %v678 = vld [vmem:[#allocation2 + $0x940] sm:$0xf]
    %v679 = vld [vmem:[#allocation2 + $0x944] sm:$0xf]
    %v680 = vld [vmem:[#allocation2 + $0x948] sm:$0xf]
    %v681 = vld [vmem:[#allocation2 + $0x94c] sm:$0xf]
    %v682 = vld [vmem:[#allocation2 + $0x950] sm:$0xf]
    %v683 = vld [vmem:[#allocation2 + $0x954] sm:$0xf]
    %v684 = vld [vmem:[#allocation2 + $0x958] sm:$0xf]
    %v685 = vld [vmem:[#allocation2 + $0x95c] sm:$0xf]
    %v686 = vld [vmem:[#allocation2 + $0x960] sm:$0xf]
    %v687 = vld [vmem:[#allocation2 + $0x964] sm:$0xf]
    %v688 = vld [vmem:[#allocation2 + $0x968] sm:$0xf]
    %v689 = vld [vmem:[#allocation2 + $0x96c] sm:$0xf]
    %v690 = vld [vmem:[#allocation2 + $0x970] sm:$0xf]
    %v691 = vld [vmem:[#allocation2 + $0x974] sm:$0xf]
    %v692 = vld [vmem:[#allocation2 + $0x978] sm:$0xf]
    %v693 = vld [vmem:[#allocation2 + $0x97c] sm:$0xf]
    %v694 = vld [vmem:[#allocation2 + $0x980] sm:$0xf]
    %v695 = vld [vmem:[#allocation2 + $0x984] sm:$0xf]
    %v696 = vld [vmem:[#allocation2 + $0x988] sm:$0xf]
    %v697 = vld [vmem:[#allocation2 + $0x98c] sm:$0xf]
    %v698 = vld [vmem:[#allocation2 + $0x990] sm:$0xf]
    %v699 = vld [vmem:[#allocation2 + $0x994] sm:$0xf]
    %v700 = vld [vmem:[#allocation2 + $0x998] sm:$0xf]
    %v701 = vld [vmem:[#allocation2 + $0x99c] sm:$0xf]
    %v702 = vld [vmem:[#allocation2 + $0x9a0] sm:$0xf]
    %v703 = vld [vmem:[#allocation2 + $0x9a4] sm:$0xf]
    %v704 = vld [vmem:[#allocation2 + $0x9a8] sm:$0xf]
    %v705 = vld [vmem:[#allocation2 + $0x9ac] sm:$0xf]
    %v706 = vld [vmem:[#allocation2 + $0x9b0] sm:$0xf]
    %v707 = vld [vmem:[#allocation2 + $0x9b4] sm:$0xf]
    %v708 = vld [vmem:[#allocation2 + $0x9b8] sm:$0xf]
    %v709 = vld [vmem:[#allocation2 + $0x9bc] sm:$0xf]
    %v710 = vld [vmem:[#allocation2 + $0x9c0] sm:$0xf]
    %v711 = vld [vmem:[#allocation2 + $0x9c4] sm:$0xf]
    %v712 = vld [vmem:[#allocation2 + $0x9c8] sm:$0xf]
    %v713 = vld [vmem:[#allocation2 + $0x9cc] sm:$0xf]
    %v714 = vld [vmem:[#allocation2 + $0x9d0] sm:$0xf]
    %v715 = vld [vmem:[#allocation2 + $0x9d4] sm:$0xf]
    %v716 = vld [vmem:[#allocation2 + $0x9d8] sm:$0xf]
    %v717 = vld [vmem:[#allocation2 + $0x9dc] sm:$0xf]
    %v718 = vld [vmem:[#allocation2 + $0x9e0] sm:$0xf]
    %v719 = vld [vmem:[#allocation2 + $0x9e4] sm:$0xf]
    %v720 = vld [vmem:[#allocation2 + $0x9e8] sm:$0xf]
    %v721 = vld [vmem:[#allocation2 + $0x9ec] sm:$0xf]
    %v722 = vld [vmem:[#allocation2 + $0x9f0] sm:$0xf]
    %v723 = vld [vmem:[#allocation2 + $0x9f4] sm:$0xf]
    %v724 = vld [vmem:[#allocation2 + $0x9f8] sm:$0xf]
    %v725 = vld [vmem:[#allocation2 + $0x9fc] sm:$0xf]
    %v726 = vld [vmem:[#allocation2 + $0xa00] sm:$0xf]
    %v727 = vld [vmem:[#allocation2 + $0xa04] sm:$0xf]
    %v728 = vld [vmem:[#allocation2 + $0xa08] sm:$0xf]
    %v729 = vld [vmem:[#allocation2 + $0xa0c] sm:$0xf]
    %v730 = vld [vmem:[#allocation2 + $0xa10] sm:$0xf]
    %v731 = vld [vmem:[#allocation2 + $0xa14] sm:$0xf]
    %v732 = vld [vmem:[#allocation2 + $0xa18] sm:$0xf]
    %v733 = vld [vmem:[#allocation2 + $0xa1c] sm:$0xf]
    %v734 = vld [vmem:[#allocation2 + $0xa20] sm:$0xf]
    %v735 = vld [vmem:[#allocation2 + $0xa24] sm:$0xf]
    %v736 = vld [vmem:[#allocation2 + $0xa28] sm:$0xf]
    %v737 = vld [vmem:[#allocation2 + $0xa2c] sm:$0xf]
    %v738 = vld [vmem:[#allocation2 + $0xa30] sm:$0xf]
    %v739 = vld [vmem:[#allocation2 + $0xa34] sm:$0xf]
    %v740 = vld [vmem:[#allocation2 + $0xa38] sm:$0xf]
    %v741 = vld [vmem:[#allocation2 + $0xa3c] sm:$0xf]
    %v742 = vld [vmem:[#allocation2 + $0xa40] sm:$0xf]
    %v743 = vld [vmem:[#allocation2 + $0xa44] sm:$0xf]
    %v744 = vld [vmem:[#allocation2 + $0xa48] sm:$0xf]
    %v745 = vld [vmem:[#allocation2 + $0xa4c] sm:$0xf]
    %v746 = vld [vmem:[#allocation2 + $0xa50] sm:$0xf]
    %v747 = vld [vmem:[#allocation2 + $0xa54] sm:$0xf]
    %v748 = vld [vmem:[#allocation2 + $0xa58] sm:$0xf]
    %v749 = vld [vmem:[#allocation2 + $0xa5c] sm:$0xf]
    %v750 = vld [vmem:[#allocation2 + $0xa60] sm:$0xf]
    %v751 = vld [vmem:[#allocation2 + $0xa64] sm:$0xf]
    %v752 = vld [vmem:[#allocation2 + $0xa68] sm:$0xf]
    %v753 = vld [vmem:[#allocation2 + $0xa6c] sm:$0xf]
    %v754 = vld [vmem:[#allocation2 + $0xa70] sm:$0xf]
    %v755 = vld [vmem:[#allocation2 + $0xa74] sm:$0xf]
    %v756 = vld [vmem:[#allocation2 + $0xa78] sm:$0xf]
    %v757 = vld [vmem:[#allocation2 + $0xa7c] sm:$0xf]
    %v758 = vld [vmem:[#allocation2 + $0xa80] sm:$0xf]
    %v759 = vld [vmem:[#allocation2 + $0xa84] sm:$0xf]
    %v760 = vld [vmem:[#allocation2 + $0xa88] sm:$0xf]
    %v761 = vld [vmem:[#allocation2 + $0xa8c] sm:$0xf]
    %v762 = vld [vmem:[#allocation2 + $0xa90] sm:$0xf]
    %v763 = vld [vmem:[#allocation2 + $0xa94] sm:$0xf]
    %v764 = vld [vmem:[#allocation2 + $0xa98] sm:$0xf]
    %v765 = vld [vmem:[#allocation2 + $0xa9c] sm:$0xf]
    %v766 = vld [vmem:[#allocation2 + $0xaa0] sm:$0xf]
    %v767 = vld [vmem:[#allocation2 + $0xaa4] sm:$0xf]
    %v768 = vld [vmem:[#allocation2 + $0xaa8] sm:$0xf]
    %v769 = vld [vmem:[#allocation2 + $0xaac] sm:$0xf]
    %v770 = vld [vmem:[#allocation2 + $0xab0] sm:$0xf]
    %v771 = vld [vmem:[#allocation2 + $0xab4] sm:$0xf]
    %v772 = vld [vmem:[#allocation2 + $0xab8] sm:$0xf]
    %v773 = vld [vmem:[#allocation2 + $0xabc] sm:$0xf]
    %v774 = vld [vmem:[#allocation2 + $0xac0] sm:$0xf]
    %v775 = vld [vmem:[#allocation2 + $0xac4] sm:$0xf]
    %v776 = vld [vmem:[#allocation2 + $0xac8] sm:$0xf]
    %v777 = vld [vmem:[#allocation2 + $0xacc] sm:$0xf]
    %v778 = vld [vmem:[#allocation2 + $0xad0] sm:$0xf]
    %v779 = vld [vmem:[#allocation2 + $0xad4] sm:$0xf]
    %v780 = vld [vmem:[#allocation2 + $0xad8] sm:$0xf]
    %v781 = vld [vmem:[#allocation2 + $0xadc] sm:$0xf]
    %v782 = vld [vmem:[#allocation2 + $0xae0] sm:$0xf]
    %v783 = vld [vmem:[#allocation2 + $0xae4] sm:$0xf]
    %v784 = vld [vmem:[#allocation2 + $0xae8] sm:$0xf]
    %v785 = vld [vmem:[#allocation2 + $0xaec] sm:$0xf]
    %v786 = vld [vmem:[#allocation2 + $0xaf0] sm:$0xf]
    %v787 = vld [vmem:[#allocation2 + $0xaf4] sm:$0xf]
    %v788 = vld [vmem:[#allocation2 + $0xaf8] sm:$0xf]
    %v789 = vld [vmem:[#allocation2 + $0xafc] sm:$0xf]
    %v790 = vld [vmem:[#allocation2 + $0xb00] sm:$0xf]
    %v791 = vld [vmem:[#allocation2 + $0xb04] sm:$0xf]
    %v792 = vld [vmem:[#allocation2 + $0xb08] sm:$0xf]
    %v793 = vld [vmem:[#allocation2 + $0xb0c] sm:$0xf]
    %v794 = vld [vmem:[#allocation2 + $0xb10] sm:$0xf]
    %v795 = vld [vmem:[#allocation2 + $0xb14] sm:$0xf]
    %v796 = vld [vmem:[#allocation2 + $0xb18] sm:$0xf]
    %v797 = vld [vmem:[#allocation2 + $0xb1c] sm:$0xf]
    %v798 = vld [vmem:[#allocation2 + $0xb20] sm:$0xf]
    %v799 = vld [vmem:[#allocation2 + $0xb24] sm:$0xf]
    %v800 = vld [vmem:[#allocation2 + $0xb28] sm:$0xf]
    %v801 = vld [vmem:[#allocation2 + $0xb2c] sm:$0xf]
    %v802 = vld [vmem:[#allocation2 + $0xb30] sm:$0xf]
    %v803 = vld [vmem:[#allocation2 + $0xb34] sm:$0xf]
    %v804 = vld [vmem:[#allocation2 + $0xb38] sm:$0xf]
    %v805 = vld [vmem:[#allocation2 + $0xb3c] sm:$0xf]
    %v806 = vld [vmem:[#allocation2 + $0xb40] sm:$0xf]
    %v807 = vld [vmem:[#allocation2 + $0xb44] sm:$0xf]
    %v808 = vld [vmem:[#allocation2 + $0xb48] sm:$0xf]
    %v809 = vld [vmem:[#allocation2 + $0xb4c] sm:$0xf]
    %v810 = vld [vmem:[#allocation2 + $0xb50] sm:$0xf]
    %v811 = vld [vmem:[#allocation2 + $0xb54] sm:$0xf]
    %v812 = vld [vmem:[#allocation2 + $0xb58] sm:$0xf]
    %v813 = vld [vmem:[#allocation2 + $0xb5c] sm:$0xf]
    %v814 = vld [vmem:[#allocation2 + $0xb60] sm:$0xf]
    %v815 = vld [vmem:[#allocation2 + $0xb64] sm:$0xf]
    %v816 = vld [vmem:[#allocation2 + $0xb68] sm:$0xf]
    %v817 = vld [vmem:[#allocation2 + $0xb6c] sm:$0xf]
    %v818 = vld [vmem:[#allocation2 + $0xb70] sm:$0xf]
    %v819 = vld [vmem:[#allocation2 + $0xb74] sm:$0xf]
    %v820 = vld [vmem:[#allocation2 + $0xb78] sm:$0xf]
    %v821 = vld [vmem:[#allocation2 + $0xb7c] sm:$0xf]
    %v822 = vld [vmem:[#allocation2 + $0xb80] sm:$0xf]
    %v823 = vld [vmem:[#allocation2 + $0xb84] sm:$0xf]
    %v824 = vld [vmem:[#allocation2 + $0xb88] sm:$0xf]
    %v825 = vld [vmem:[#allocation2 + $0xb8c] sm:$0xf]
    %v826 = vld [vmem:[#allocation2 + $0xb90] sm:$0xf]
    %v827 = vld [vmem:[#allocation2 + $0xb94] sm:$0xf]
    %v828 = vld [vmem:[#allocation2 + $0xb98] sm:$0xf]
    %v829 = vld [vmem:[#allocation2 + $0xb9c] sm:$0xf]
    %v830 = vld [vmem:[#allocation2 + $0xba0] sm:$0xf]
    %v831 = vld [vmem:[#allocation2 + $0xba4] sm:$0xf]
    %v832 = vld [vmem:[#allocation2 + $0xba8] sm:$0xf]
    %v833 = vld [vmem:[#allocation2 + $0xbac] sm:$0xf]
    %v834 = vld [vmem:[#allocation2 + $0xbb0] sm:$0xf]
    %v835 = vld [vmem:[#allocation2 + $0xbb4] sm:$0xf]
    %v836 = vld [vmem:[#allocation2 + $0xbb8] sm:$0xf]
    %v837 = vld [vmem:[#allocation2 + $0xbbc] sm:$0xf]
    %v838 = vld [vmem:[#allocation2 + $0xbc0] sm:$0xf]
    %v839 = vld [vmem:[#allocation2 + $0xbc4] sm:$0xf]
    %v840 = vld [vmem:[#allocation2 + $0xbc8] sm:$0xf]
    %v841 = vld [vmem:[#allocation2 + $0xbcc] sm:$0xf]
    %v842 = vld [vmem:[#allocation2 + $0xbd0] sm:$0xf]
    %v843 = vld [vmem:[#allocation2 + $0xbd4] sm:$0xf]
    %v844 = vld [vmem:[#allocation2 + $0xbd8] sm:$0xf]
    %v845 = vld [vmem:[#allocation2 + $0xbdc] sm:$0xf]
    %v846 = vld [vmem:[#allocation2 + $0xbe0] sm:$0xf]
    %v847 = vld [vmem:[#allocation2 + $0xbe4] sm:$0xf]
    %v848 = vld [vmem:[#allocation2 + $0xbe8] sm:$0xf]
    %v849 = vld [vmem:[#allocation2 + $0xbec] sm:$0xf]
    %v850 = vld [vmem:[#allocation2 + $0xbf0] sm:$0xf]
    %v851 = vld [vmem:[#allocation2 + $0xbf4] sm:$0xf]
    %v852 = vld [vmem:[#allocation2 + $0xbf8] sm:$0xf]
    %v853 = vld [vmem:[#allocation2 + $0xbfc] sm:$0xf]
    %v854 = vld [vmem:[#allocation2 + $0xc00] sm:$0xf]
    %v855 = vld [vmem:[#allocation2 + $0xc04] sm:$0xf]
    %v856 = vld [vmem:[#allocation2 + $0xc08] sm:$0xf]
    %v857 = vld [vmem:[#allocation2 + $0xc0c] sm:$0xf]
    %v858 = vld [vmem:[#allocation2 + $0xc10] sm:$0xf]
    %v859 = vld [vmem:[#allocation2 + $0xc14] sm:$0xf]
    %v860 = vld [vmem:[#allocation2 + $0xc18] sm:$0xf]
    %v861 = vld [vmem:[#allocation2 + $0xc1c] sm:$0xf]
    %v862 = vld [vmem:[#allocation2 + $0xc20] sm:$0xf]
    %v863 = vld [vmem:[#allocation2 + $0xc24] sm:$0xf]
    %v864 = vld [vmem:[#allocation2 + $0xc28] sm:$0xf]
    %v865 = vld [vmem:[#allocation2 + $0xc2c] sm:$0xf]
    %v866 = vld [vmem:[#allocation2 + $0xc30] sm:$0xf]
    %v867 = vld [vmem:[#allocation2 + $0xc34] sm:$0xf]
    %v868 = vld [vmem:[#allocation2 + $0xc38] sm:$0xf]
    %v869 = vld [vmem:[#allocation2 + $0xc3c] sm:$0xf]
    %v870 = vld [vmem:[#allocation2 + $0xc40] sm:$0xf]
    %v871 = vld [vmem:[#allocation2 + $0xc44] sm:$0xf]
    %v872 = vld [vmem:[#allocation2 + $0xc48] sm:$0xf]
    %v873 = vld [vmem:[#allocation2 + $0xc4c] sm:$0xf]
    %v874 = vld [vmem:[#allocation2 + $0xc50] sm:$0xf]
    %v875 = vld [vmem:[#allocation2 + $0xc54] sm:$0xf]
    %v876 = vld [vmem:[#allocation2 + $0xc58] sm:$0xf]
    %v877 = vld [vmem:[#allocation2 + $0xc5c] sm:$0xf]
    %v878 = vld [vmem:[#allocation2 + $0xc60] sm:$0xf]
    %v879 = vld [vmem:[#allocation2 + $0xc64] sm:$0xf]
    %v880 = vld [vmem:[#allocation2 + $0xc68] sm:$0xf]
    %v881 = vld [vmem:[#allocation2 + $0xc6c] sm:$0xf]
    %v882 = vld [vmem:[#allocation2 + $0xc70] sm:$0xf]
    %v883 = vld [vmem:[#allocation2 + $0xc74] sm:$0xf]
    %v884 = vld [vmem:[#allocation2 + $0xc78] sm:$0xf]
    %v885 = vld [vmem:[#allocation2 + $0xc7c] sm:$0xf]
    %v886 = vld [vmem:[#allocation2 + $0xc80] sm:$0xf]
    %v887 = vld [vmem:[#allocation2 + $0xc84] sm:$0xf]
    %v888 = vld [vmem:[#allocation2 + $0xc88] sm:$0xf]
    %v889 = vld [vmem:[#allocation2 + $0xc8c] sm:$0xf]
    %v890 = vld [vmem:[#allocation2 + $0xc90] sm:$0xf]
    %v891 = vld [vmem:[#allocation2 + $0xc94] sm:$0xf]
    %v892 = vld [vmem:[#allocation2 + $0xc98] sm:$0xf]
    %v893 = vld [vmem:[#allocation2 + $0xc9c] sm:$0xf]
    %v894 = vld [vmem:[#allocation2 + $0xca0] sm:$0xf]
    %v895 = vld [vmem:[#allocation2 + $0xca4] sm:$0xf]
    %v896 = vld [vmem:[#allocation2 + $0xca8] sm:$0xf]
    %v897 = vld [vmem:[#allocation2 + $0xcac] sm:$0xf]
    %v898 = vld [vmem:[#allocation2 + $0xcb0] sm:$0xf]
    %v899 = vld [vmem:[#allocation2 + $0xcb4] sm:$0xf]
    %v900 = vld [vmem:[#allocation2 + $0xcb8] sm:$0xf]
    %v901 = vld [vmem:[#allocation2 + $0xcbc] sm:$0xf]
    %v902 = vld [vmem:[#allocation2 + $0xcc0] sm:$0xf]
    %v903 = vld [vmem:[#allocation2 + $0xcc4] sm:$0xf]
    %v904 = vld [vmem:[#allocation2 + $0xcc8] sm:$0xf]
    %v905 = vld [vmem:[#allocation2 + $0xccc] sm:$0xf]
    %v906 = vld [vmem:[#allocation2 + $0xcd0] sm:$0xf]
    %v907 = vld [vmem:[#allocation2 + $0xcd4] sm:$0xf]
    %v908 = vld [vmem:[#allocation2 + $0xcd8] sm:$0xf]
    %v909 = vld [vmem:[#allocation2 + $0xcdc] sm:$0xf]
    %v910 = vld [vmem:[#allocation2 + $0xce0] sm:$0xf]
    %v911 = vld [vmem:[#allocation2 + $0xce4] sm:$0xf]
    %v912 = vld [vmem:[#allocation2 + $0xce8] sm:$0xf]
    %v913 = vld [vmem:[#allocation2 + $0xcec] sm:$0xf]
    %v914 = vld [vmem:[#allocation2 + $0xcf0] sm:$0xf]
    %v915 = vld [vmem:[#allocation2 + $0xcf4] sm:$0xf]
    %v916 = vld [vmem:[#allocation2 + $0xcf8] sm:$0xf]
    %v917 = vld [vmem:[#allocation2 + $0xcfc] sm:$0xf]
    %v918 = vld [vmem:[#allocation2 + $0xd00] sm:$0xf]
    %v919 = vld [vmem:[#allocation2 + $0xd04] sm:$0xf]
    %v920 = vld [vmem:[#allocation2 + $0xd08] sm:$0xf]
    %v921 = vld [vmem:[#allocation2 + $0xd0c] sm:$0xf]
    %v922 = vld [vmem:[#allocation2 + $0xd10] sm:$0xf]
    %v923 = vld [vmem:[#allocation2 + $0xd14] sm:$0xf]
    %v924 = vld [vmem:[#allocation2 + $0xd18] sm:$0xf]
    %v925 = vld [vmem:[#allocation2 + $0xd1c] sm:$0xf]
    %v926 = vld [vmem:[#allocation2 + $0xd20] sm:$0xf]
    %v927 = vld [vmem:[#allocation2 + $0xd24] sm:$0xf]
    %v928 = vld [vmem:[#allocation2 + $0xd28] sm:$0xf]
    %v929 = vld [vmem:[#allocation2 + $0xd2c] sm:$0xf]
    %v930 = vld [vmem:[#allocation2 + $0xd30] sm:$0xf]
    %v931 = vld [vmem:[#allocation2 + $0xd34] sm:$0xf]
    %v932 = vld [vmem:[#allocation2 + $0xd38] sm:$0xf]
    %v933 = vld [vmem:[#allocation2 + $0xd3c] sm:$0xf]
    %v934 = vlaneseq
    %v935 = vshrl.u32 %v934, 7
    %v936 = vsub.s32 0, %v935
    %v937 = vrot.slane %v58, %v936
    %v965 = vunpack.c.l.b16 %v59
    %v966 = vunpack.c.h.b16 %v59
    %v967 = vunpack.c.l.b16 %v60
    %v968 = vunpack.c.h.b16 %v60
    %v969 = vunpack.c.l.b16 %v61
    %v970 = vunpack.c.h.b16 %v61
    %v971 = vunpack.c.l.b16 %v62
    %v972 = vunpack.c.h.b16 %v62
    %v973 = vunpack.c.l.b16 %v63
    %v974 = vunpack.c.h.b16 %v63
    %v975 = vunpack.c.l.b16 %v64
    %v976 = vunpack.c.h.b16 %v64
    %v977 = vunpack.c.l.b16 %v65
    %v978 = vunpack.c.h.b16 %v65
    %v979 = vunpack.c.l.b16 %v66
    %v980 = vunpack.c.h.b16 %v66
    %v981 = vunpack.c.l.b16 %v67
    %v982 = vunpack.c.h.b16 %v67
    %v983 = vunpack.c.l.b16 %v68
    %v984 = vunpack.c.h.b16 %v68
    %v985 = vunpack.c.l.b16 %v69
    %v986 = vunpack.c.h.b16 %v69
    %v987 = vunpack.c.l.b16 %v70
    %v988 = vunpack.c.h.b16 %v70
    %v989 = vunpack.c.l.b16 %v71
    %v990 = vunpack.c.h.b16 %v71
    %v991 = vunpack.c.l.b16 %v72
    %v992 = vunpack.c.h.b16 %v72
    %v993 = vunpack.c.l.b16 %v73
    %v994 = vunpack.c.h.b16 %v73
    %v995 = vunpack.c.l.b16 %v74
    %v996 = vunpack.c.h.b16 %v74
    %v997 = vunpack.c.l.b16 %v75
    %v998 = vunpack.c.h.b16 %v75
    %v999 = vunpack.c.l.b16 %v76
    %v1000 = vunpack.c.h.b16 %v76
    %v1001 = vunpack.c.l.b16 %v77
    %v1002 = vunpack.c.h.b16 %v77
    %v1003 = vunpack.c.l.b16 %v78
    %v1004 = vunpack.c.h.b16 %v78
    %v1005 = vunpack.c.l.b16 %v79
    %v1006 = vunpack.c.h.b16 %v79
    %v1007 = vunpack.c.l.b16 %v80
    %v1008 = vunpack.c.h.b16 %v80
    %v1009 = vunpack.c.l.b16 %v81
    %v1010 = vunpack.c.h.b16 %v81
    %v1011 = vunpack.c.l.b16 %v82
    %v1012 = vunpack.c.h.b16 %v82
    %v1013 = vunpack.c.l.b16 %v83
    %v1014 = vunpack.c.h.b16 %v83
    %v1015 = vunpack.c.l.b16 %v84
    %v1016 = vunpack.c.h.b16 %v84
    %v1017 = vunpack.c.l.b16 %v85
    %v1018 = vpack.c.b16 %v965, %v965
    %v1019 = vpack.c.b16 %v966, %v966
    %v1020 = vpack.c.b16 %v967, %v967
    %v1021 = vpack.c.b16 %v968, %v968
    %v1022 = vpack.c.b16 %v969, %v969
    %v1023 = vpack.c.b16 %v970, %v970
    %v1024 = vpack.c.b16 %v971, %v971
    %v1025 = vpack.c.b16 %v972, %v972
    %v1026 = vpack.c.b16 %v973, %v973
    %v1027 = vpack.c.b16 %v974, %v974
    %v1028 = vpack.c.b16 %v975, %v975
    %v1029 = vpack.c.b16 %v976, %v976
    %v1030 = vpack.c.b16 %v977, %v977
    %v1031 = vpack.c.b16 %v978, %v978
    %v1032 = vpack.c.b16 %v979, %v979
    %v1033 = vpack.c.b16 %v980, %v980
    %v1034 = vpack.c.b16 %v981, %v981
    %v1035 = vpack.c.b16 %v982, %v982
    %v1036 = vpack.c.b16 %v983, %v983
    %v1037 = vpack.c.b16 %v984, %v984
    %v1038 = vpack.c.b16 %v985, %v985
    %v1039 = vpack.c.b16 %v986, %v986
    %v1040 = vpack.c.b16 %v987, %v987
    %v1041 = vpack.c.b16 %v988, %v988
    %v1042 = vpack.c.b16 %v989, %v989
    %v1043 = vpack.c.b16 %v990, %v990
    %v1044 = vpack.c.b16 %v991, %v991
    %v1045 = vpack.c.b16 %v992, %v992
    %v1046 = vpack.c.b16 %v993, %v993
    %v1047 = vpack.c.b16 %v994, %v994
    %v1048 = vpack.c.b16 %v995, %v995
    %v1049 = vpack.c.b16 %v996, %v996
    %v1050 = vpack.c.b16 %v997, %v997
    %v1051 = vpack.c.b16 %v998, %v998
    %v1052 = vpack.c.b16 %v999, %v999
    %v1053 = vpack.c.b16 %v1000, %v1000
    %v1054 = vpack.c.b16 %v1001, %v1001
    %v1055 = vpack.c.b16 %v1002, %v1002
    %v1056 = vpack.c.b16 %v1003, %v1003
    %v1057 = vpack.c.b16 %v1004, %v1004
    %v1058 = vpack.c.b16 %v1005, %v1005
    %v1059 = vpack.c.b16 %v1006, %v1006
    %v1060 = vpack.c.b16 %v1007, %v1007
    %v1061 = vpack.c.b16 %v1008, %v1008
    %v1062 = vpack.c.b16 %v1009, %v1009
    %v1063 = vpack.c.b16 %v1010, %v1010
    %v1064 = vpack.c.b16 %v1011, %v1011
    %v1065 = vpack.c.b16 %v1012, %v1012
    %v1066 = vpack.c.b16 %v1013, %v1013
    %v1067 = vpack.c.b16 %v1014, %v1014
    %v1068 = vpack.c.b16 %v1015, %v1015
    %v1069 = vpack.c.b16 %v1016, %v1016
    %v1070 = vpack.c.b16 %v1017, %v1017
    %v1972 = vunpack.c.l.b16 %v86
    %v1973 = vunpack.c.l.b16 %v87
    %v1974 = vunpack.c.l.b16 %v88
    %v1975 = vunpack.c.l.b16 %v89
    %v1976 = vunpack.c.l.b16 %v90
    %v1977 = vunpack.c.l.b16 %v91
    %v1978 = vunpack.c.l.b16 %v92
    %v1979 = vunpack.c.l.b16 %v93
    %v1980 = vunpack.c.l.b16 %v94
    %v1981 = vunpack.c.l.b16 %v95
    %v1982 = vunpack.c.l.b16 %v96
    %v1983 = vunpack.c.l.b16 %v97
    %v1984 = vunpack.c.l.b16 %v98
    %v1985 = vunpack.c.l.b16 %v99
    %v1986 = vunpack.c.l.b16 %v100
    %v1987 = vunpack.c.l.b16 %v101
    %v1988 = vunpack.c.l.b16 %v102
    %v1989 = vunpack.c.l.b16 %v103
    %v1990 = vunpack.c.l.b16 %v104
    %v1991 = vunpack.c.l.b16 %v105
    %v1992 = vunpack.c.l.b16 %v106
    %v1993 = vunpack.c.l.b16 %v107
    %v1994 = vunpack.c.l.b16 %v108
    %v1995 = vunpack.c.l.b16 %v109
    %v1996 = vunpack.c.l.b16 %v110
    %v1997 = vunpack.c.l.b16 %v111
    %v1998 = vunpack.c.l.b16 %v112
    %v1999 = vunpack.c.l.b16 %v113
    %v2000 = vunpack.c.l.b16 %v114
    %v2001 = vunpack.c.l.b16 %v115
    %v2002 = vunpack.c.l.b16 %v116
    %v2003 = vunpack.c.l.b16 %v117
    %v2004 = vunpack.c.l.b16 %v118
    %v2005 = vunpack.c.l.b16 %v119
    %v2006 = vunpack.c.l.b16 %v120
    %v2007 = vunpack.c.l.b16 %v121
    %v2008 = vunpack.c.l.b16 %v122
    %v2009 = vunpack.c.l.b16 %v123
    %v2010 = vunpack.c.l.b16 %v124
    %v2011 = vunpack.c.l.b16 %v125
    %v2012 = vunpack.c.l.b16 %v126
    %v2013 = vunpack.c.l.b16 %v127
    %v2014 = vunpack.c.l.b16 %v128
    %v2015 = vunpack.c.l.b16 %v129
    %v2016 = vunpack.c.l.b16 %v130
    %v2017 = vunpack.c.l.b16 %v131
    %v2018 = vunpack.c.l.b16 %v132
    %v2019 = vunpack.c.l.b16 %v133
    %v2020 = vunpack.c.l.b16 %v134
    %v2021 = vunpack.c.l.b16 %v135
    %v2022 = vunpack.c.l.b16 %v136
    %v2023 = vunpack.c.l.b16 %v137
    %v2024 = vunpack.c.l.b16 %v138
    %v2025 = vunpack.c.l.b16 %v139
    %v2026 = vunpack.c.l.b16 %v140
    %v2027 = vunpack.c.l.b16 %v141
    %v2028 = vunpack.c.l.b16 %v142
    %v2029 = vunpack.c.l.b16 %v143
    %v2030 = vunpack.c.l.b16 %v144
    %v2031 = vunpack.c.l.b16 %v145
    %v2032 = vunpack.c.l.b16 %v146
    %v2033 = vunpack.c.l.b16 %v147
    %v2034 = vunpack.c.l.b16 %v148
    %v2035 = vunpack.c.l.b16 %v149
    %v2036 = vunpack.c.l.b16 %v150
    %v2037 = vunpack.c.l.b16 %v151
    %v2038 = vunpack.c.l.b16 %v152
    %v2039 = vunpack.c.l.b16 %v153
    %v2040 = vunpack.c.l.b16 %v154
    %v2041 = vunpack.c.l.b16 %v155
    %v2042 = vunpack.c.l.b16 %v156
    %v2043 = vunpack.c.l.b16 %v157
    %v2044 = vunpack.c.l.b16 %v158
    %v2045 = vunpack.c.l.b16 %v159
    %v2046 = vunpack.c.l.b16 %v160
    %v2047 = vunpack.c.l.b16 %v161
    %v2048 = vunpack.c.l.b16 %v162
    %v2049 = vunpack.c.l.b16 %v163
    %v2050 = vunpack.c.l.b16 %v164
    %v2051 = vunpack.c.l.b16 %v165
    %v2052 = vunpack.c.l.b16 %v166
    %v2053 = vunpack.c.l.b16 %v167
    %v2054 = vunpack.c.l.b16 %v168
    %v2055 = vunpack.c.l.b16 %v169
    %v2056 = vunpack.c.l.b16 %v170
    %v2057 = vunpack.c.l.b16 %v171
    %v2058 = vunpack.c.l.b16 %v172
    %v2059 = vunpack.c.l.b16 %v173
    %v2060 = vunpack.c.l.b16 %v174
    %v2061 = vunpack.c.l.b16 %v175
    %v2062 = vunpack.c.l.b16 %v176
    %v2063 = vunpack.c.l.b16 %v177
    %v2064 = vunpack.c.l.b16 %v178
    %v2065 = vunpack.c.l.b16 %v179
    %v2066 = vunpack.c.l.b16 %v180
    %v2067 = vunpack.c.l.b16 %v181
    %v2068 = vunpack.c.l.b16 %v182
    %v2069 = vunpack.c.l.b16 %v183
    %v2070 = vunpack.c.l.b16 %v184
    %v2071 = vunpack.c.l.b16 %v185
    %v2072 = vunpack.c.l.b16 %v186
    %v2073 = vunpack.c.l.b16 %v187
    %v2074 = vunpack.c.l.b16 %v188
    %v2075 = vunpack.c.l.b16 %v189
    %v2076 = vunpack.c.l.b16 %v190
    %v2077 = vunpack.c.l.b16 %v191
    %v2078 = vunpack.c.l.b16 %v192
    %v2079 = vunpack.c.l.b16 %v193
    %v2080 = vunpack.c.l.b16 %v194
    %v2081 = vunpack.c.l.b16 %v195
    %v2082 = vunpack.c.l.b16 %v196
    %v2083 = vunpack.c.l.b16 %v197
    %v2084 = vunpack.c.l.b16 %v198
    %v2085 = vunpack.c.l.b16 %v199
    %v2086 = vunpack.c.l.b16 %v200
    %v2087 = vunpack.c.l.b16 %v201
    %v2088 = vunpack.c.l.b16 %v202
    %v2089 = vunpack.c.l.b16 %v203
    %v2090 = vunpack.c.l.b16 %v204
    %v2091 = vunpack.c.l.b16 %v205
    %v2092 = vunpack.c.l.b16 %v206
    %v2093 = vunpack.c.l.b16 %v207
    %v2094 = vunpack.c.l.b16 %v208
    %v2095 = vunpack.c.l.b16 %v209
    %v2096 = vunpack.c.l.b16 %v210
    %v2097 = vunpack.c.l.b16 %v211
    %v2098 = vunpack.c.l.b16 %v212
    %v2099 = vunpack.c.l.b16 %v213
    %v2100 = vunpack.c.l.b16 %v214
    %v2101 = vunpack.c.l.b16 %v215
    %v2102 = vunpack.c.l.b16 %v216
    %v2103 = vunpack.c.l.b16 %v217
    %v2104 = vunpack.c.l.b16 %v218
    %v2105 = vunpack.c.l.b16 %v219
    %v2106 = vunpack.c.l.b16 %v220
    %v2107 = vunpack.c.l.b16 %v221
    %v2108 = vunpack.c.l.b16 %v222
    %v2109 = vunpack.c.l.b16 %v223
    %v2110 = vunpack.c.l.b16 %v224
    %v2111 = vunpack.c.l.b16 %v225
    %v2112 = vunpack.c.l.b16 %v226
    %v2113 = vunpack.c.l.b16 %v227
    %v2114 = vunpack.c.l.b16 %v228
    %v2115 = vunpack.c.l.b16 %v229
    %v2116 = vunpack.c.l.b16 %v230
    %v2117 = vunpack.c.l.b16 %v231
    %v2118 = vunpack.c.l.b16 %v232
    %v2119 = vunpack.c.l.b16 %v233
    %v2120 = vunpack.c.l.b16 %v234
    %v2121 = vunpack.c.l.b16 %v235
    %v2122 = vunpack.c.l.b16 %v236
    %v2123 = vunpack.c.l.b16 %v237
    %v2124 = vunpack.c.l.b16 %v238
    %v2125 = vunpack.c.l.b16 %v239
    %v2126 = vunpack.c.l.b16 %v240
    %v2127 = vunpack.c.l.b16 %v241
    %v2128 = vunpack.c.l.b16 %v242
    %v2129 = vunpack.c.l.b16 %v243
    %v2130 = vunpack.c.l.b16 %v244
    %v2131 = vunpack.c.l.b16 %v245
    %v2132 = vunpack.c.l.b16 %v246
    %v2133 = vunpack.c.l.b16 %v247
    %v2134 = vunpack.c.l.b16 %v248
    %v2135 = vunpack.c.l.b16 %v249
    %v2136 = vunpack.c.l.b16 %v250
    %v2137 = vunpack.c.l.b16 %v251
    %v2138 = vunpack.c.l.b16 %v252
    %v2139 = vunpack.c.l.b16 %v253
    %v2140 = vunpack.c.l.b16 %v254
    %v2141 = vunpack.c.l.b16 %v255
    %v2142 = vunpack.c.l.b16 %v256
    %v2143 = vunpack.c.l.b16 %v257
    %v2144 = vunpack.c.l.b16 %v258
    %v2145 = vunpack.c.l.b16 %v259
    %v2146 = vunpack.c.l.b16 %v260
    %v2147 = vunpack.c.l.b16 %v261
    %v2148 = vunpack.c.l.b16 %v262
    %v2149 = vunpack.c.l.b16 %v263
    %v2150 = vunpack.c.l.b16 %v264
    %v2151 = vunpack.c.l.b16 %v265
    %v2152 = vunpack.c.l.b16 %v266
    %v2153 = vunpack.c.l.b16 %v267
    %v2154 = vunpack.c.l.b16 %v268
    %v2155 = vunpack.c.l.b16 %v269
    %v2156 = vunpack.c.l.b16 %v270
    %v2157 = vunpack.c.l.b16 %v271
    %v2158 = vunpack.c.l.b16 %v272
    %v2159 = vunpack.c.l.b16 %v273
    %v2160 = vunpack.c.l.b16 %v274
    %v2161 = vunpack.c.l.b16 %v275
    %v2162 = vunpack.c.l.b16 %v276
    %v2163 = vunpack.c.l.b16 %v277
    %v2164 = vunpack.c.l.b16 %v278
    %v2165 = vunpack.c.l.b16 %v279
    %v2166 = vunpack.c.l.b16 %v280
    %v2167 = vunpack.c.l.b16 %v281
    %v2168 = vunpack.c.l.b16 %v282
    %v2169 = vunpack.c.l.b16 %v283
    %v2170 = vunpack.c.l.b16 %v284
    %v2171 = vunpack.c.l.b16 %v285
    %v2172 = vunpack.c.l.b16 %v286
    %v2173 = vunpack.c.l.b16 %v287
    %v2174 = vunpack.c.l.b16 %v288
    %v2175 = vunpack.c.l.b16 %v289
    %v2176 = vunpack.c.l.b16 %v290
    %v2177 = vunpack.c.l.b16 %v291
    %v2178 = vunpack.c.l.b16 %v292
    %v2179 = vunpack.c.l.b16 %v293
    %v2180 = vunpack.c.l.b16 %v294
    %v2181 = vunpack.c.l.b16 %v295
    %v2182 = vunpack.c.l.b16 %v296
    %v2183 = vunpack.c.l.b16 %v297
    %v2184 = vunpack.c.l.b16 %v298
    %v2185 = vunpack.c.l.b16 %v299
    %v2186 = vunpack.c.l.b16 %v300
    %v2187 = vunpack.c.l.b16 %v301
    %v2188 = vunpack.c.l.b16 %v302
    %v2189 = vunpack.c.l.b16 %v303
    %v2190 = vunpack.c.l.b16 %v304
    %v2191 = vunpack.c.l.b16 %v305
    %v2192 = vunpack.c.l.b16 %v306
    %v2193 = vunpack.c.l.b16 %v307
    %v2194 = vunpack.c.l.b16 %v308
    %v2195 = vunpack.c.l.b16 %v309
    %v2196 = vunpack.c.l.b16 %v310
    %v2197 = vunpack.c.l.b16 %v311
    %v2198 = vunpack.c.l.b16 %v312
    %v2199 = vunpack.c.l.b16 %v313
    %v2200 = vunpack.c.l.b16 %v314
    %v2201 = vunpack.c.l.b16 %v315
    %v2202 = vunpack.c.l.b16 %v316
    %v2203 = vunpack.c.l.b16 %v317
    %v2204 = vunpack.c.l.b16 %v318
    %v2205 = vunpack.c.l.b16 %v319
    %v2206 = vunpack.c.l.b16 %v320
    %v2207 = vunpack.c.l.b16 %v321
    %v2208 = vunpack.c.l.b16 %v322
    %v2209 = vunpack.c.l.b16 %v323
    %v2210 = vunpack.c.l.b16 %v324
    %v2211 = vunpack.c.l.b16 %v325
    %v2212 = vunpack.c.l.b16 %v326
    %v2213 = vunpack.c.l.b16 %v327
    %v2214 = vunpack.c.l.b16 %v328
    %v2215 = vunpack.c.l.b16 %v329
    %v2216 = vunpack.c.l.b16 %v330
    %v2217 = vunpack.c.l.b16 %v331
    %v2218 = vunpack.c.l.b16 %v332
    %v2219 = vunpack.c.l.b16 %v333
    %v2220 = vunpack.c.l.b16 %v334
    %v2221 = vunpack.c.l.b16 %v335
    %v2222 = vunpack.c.l.b16 %v336
    %v2223 = vunpack.c.l.b16 %v337
    %v2224 = vunpack.c.l.b16 %v338
    %v2225 = vunpack.c.l.b16 %v339
    %v2226 = vunpack.c.l.b16 %v340
    %v2227 = vunpack.c.l.b16 %v341
    %v2228 = vunpack.c.l.b16 %v342
    %v2229 = vunpack.c.l.b16 %v343
    %v2230 = vunpack.c.l.b16 %v344
    %v2231 = vunpack.c.l.b16 %v345
    %v2232 = vunpack.c.l.b16 %v346
    %v2233 = vunpack.c.l.b16 %v347
    %v2234 = vunpack.c.l.b16 %v348
    %v2235 = vunpack.c.l.b16 %v349
    %v2236 = vunpack.c.l.b16 %v350
    %v2237 = vunpack.c.l.b16 %v351
    %v2238 = vunpack.c.l.b16 %v352
    %v2239 = vunpack.c.l.b16 %v353
    %v2240 = vunpack.c.l.b16 %v354
    %v2241 = vunpack.c.l.b16 %v355
    %v2242 = vunpack.c.l.b16 %v356
    %v2243 = vunpack.c.l.b16 %v357
    %v2244 = vunpack.c.l.b16 %v358
    %v2245 = vunpack.c.l.b16 %v359
    %v2246 = vunpack.c.l.b16 %v360
    %v2247 = vunpack.c.l.b16 %v361
    %v2248 = vunpack.c.l.b16 %v362
    %v2249 = vunpack.c.l.b16 %v363
    %v2250 = vunpack.c.l.b16 %v364
    %v2251 = vunpack.c.l.b16 %v365
    %v2252 = vunpack.c.l.b16 %v366
    %v2253 = vunpack.c.l.b16 %v367
    %v2254 = vunpack.c.l.b16 %v368
    %v2255 = vunpack.c.l.b16 %v369
    %v2256 = vunpack.c.l.b16 %v370
    %v2257 = vunpack.c.l.b16 %v371
    %v2258 = vunpack.c.l.b16 %v372
    %v2259 = vunpack.c.l.b16 %v373
    %v2260 = vunpack.c.l.b16 %v374
    %v2261 = vunpack.c.l.b16 %v375
    %v2262 = vunpack.c.l.b16 %v376
    %v2263 = vunpack.c.l.b16 %v377
    %v2264 = vunpack.c.l.b16 %v378
    %v2265 = vunpack.c.l.b16 %v379
    %v2266 = vunpack.c.l.b16 %v380
    %v2267 = vunpack.c.l.b16 %v381
    %v2268 = vunpack.c.l.b16 %v382
    %v2269 = vunpack.c.l.b16 %v383
    %v2270 = vunpack.c.l.b16 %v384
    %v2271 = vunpack.c.l.b16 %v385
    %v2272 = vunpack.c.l.b16 %v386
    %v2273 = vunpack.c.l.b16 %v387
    %v2274 = vunpack.c.l.b16 %v388
    %v2275 = vunpack.c.l.b16 %v389
    %v2276 = vunpack.c.l.b16 %v390
    %v2277 = vunpack.c.l.b16 %v391
    %v2278 = vunpack.c.l.b16 %v392
    %v2279 = vunpack.c.l.b16 %v393
    %v2280 = vunpack.c.l.b16 %v394
    %v2281 = vunpack.c.l.b16 %v395
    %v2282 = vunpack.c.l.b16 %v396
    %v2283 = vunpack.c.l.b16 %v397
    %v2284 = vunpack.c.l.b16 %v398
    %v2285 = vunpack.c.l.b16 %v399
    %v2286 = vunpack.c.l.b16 %v400
    %v2287 = vunpack.c.l.b16 %v401
    %v2288 = vunpack.c.l.b16 %v402
    %v2289 = vunpack.c.l.b16 %v403
    %v2290 = vunpack.c.l.b16 %v404
    %v2291 = vunpack.c.l.b16 %v405
    %v2292 = vunpack.c.l.b16 %v406
    %v2293 = vunpack.c.l.b16 %v407
    %v2294 = vunpack.c.l.b16 %v408
    %v2295 = vunpack.c.l.b16 %v409
    %v2296 = vunpack.c.l.b16 %v410
    %v2297 = vunpack.c.l.b16 %v411
    %v2298 = vunpack.c.l.b16 %v412
    %v2299 = vunpack.c.l.b16 %v413
    %v2300 = vunpack.c.l.b16 %v414
    %v2301 = vunpack.c.l.b16 %v415
    %v2302 = vunpack.c.l.b16 %v416
    %v2303 = vunpack.c.l.b16 %v417
    %v2304 = vunpack.c.l.b16 %v418
    %v2305 = vunpack.c.l.b16 %v419
    %v2306 = vunpack.c.l.b16 %v420
    %v2307 = vunpack.c.l.b16 %v421
    %v2308 = vunpack.c.l.b16 %v422
    %v2309 = vunpack.c.l.b16 %v423
    %v2310 = vunpack.c.l.b16 %v424
    %v2311 = vunpack.c.l.b16 %v425
    %v2312 = vunpack.c.l.b16 %v426
    %v2313 = vunpack.c.l.b16 %v427
    %v2314 = vunpack.c.l.b16 %v428
    %v2315 = vunpack.c.l.b16 %v429
    %v2316 = vunpack.c.l.b16 %v430
    %v2317 = vunpack.c.l.b16 %v431
    %v2318 = vunpack.c.l.b16 %v432
    %v2319 = vunpack.c.l.b16 %v433
    %v2320 = vunpack.c.l.b16 %v434
    %v2321 = vunpack.c.l.b16 %v435
    %v2322 = vunpack.c.l.b16 %v436
    %v2323 = vunpack.c.l.b16 %v437
    %v2324 = vunpack.c.l.b16 %v438
    %v2325 = vunpack.c.l.b16 %v439
    %v2326 = vunpack.c.l.b16 %v440
    %v2327 = vunpack.c.l.b16 %v441
    %v2328 = vunpack.c.l.b16 %v442
    %v2329 = vunpack.c.l.b16 %v443
    %v2330 = vunpack.c.l.b16 %v444
    %v2331 = vunpack.c.l.b16 %v445
    %v2332 = vunpack.c.l.b16 %v446
    %v2333 = vunpack.c.l.b16 %v447
    %v2334 = vunpack.c.l.b16 %v448
    %v2335 = vunpack.c.l.b16 %v449
    %v2336 = vunpack.c.l.b16 %v450
    %v2337 = vunpack.c.l.b16 %v451
    %v2338 = vunpack.c.l.b16 %v452
    %v2339 = vunpack.c.l.b16 %v453
    %v2340 = vunpack.c.l.b16 %v454
    %v2341 = vunpack.c.l.b16 %v455
    %v2342 = vunpack.c.l.b16 %v456
    %v2343 = vunpack.c.l.b16 %v457
    %v2344 = vunpack.c.l.b16 %v458
    %v2345 = vunpack.c.l.b16 %v459
    %v2346 = vunpack.c.l.b16 %v460
    %v2347 = vunpack.c.l.b16 %v461
    %v2348 = vunpack.c.l.b16 %v462
    %v2349 = vunpack.c.l.b16 %v463
    %v2350 = vunpack.c.l.b16 %v464
    %v2351 = vunpack.c.l.b16 %v465
    %v2352 = vunpack.c.l.b16 %v466
    %v2353 = vunpack.c.l.b16 %v467
    %v2354 = vunpack.c.l.b16 %v468
    %v2355 = vunpack.c.l.b16 %v469
    %v2356 = vunpack.c.l.b16 %v470
    %v2357 = vunpack.c.l.b16 %v471
    %v2358 = vunpack.c.l.b16 %v472
    %v2359 = vunpack.c.l.b16 %v473
    %v2360 = vunpack.c.l.b16 %v474
    %v2361 = vunpack.c.l.b16 %v475
    %v2362 = vunpack.c.l.b16 %v476
    %v2363 = vunpack.c.l.b16 %v477
    %v2364 = vunpack.c.l.b16 %v478
    %v2365 = vunpack.c.l.b16 %v479
    %v2366 = vunpack.c.l.b16 %v480
    %v2367 = vunpack.c.l.b16 %v481
    %v2368 = vunpack.c.l.b16 %v482
    %v2369 = vunpack.c.l.b16 %v483
    %v2370 = vunpack.c.l.b16 %v484
    %v2371 = vunpack.c.l.b16 %v485
    %v2372 = vunpack.c.l.b16 %v486
    %v2373 = vunpack.c.l.b16 %v487
    %v2374 = vunpack.c.l.b16 %v488
    %v2375 = vunpack.c.l.b16 %v489
    %v2376 = vunpack.c.l.b16 %v490
    %v2377 = vunpack.c.l.b16 %v491
    %v2378 = vunpack.c.l.b16 %v492
    %v2379 = vunpack.c.l.b16 %v493
    %v2380 = vunpack.c.l.b16 %v494
    %v2381 = vunpack.c.l.b16 %v495
    %v2382 = vunpack.c.l.b16 %v496
    %v2383 = vunpack.c.l.b16 %v497
    %v2384 = vunpack.c.l.b16 %v498
    %v2385 = vunpack.c.l.b16 %v499
    %v2386 = vunpack.c.l.b16 %v500
    %v2387 = vunpack.c.l.b16 %v501
    %v2388 = vunpack.c.l.b16 %v502
    %v2389 = vunpack.c.l.b16 %v503
    %v2390 = vunpack.c.l.b16 %v504
    %v2391 = vunpack.c.l.b16 %v505
    %v2392 = vunpack.c.l.b16 %v506
    %v2393 = vunpack.c.l.b16 %v507
    %v2394 = vunpack.c.l.b16 %v508
    %v2395 = vunpack.c.l.b16 %v509
    %v2396 = vunpack.c.l.b16 %v510
    %v2397 = vunpack.c.l.b16 %v511
    %v2398 = vunpack.c.l.b16 %v512
    %v2399 = vunpack.c.l.b16 %v513
    %v2400 = vunpack.c.l.b16 %v514
    %v2401 = vunpack.c.l.b16 %v515
    %v2402 = vunpack.c.l.b16 %v516
    %v2403 = vunpack.c.l.b16 %v517
    %v2404 = vunpack.c.l.b16 %v518
    %v2405 = vunpack.c.l.b16 %v519
    %v2406 = vunpack.c.l.b16 %v520
    %v2407 = vunpack.c.l.b16 %v521
    %v2408 = vunpack.c.l.b16 %v522
    %v2409 = vunpack.c.l.b16 %v523
    %v2410 = vunpack.c.l.b16 %v524
    %v2411 = vunpack.c.l.b16 %v525
    %v2412 = vunpack.c.l.b16 %v526
    %v2413 = vunpack.c.l.b16 %v527
    %v2414 = vunpack.c.l.b16 %v528
    %v2415 = vunpack.c.l.b16 %v529
    %v2416 = vunpack.c.l.b16 %v530
    %v2417 = vunpack.c.l.b16 %v531
    %v2418 = vunpack.c.l.b16 %v532
    %v2419 = vunpack.c.l.b16 %v533
    %v2420 = vunpack.c.l.b16 %v534
    %v2421 = vunpack.c.l.b16 %v535
    %v2422 = vunpack.c.l.b16 %v536
    %v2423 = vunpack.c.l.b16 %v537
    %v2424 = vunpack.c.l.b16 %v538
    %v2425 = vunpack.c.l.b16 %v539
    %v2426 = vunpack.c.l.b16 %v540
    %v2427 = vunpack.c.l.b16 %v541
    %v2428 = vunpack.c.l.b16 %v542
    %v2429 = vunpack.c.l.b16 %v543
    %v2430 = vunpack.c.l.b16 %v544
    %v2431 = vunpack.c.l.b16 %v545
    %v2432 = vunpack.c.l.b16 %v546
    %v2433 = vunpack.c.l.b16 %v547
    %v2434 = vunpack.c.l.b16 %v548
    %v2435 = vunpack.c.l.b16 %v549
    %v2436 = vunpack.c.l.b16 %v550
    %v2437 = vunpack.c.l.b16 %v551
    %v2438 = vunpack.c.l.b16 %v552
    %v2439 = vunpack.c.l.b16 %v553
    %v2440 = vunpack.c.l.b16 %v554
    %v2441 = vunpack.c.l.b16 %v555
    %v2442 = vunpack.c.l.b16 %v556
    %v2443 = vunpack.c.l.b16 %v557
    %v2444 = vunpack.c.l.b16 %v558
    %v2445 = vunpack.c.l.b16 %v559
    %v2446 = vunpack.c.l.b16 %v560
    %v2447 = vunpack.c.l.b16 %v561
    %v2448 = vunpack.c.l.b16 %v562
    %v2449 = vunpack.c.l.b16 %v563
    %v2450 = vunpack.c.l.b16 %v564
    %v2451 = vunpack.c.l.b16 %v565
    %v2452 = vunpack.c.l.b16 %v566
    %v2453 = vunpack.c.l.b16 %v567
    %v2454 = vunpack.c.l.b16 %v568
    %v2455 = vunpack.c.l.b16 %v569
    %v2456 = vunpack.c.l.b16 %v570
    %v2457 = vunpack.c.l.b16 %v571
    %v2458 = vunpack.c.l.b16 %v572
    %v2459 = vunpack.c.l.b16 %v573
    %v2460 = vunpack.c.l.b16 %v574
    %v2461 = vunpack.c.l.b16 %v575
    %v2462 = vunpack.c.l.b16 %v576
    %v2463 = vunpack.c.l.b16 %v577
    %v2464 = vunpack.c.l.b16 %v578
    %v2465 = vunpack.c.l.b16 %v579
    %v2466 = vunpack.c.l.b16 %v580
    %v2467 = vunpack.c.l.b16 %v581
    %v2468 = vunpack.c.l.b16 %v582
    %v2469 = vunpack.c.l.b16 %v583
    %v2470 = vunpack.c.l.b16 %v584
    %v2471 = vunpack.c.l.b16 %v585
    %v2472 = vunpack.c.l.b16 %v586
    %v2473 = vunpack.c.l.b16 %v587
    %v2474 = vunpack.c.l.b16 %v588
    %v2475 = vunpack.c.l.b16 %v589
    %v2476 = vunpack.c.l.b16 %v590
    %v2477 = vunpack.c.l.b16 %v591
    %v2478 = vunpack.c.l.b16 %v592
    %v2479 = vunpack.c.l.b16 %v593
    %v2480 = vunpack.c.l.b16 %v594
    %v2481 = vunpack.c.l.b16 %v595
    %v2482 = vunpack.c.l.b16 %v596
    %v2483 = vunpack.c.l.b16 %v597
    %v2484 = vunpack.c.l.b16 %v598
    %v2485 = vunpack.c.l.b16 %v599
    %v2486 = vunpack.c.l.b16 %v600
    %v2487 = vunpack.c.l.b16 %v601
    %v2488 = vunpack.c.l.b16 %v602
    %v2489 = vunpack.c.l.b16 %v603
    %v2490 = vunpack.c.l.b16 %v604
    %v2491 = vunpack.c.l.b16 %v605
    %v2492 = vunpack.c.l.b16 %v606
    %v2493 = vunpack.c.l.b16 %v607
    %v2494 = vunpack.c.l.b16 %v608
    %v2495 = vunpack.c.l.b16 %v609
    %v2496 = vunpack.c.l.b16 %v610
    %v2497 = vunpack.c.l.b16 %v611
    %v2498 = vunpack.c.l.b16 %v612
    %v2499 = vunpack.c.l.b16 %v613
    %v2500 = vunpack.c.l.b16 %v614
    %v2501 = vunpack.c.l.b16 %v615
    %v2502 = vunpack.c.l.b16 %v616
    %v2503 = vunpack.c.l.b16 %v617
    %v2504 = vunpack.c.l.b16 %v618
    %v2505 = vunpack.c.l.b16 %v619
    %v2506 = vunpack.c.l.b16 %v620
    %v2507 = vunpack.c.l.b16 %v621
    %v2508 = vunpack.c.l.b16 %v622
    %v2509 = vunpack.c.l.b16 %v623
    %v2510 = vunpack.c.l.b16 %v624
    %v2511 = vunpack.c.l.b16 %v625
    %v2512 = vunpack.c.l.b16 %v626
    %v2513 = vunpack.c.l.b16 %v627
    %v2514 = vunpack.c.l.b16 %v628
    %v2515 = vunpack.c.l.b16 %v629
    %v2516 = vunpack.c.l.b16 %v630
    %v2517 = vunpack.c.l.b16 %v631
    %v2518 = vunpack.c.l.b16 %v632
    %v2519 = vunpack.c.l.b16 %v633
    %v2520 = vunpack.c.l.b16 %v634
    %v2521 = vunpack.c.l.b16 %v635
    %v2522 = vunpack.c.l.b16 %v636
    %v2523 = vunpack.c.l.b16 %v637
    %v2524 = vunpack.c.l.b16 %v638
    %v2525 = vunpack.c.l.b16 %v639
    %v2526 = vunpack.c.l.b16 %v640
    %v2527 = vunpack.c.l.b16 %v641
    %v2528 = vunpack.c.l.b16 %v642
    %v2529 = vunpack.c.l.b16 %v643
    %v2530 = vunpack.c.l.b16 %v644
    %v2531 = vunpack.c.l.b16 %v645
    %v2532 = vunpack.c.l.b16 %v646
    %v2533 = vunpack.c.l.b16 %v647
    %v2534 = vunpack.c.l.b16 %v648
    %v2535 = vunpack.c.l.b16 %v649
    %v2536 = vunpack.c.l.b16 %v650
    %v2537 = vunpack.c.l.b16 %v651
    %v2538 = vunpack.c.l.b16 %v652
    %v2539 = vunpack.c.l.b16 %v653
    %v2540 = vunpack.c.l.b16 %v654
    %v2541 = vunpack.c.l.b16 %v655
    %v2542 = vunpack.c.l.b16 %v656
    %v2543 = vunpack.c.l.b16 %v657
    %v2544 = vunpack.c.l.b16 %v658
    %v2545 = vunpack.c.l.b16 %v659
    %v2546 = vunpack.c.l.b16 %v660
    %v2547 = vunpack.c.l.b16 %v661
    %v2548 = vunpack.c.l.b16 %v662
    %v2549 = vunpack.c.l.b16 %v663
    %v2550 = vunpack.c.l.b16 %v664
    %v2551 = vunpack.c.l.b16 %v665
    %v2552 = vunpack.c.l.b16 %v666
    %v2553 = vunpack.c.l.b16 %v667
    %v2554 = vunpack.c.l.b16 %v668
    %v2555 = vunpack.c.l.b16 %v669
    %v2556 = vunpack.c.l.b16 %v670
    %v2557 = vunpack.c.l.b16 %v671
    %v2558 = vunpack.c.l.b16 %v672
    %v2559 = vunpack.c.l.b16 %v673
    %v2560 = vunpack.c.l.b16 %v674
    %v2561 = vunpack.c.l.b16 %v675
    %v2562 = vunpack.c.l.b16 %v676
    %v2563 = vunpack.c.l.b16 %v677
    %v2564 = vunpack.c.l.b16 %v678
    %v2565 = vunpack.c.l.b16 %v679
    %v2566 = vunpack.c.l.b16 %v680
    %v2567 = vunpack.c.l.b16 %v681
    %v2568 = vunpack.c.l.b16 %v682
    %v2569 = vunpack.c.l.b16 %v683
    %v2570 = vunpack.c.l.b16 %v684
    %v2571 = vunpack.c.l.b16 %v685
    %v2572 = vunpack.c.l.b16 %v686
    %v2573 = vunpack.c.l.b16 %v687
    %v2574 = vunpack.c.l.b16 %v688
    %v2575 = vunpack.c.l.b16 %v689
    %v2576 = vunpack.c.l.b16 %v690
    %v2577 = vunpack.c.l.b16 %v691
    %v2578 = vunpack.c.l.b16 %v692
    %v2579 = vunpack.c.l.b16 %v693
    %v2580 = vunpack.c.l.b16 %v694
    %v2581 = vunpack.c.l.b16 %v695
    %v2582 = vunpack.c.l.b16 %v696
    %v2583 = vunpack.c.l.b16 %v697
    %v2584 = vunpack.c.l.b16 %v698
    %v2585 = vunpack.c.l.b16 %v699
    %v2586 = vunpack.c.l.b16 %v700
    %v2587 = vunpack.c.l.b16 %v701
    %v2588 = vunpack.c.l.b16 %v702
    %v2589 = vunpack.c.l.b16 %v703
    %v2590 = vunpack.c.l.b16 %v704
    %v2591 = vunpack.c.l.b16 %v705
    %v2592 = vunpack.c.l.b16 %v706
    %v2593 = vunpack.c.l.b16 %v707
    %v2594 = vunpack.c.l.b16 %v708
    %v2595 = vunpack.c.l.b16 %v709
    %v2596 = vunpack.c.l.b16 %v710
    %v2597 = vunpack.c.l.b16 %v711
    %v2598 = vunpack.c.l.b16 %v712
    %v2599 = vunpack.c.l.b16 %v713
    %v2600 = vunpack.c.l.b16 %v714
    %v2601 = vunpack.c.l.b16 %v715
    %v2602 = vunpack.c.l.b16 %v716
    %v2603 = vunpack.c.l.b16 %v717
    %v2604 = vunpack.c.l.b16 %v718
    %v2605 = vunpack.c.l.b16 %v719
    %v2606 = vunpack.c.l.b16 %v720
    %v2607 = vunpack.c.l.b16 %v721
    %v2608 = vunpack.c.l.b16 %v722
    %v2609 = vunpack.c.l.b16 %v723
    %v2610 = vunpack.c.l.b16 %v724
    %v2611 = vunpack.c.l.b16 %v725
    %v2612 = vunpack.c.l.b16 %v726
    %v2613 = vunpack.c.l.b16 %v727
    %v2614 = vunpack.c.l.b16 %v728
    %v2615 = vunpack.c.l.b16 %v729
    %v2616 = vunpack.c.l.b16 %v730
    %v2617 = vunpack.c.l.b16 %v731
    %v2618 = vunpack.c.l.b16 %v732
    %v2619 = vunpack.c.l.b16 %v733
    %v2620 = vunpack.c.l.b16 %v734
    %v2621 = vunpack.c.l.b16 %v735
    %v2622 = vunpack.c.l.b16 %v736
    %v2623 = vunpack.c.l.b16 %v737
    %v2624 = vunpack.c.l.b16 %v738
    %v2625 = vunpack.c.l.b16 %v739
    %v2626 = vunpack.c.l.b16 %v740
    %v2627 = vunpack.c.l.b16 %v741
    %v2628 = vunpack.c.l.b16 %v742
    %v2629 = vunpack.c.l.b16 %v743
    %v2630 = vunpack.c.l.b16 %v744
    %v2631 = vunpack.c.l.b16 %v745
    %v2632 = vunpack.c.l.b16 %v746
    %v2633 = vunpack.c.l.b16 %v747
    %v2634 = vunpack.c.l.b16 %v748
    %v2635 = vunpack.c.l.b16 %v749
    %v2636 = vunpack.c.l.b16 %v750
    %v2637 = vunpack.c.l.b16 %v751
    %v2638 = vunpack.c.l.b16 %v752
    %v2639 = vunpack.c.l.b16 %v753
    %v2640 = vunpack.c.l.b16 %v754
    %v2641 = vunpack.c.l.b16 %v755
    %v2642 = vunpack.c.l.b16 %v756
    %v2643 = vunpack.c.l.b16 %v757
    %v2644 = vunpack.c.l.b16 %v758
    %v2645 = vunpack.c.l.b16 %v759
    %v2646 = vunpack.c.l.b16 %v760
    %v2647 = vunpack.c.l.b16 %v761
    %v2648 = vunpack.c.l.b16 %v762
    %v2649 = vunpack.c.l.b16 %v763
    %v2650 = vunpack.c.l.b16 %v764
    %v2651 = vunpack.c.l.b16 %v765
    %v2652 = vunpack.c.l.b16 %v766
    %v2653 = vunpack.c.l.b16 %v767
    %v2654 = vunpack.c.l.b16 %v768
    %v2655 = vunpack.c.l.b16 %v769
    %v2656 = vunpack.c.l.b16 %v770
    %v2657 = vunpack.c.l.b16 %v771
    %v2658 = vunpack.c.l.b16 %v772
    %v2659 = vunpack.c.l.b16 %v773
    %v2660 = vunpack.c.l.b16 %v774
    %v2661 = vunpack.c.l.b16 %v775
    %v2662 = vunpack.c.l.b16 %v776
    %v2663 = vunpack.c.l.b16 %v777
    %v2664 = vunpack.c.l.b16 %v778
    %v2665 = vunpack.c.l.b16 %v779
    %v2666 = vunpack.c.l.b16 %v780
    %v2667 = vunpack.c.l.b16 %v781
    %v2668 = vunpack.c.l.b16 %v782
    %v2669 = vunpack.c.l.b16 %v783
    %v2670 = vunpack.c.l.b16 %v784
    %v2671 = vunpack.c.l.b16 %v785
    %v2672 = vunpack.c.l.b16 %v786
    %v2673 = vunpack.c.l.b16 %v787
    %v2674 = vunpack.c.l.b16 %v788
    %v2675 = vunpack.c.l.b16 %v789
    %v2676 = vunpack.c.l.b16 %v790
    %v2677 = vunpack.c.l.b16 %v791
    %v2678 = vunpack.c.l.b16 %v792
    %v2679 = vunpack.c.l.b16 %v793
    %v2680 = vunpack.c.l.b16 %v794
    %v2681 = vunpack.c.l.b16 %v795
    %v2682 = vunpack.c.l.b16 %v796
    %v2683 = vunpack.c.l.b16 %v797
    %v2684 = vunpack.c.l.b16 %v798
    %v2685 = vunpack.c.l.b16 %v799
    %v2686 = vunpack.c.l.b16 %v800
    %v2687 = vunpack.c.l.b16 %v801
    %v2688 = vunpack.c.l.b16 %v802
    %v2689 = vunpack.c.l.b16 %v803
    %v2690 = vunpack.c.l.b16 %v804
    %v2691 = vunpack.c.l.b16 %v805
    %v2692 = vunpack.c.l.b16 %v806
    %v2693 = vunpack.c.l.b16 %v807
    %v2694 = vunpack.c.l.b16 %v808
    %v2695 = vunpack.c.l.b16 %v809
    %v2696 = vunpack.c.l.b16 %v810
    %v2697 = vunpack.c.l.b16 %v811
    %v2698 = vunpack.c.l.b16 %v812
    %v2699 = vunpack.c.l.b16 %v813
    %v2700 = vunpack.c.l.b16 %v814
    %v2701 = vunpack.c.l.b16 %v815
    %v2702 = vunpack.c.l.b16 %v816
    %v2703 = vunpack.c.l.b16 %v817
    %v2704 = vunpack.c.l.b16 %v818
    %v2705 = vunpack.c.l.b16 %v819
    %v2706 = vunpack.c.l.b16 %v820
    %v2707 = vunpack.c.l.b16 %v821
    %v2708 = vunpack.c.l.b16 %v822
    %v2709 = vunpack.c.l.b16 %v823
    %v2710 = vunpack.c.l.b16 %v824
    %v2711 = vunpack.c.l.b16 %v825
    %v2712 = vunpack.c.l.b16 %v826
    %v2713 = vunpack.c.l.b16 %v827
    %v2714 = vunpack.c.l.b16 %v828
    %v2715 = vunpack.c.l.b16 %v829
    %v2716 = vunpack.c.l.b16 %v830
    %v2717 = vunpack.c.l.b16 %v831
    %v2718 = vunpack.c.l.b16 %v832
    %v2719 = vunpack.c.l.b16 %v833
    %v2720 = vunpack.c.l.b16 %v834
    %v2721 = vunpack.c.l.b16 %v835
    %v2722 = vunpack.c.l.b16 %v836
    %v2723 = vunpack.c.l.b16 %v837
    %v2724 = vunpack.c.l.b16 %v838
    %v2725 = vunpack.c.l.b16 %v839
    %v2726 = vunpack.c.l.b16 %v840
    %v2727 = vunpack.c.l.b16 %v841
    %v2728 = vunpack.c.l.b16 %v842
    %v2729 = vunpack.c.l.b16 %v843
    %v2730 = vunpack.c.l.b16 %v844
    %v2731 = vunpack.c.l.b16 %v845
    %v2732 = vunpack.c.l.b16 %v846
    %v2733 = vunpack.c.l.b16 %v847
    %v2734 = vunpack.c.l.b16 %v848
    %v2735 = vunpack.c.l.b16 %v849
    %v2736 = vunpack.c.l.b16 %v850
    %v2737 = vunpack.c.l.b16 %v851
    %v2738 = vunpack.c.l.b16 %v852
    %v2739 = vunpack.c.l.b16 %v853
    %v2740 = vunpack.c.l.b16 %v854
    %v2741 = vunpack.c.l.b16 %v855
    %v2742 = vunpack.c.l.b16 %v856
    %v2743 = vunpack.c.l.b16 %v857
    %v2744 = vunpack.c.l.b16 %v858
    %v2745 = vunpack.c.l.b16 %v859
    %v2746 = vunpack.c.l.b16 %v860
    %v2747 = vunpack.c.l.b16 %v861
    %v2748 = vunpack.c.l.b16 %v862
    %v2749 = vunpack.c.l.b16 %v863
    %v2750 = vunpack.c.l.b16 %v864
    %v2751 = vunpack.c.l.b16 %v865
    %v2752 = vunpack.c.l.b16 %v866
    %v2753 = vunpack.c.l.b16 %v867
    %v2754 = vunpack.c.l.b16 %v868
    %v2755 = vunpack.c.l.b16 %v869
    %v2756 = vunpack.c.l.b16 %v870
    %v2757 = vunpack.c.l.b16 %v871
    %v2758 = vunpack.c.l.b16 %v872
    %v2759 = vunpack.c.l.b16 %v873
    %v2760 = vunpack.c.l.b16 %v874
    %v2761 = vunpack.c.l.b16 %v875
    %v2762 = vunpack.c.l.b16 %v876
    %v2763 = vunpack.c.l.b16 %v877
    %v2764 = vunpack.c.l.b16 %v878
    %v2765 = vunpack.c.l.b16 %v879
    %v2766 = vunpack.c.l.b16 %v880
    %v2767 = vunpack.c.l.b16 %v881
    %v2768 = vunpack.c.l.b16 %v882
    %v2769 = vunpack.c.l.b16 %v883
    %v2770 = vunpack.c.l.b16 %v884
    %v2771 = vunpack.c.l.b16 %v885
    %v2772 = vunpack.c.l.b16 %v886
    %v2773 = vunpack.c.l.b16 %v887
    %v2774 = vunpack.c.l.b16 %v888
    %v2775 = vunpack.c.l.b16 %v889
    %v2776 = vunpack.c.l.b16 %v890
    %v2777 = vunpack.c.l.b16 %v891
    %v2778 = vunpack.c.l.b16 %v892
    %v2779 = vunpack.c.l.b16 %v893
    %v2780 = vunpack.c.l.b16 %v894
    %v2781 = vunpack.c.l.b16 %v895
    %v2782 = vunpack.c.l.b16 %v896
    %v2783 = vunpack.c.l.b16 %v897
    %v2784 = vunpack.c.l.b16 %v898
    %v2785 = vunpack.c.l.b16 %v899
    %v2786 = vunpack.c.l.b16 %v900
    %v2787 = vunpack.c.l.b16 %v901
    %v2788 = vunpack.c.l.b16 %v902
    %v2789 = vunpack.c.l.b16 %v903
    %v2790 = vunpack.c.l.b16 %v904
    %v2791 = vunpack.c.l.b16 %v905
    %v2792 = vunpack.c.l.b16 %v906
    %v2793 = vunpack.c.l.b16 %v907
    %v2794 = vunpack.c.l.b16 %v908
    %v2795 = vunpack.c.l.b16 %v909
    %v2796 = vunpack.c.l.b16 %v910
    %v2797 = vunpack.c.l.b16 %v911
    %v2798 = vunpack.c.l.b16 %v912
    %v2799 = vunpack.c.l.b16 %v913
    %v2800 = vunpack.c.l.b16 %v914
    %v2801 = vunpack.c.l.b16 %v915
    %v2802 = vunpack.c.l.b16 %v916
    %v2803 = vunpack.c.l.b16 %v917
    %v2804 = vunpack.c.l.b16 %v918
    %v2805 = vunpack.c.l.b16 %v919
    %v2806 = vunpack.c.l.b16 %v920
    %v2807 = vunpack.c.l.b16 %v921
    %v2808 = vunpack.c.l.b16 %v922
    %v2809 = vunpack.c.l.b16 %v923
    %v2810 = vunpack.c.l.b16 %v924
    %v2811 = vunpack.c.l.b16 %v925
    %v2812 = vunpack.c.l.b16 %v926
    %v2813 = vunpack.c.l.b16 %v927
    %v2814 = vunpack.c.l.b16 %v928
    %v2815 = vunpack.c.l.b16 %v929
    %v2816 = vunpack.c.l.b16 %v930
    %v2817 = vunpack.c.l.b16 %v931
    %v2818 = vunpack.c.l.b16 %v932
    %v2819 = vunpack.c.l.b16 %v933
    %v2820 = vpack.c.b16 %v1973, %v1972
    %v2821 = vpack.c.b16 %v1975, %v1974
    %v2822 = vpack.c.b16 %v1977, %v1976
    %v2823 = vpack.c.b16 %v1979, %v1978
    %v2824 = vpack.c.b16 %v1981, %v1980
    %v2825 = vpack.c.b16 %v1983, %v1982
    %v2826 = vpack.c.b16 %v1985, %v1984
    %v2827 = vpack.c.b16 %v1987, %v1986
    %v2828 = vpack.c.b16 %v1989, %v1988
    %v2829 = vpack.c.b16 %v1991, %v1990
    %v2830 = vpack.c.b16 %v1993, %v1992
    %v2831 = vpack.c.b16 %v1995, %v1994
    %v2832 = vpack.c.b16 %v1997, %v1996
    %v2833 = vpack.c.b16 %v1999, %v1998
    %v2834 = vpack.c.b16 %v2001, %v2000
    %v2835 = vpack.c.b16 %v2003, %v2002
    %v2836 = vpack.c.b16 %v2005, %v2004
    %v2837 = vpack.c.b16 %v2007, %v2006
    %v2838 = vpack.c.b16 %v2009, %v2008
    %v2839 = vpack.c.b16 %v2011, %v2010
    %v2840 = vpack.c.b16 %v2013, %v2012
    %v2841 = vpack.c.b16 %v2015, %v2014
    %v2842 = vpack.c.b16 %v2017, %v2016
    %v2843 = vpack.c.b16 %v2019, %v2018
    %v2844 = vpack.c.b16 %v2021, %v2020
    %v2845 = vpack.c.b16 %v2023, %v2022
    %v2846 = vpack.c.b16 %v2025, %v2024
    %v2847 = vpack.c.b16 %v2027, %v2026
    %v2848 = vpack.c.b16 %v2029, %v2028
    %v2849 = vpack.c.b16 %v2031, %v2030
    %v2850 = vpack.c.b16 %v2033, %v2032
    %v2851 = vpack.c.b16 %v2035, %v2034
    %v2852 = vpack.c.b16 %v2037, %v2036
    %v2853 = vpack.c.b16 %v2039, %v2038
    %v2854 = vpack.c.b16 %v2041, %v2040
    %v2855 = vpack.c.b16 %v2043, %v2042
    %v2856 = vpack.c.b16 %v2045, %v2044
    %v2857 = vpack.c.b16 %v2047, %v2046
    %v2858 = vpack.c.b16 %v2049, %v2048
    %v2859 = vpack.c.b16 %v2051, %v2050
    %v2860 = vpack.c.b16 %v2053, %v2052
    %v2861 = vpack.c.b16 %v2055, %v2054
    %v2862 = vpack.c.b16 %v2057, %v2056
    %v2863 = vpack.c.b16 %v2059, %v2058
    %v2864 = vpack.c.b16 %v2061, %v2060
    %v2865 = vpack.c.b16 %v2063, %v2062
    %v2866 = vpack.c.b16 %v2065, %v2064
    %v2867 = vpack.c.b16 %v2067, %v2066
    %v2868 = vpack.c.b16 %v2069, %v2068
    %v2869 = vpack.c.b16 %v2071, %v2070
    %v2870 = vpack.c.b16 %v2073, %v2072
    %v2871 = vpack.c.b16 %v2075, %v2074
    %v2872 = vpack.c.b16 %v2077, %v2076
    %v2873 = vpack.c.b16 %v2079, %v2078
    %v2874 = vpack.c.b16 %v2081, %v2080
    %v2875 = vpack.c.b16 %v2083, %v2082
    %v2876 = vpack.c.b16 %v2085, %v2084
    %v2877 = vpack.c.b16 %v2087, %v2086
    %v2878 = vpack.c.b16 %v2089, %v2088
    %v2879 = vpack.c.b16 %v2091, %v2090
    %v2880 = vpack.c.b16 %v2093, %v2092
    %v2881 = vpack.c.b16 %v2095, %v2094
    %v2882 = vpack.c.b16 %v2097, %v2096
    %v2883 = vpack.c.b16 %v2099, %v2098
    %v2884 = vpack.c.b16 %v2101, %v2100
    %v2885 = vpack.c.b16 %v2103, %v2102
    %v2886 = vpack.c.b16 %v2105, %v2104
    %v2887 = vpack.c.b16 %v2107, %v2106
    %v2888 = vpack.c.b16 %v2109, %v2108
    %v2889 = vpack.c.b16 %v2111, %v2110
    %v2890 = vpack.c.b16 %v2113, %v2112
    %v2891 = vpack.c.b16 %v2115, %v2114
    %v2892 = vpack.c.b16 %v2117, %v2116
    %v2893 = vpack.c.b16 %v2119, %v2118
    %v2894 = vpack.c.b16 %v2121, %v2120
    %v2895 = vpack.c.b16 %v2123, %v2122
    %v2896 = vpack.c.b16 %v2125, %v2124
    %v2897 = vpack.c.b16 %v2127, %v2126
    %v2898 = vpack.c.b16 %v2129, %v2128
    %v2899 = vpack.c.b16 %v2131, %v2130
    %v2900 = vpack.c.b16 %v2133, %v2132
    %v2901 = vpack.c.b16 %v2135, %v2134
    %v2902 = vpack.c.b16 %v2137, %v2136
    %v2903 = vpack.c.b16 %v2139, %v2138
    %v2904 = vpack.c.b16 %v2141, %v2140
    %v2905 = vpack.c.b16 %v2143, %v2142
    %v2906 = vpack.c.b16 %v2145, %v2144
    %v2907 = vpack.c.b16 %v2147, %v2146
    %v2908 = vpack.c.b16 %v2149, %v2148
    %v2909 = vpack.c.b16 %v2151, %v2150
    %v2910 = vpack.c.b16 %v2153, %v2152
    %v2911 = vpack.c.b16 %v2155, %v2154
    %v2912 = vpack.c.b16 %v2157, %v2156
    %v2913 = vpack.c.b16 %v2159, %v2158
    %v2914 = vpack.c.b16 %v2161, %v2160
    %v2915 = vpack.c.b16 %v2163, %v2162
    %v2916 = vpack.c.b16 %v2165, %v2164
    %v2917 = vpack.c.b16 %v2167, %v2166
    %v2918 = vpack.c.b16 %v2169, %v2168
    %v2919 = vpack.c.b16 %v2171, %v2170
    %v2920 = vpack.c.b16 %v2173, %v2172
    %v2921 = vpack.c.b16 %v2175, %v2174
    %v2922 = vpack.c.b16 %v2177, %v2176
    %v2923 = vpack.c.b16 %v2179, %v2178
    %v2924 = vpack.c.b16 %v2181, %v2180
    %v2925 = vpack.c.b16 %v2183, %v2182
    %v2926 = vpack.c.b16 %v2185, %v2184
    %v2927 = vpack.c.b16 %v2187, %v2186
    %v2928 = vpack.c.b16 %v2189, %v2188
    %v2929 = vpack.c.b16 %v2191, %v2190
    %v2930 = vpack.c.b16 %v2193, %v2192
    %v2931 = vpack.c.b16 %v2195, %v2194
    %v2932 = vpack.c.b16 %v2197, %v2196
    %v2933 = vpack.c.b16 %v2199, %v2198
    %v2934 = vpack.c.b16 %v2201, %v2200
    %v2935 = vpack.c.b16 %v2203, %v2202
    %v2936 = vpack.c.b16 %v2205, %v2204
    %v2937 = vpack.c.b16 %v2207, %v2206
    %v2938 = vpack.c.b16 %v2209, %v2208
    %v2939 = vpack.c.b16 %v2211, %v2210
    %v2940 = vpack.c.b16 %v2213, %v2212
    %v2941 = vpack.c.b16 %v2215, %v2214
    %v2942 = vpack.c.b16 %v2217, %v2216
    %v2943 = vpack.c.b16 %v2219, %v2218
    %v2944 = vpack.c.b16 %v2221, %v2220
    %v2945 = vpack.c.b16 %v2223, %v2222
    %v2946 = vpack.c.b16 %v2225, %v2224
    %v2947 = vpack.c.b16 %v2227, %v2226
    %v2948 = vpack.c.b16 %v2229, %v2228
    %v2949 = vpack.c.b16 %v2231, %v2230
    %v2950 = vpack.c.b16 %v2233, %v2232
    %v2951 = vpack.c.b16 %v2235, %v2234
    %v2952 = vpack.c.b16 %v2237, %v2236
    %v2953 = vpack.c.b16 %v2239, %v2238
    %v2954 = vpack.c.b16 %v2241, %v2240
    %v2955 = vpack.c.b16 %v2243, %v2242
    %v2956 = vpack.c.b16 %v2245, %v2244
    %v2957 = vpack.c.b16 %v2247, %v2246
    %v2958 = vpack.c.b16 %v2249, %v2248
    %v2959 = vpack.c.b16 %v2251, %v2250
    %v2960 = vpack.c.b16 %v2253, %v2252
    %v2961 = vpack.c.b16 %v2255, %v2254
    %v2962 = vpack.c.b16 %v2257, %v2256
    %v2963 = vpack.c.b16 %v2259, %v2258
    %v2964 = vpack.c.b16 %v2261, %v2260
    %v2965 = vpack.c.b16 %v2263, %v2262
    %v2966 = vpack.c.b16 %v2265, %v2264
    %v2967 = vpack.c.b16 %v2267, %v2266
    %v2968 = vpack.c.b16 %v2269, %v2268
    %v2969 = vpack.c.b16 %v2271, %v2270
    %v2970 = vpack.c.b16 %v2273, %v2272
    %v2971 = vpack.c.b16 %v2275, %v2274
    %v2972 = vpack.c.b16 %v2277, %v2276
    %v2973 = vpack.c.b16 %v2279, %v2278
    %v2974 = vpack.c.b16 %v2281, %v2280
    %v2975 = vpack.c.b16 %v2283, %v2282
    %v2976 = vpack.c.b16 %v2285, %v2284
    %v2977 = vpack.c.b16 %v2287, %v2286
    %v2978 = vpack.c.b16 %v2289, %v2288
    %v2979 = vpack.c.b16 %v2291, %v2290
    %v2980 = vpack.c.b16 %v2293, %v2292
    %v2981 = vpack.c.b16 %v2295, %v2294
    %v2982 = vpack.c.b16 %v2297, %v2296
    %v2983 = vpack.c.b16 %v2299, %v2298
    %v2984 = vpack.c.b16 %v2301, %v2300
    %v2985 = vpack.c.b16 %v2303, %v2302
    %v2986 = vpack.c.b16 %v2305, %v2304
    %v2987 = vpack.c.b16 %v2307, %v2306
    %v2988 = vpack.c.b16 %v2309, %v2308
    %v2989 = vpack.c.b16 %v2311, %v2310
    %v2990 = vpack.c.b16 %v2313, %v2312
    %v2991 = vpack.c.b16 %v2315, %v2314
    %v2992 = vpack.c.b16 %v2317, %v2316
    %v2993 = vpack.c.b16 %v2319, %v2318
    %v2994 = vpack.c.b16 %v2321, %v2320
    %v2995 = vpack.c.b16 %v2323, %v2322
    %v2996 = vpack.c.b16 %v2325, %v2324
    %v2997 = vpack.c.b16 %v2327, %v2326
    %v2998 = vpack.c.b16 %v2329, %v2328
    %v2999 = vpack.c.b16 %v2331, %v2330
    %v3000 = vpack.c.b16 %v2333, %v2332
    %v3001 = vpack.c.b16 %v2335, %v2334
    %v3002 = vpack.c.b16 %v2337, %v2336
    %v3003 = vpack.c.b16 %v2339, %v2338
    %v3004 = vpack.c.b16 %v2341, %v2340
    %v3005 = vpack.c.b16 %v2343, %v2342
    %v3006 = vpack.c.b16 %v2345, %v2344
    %v3007 = vpack.c.b16 %v2347, %v2346
    %v3008 = vpack.c.b16 %v2349, %v2348
    %v3009 = vpack.c.b16 %v2351, %v2350
    %v3010 = vpack.c.b16 %v2353, %v2352
    %v3011 = vpack.c.b16 %v2355, %v2354
    %v3012 = vpack.c.b16 %v2357, %v2356
    %v3013 = vpack.c.b16 %v2359, %v2358
    %v3014 = vpack.c.b16 %v2361, %v2360
    %v3015 = vpack.c.b16 %v2363, %v2362
    %v3016 = vpack.c.b16 %v2365, %v2364
    %v3017 = vpack.c.b16 %v2367, %v2366
    %v3018 = vpack.c.b16 %v2369, %v2368
    %v3019 = vpack.c.b16 %v2371, %v2370
    %v3020 = vpack.c.b16 %v2373, %v2372
    %v3021 = vpack.c.b16 %v2375, %v2374
    %v3022 = vpack.c.b16 %v2377, %v2376
    %v3023 = vpack.c.b16 %v2379, %v2378
    %v3024 = vpack.c.b16 %v2381, %v2380
    %v3025 = vpack.c.b16 %v2383, %v2382
    %v3026 = vpack.c.b16 %v2385, %v2384
    %v3027 = vpack.c.b16 %v2387, %v2386
    %v3028 = vpack.c.b16 %v2389, %v2388
    %v3029 = vpack.c.b16 %v2391, %v2390
    %v3030 = vpack.c.b16 %v2393, %v2392
    %v3031 = vpack.c.b16 %v2395, %v2394
    %v3032 = vpack.c.b16 %v2397, %v2396
    %v3033 = vpack.c.b16 %v2399, %v2398
    %v3034 = vpack.c.b16 %v2401, %v2400
    %v3035 = vpack.c.b16 %v2403, %v2402
    %v3036 = vpack.c.b16 %v2405, %v2404
    %v3037 = vpack.c.b16 %v2407, %v2406
    %v3038 = vpack.c.b16 %v2409, %v2408
    %v3039 = vpack.c.b16 %v2411, %v2410
    %v3040 = vpack.c.b16 %v2413, %v2412
    %v3041 = vpack.c.b16 %v2415, %v2414
    %v3042 = vpack.c.b16 %v2417, %v2416
    %v3043 = vpack.c.b16 %v2419, %v2418
    %v3044 = vpack.c.b16 %v2421, %v2420
    %v3045 = vpack.c.b16 %v2423, %v2422
    %v3046 = vpack.c.b16 %v2425, %v2424
    %v3047 = vpack.c.b16 %v2427, %v2426
    %v3048 = vpack.c.b16 %v2429, %v2428
    %v3049 = vpack.c.b16 %v2431, %v2430
    %v3050 = vpack.c.b16 %v2433, %v2432
    %v3051 = vpack.c.b16 %v2435, %v2434
    %v3052 = vpack.c.b16 %v2437, %v2436
    %v3053 = vpack.c.b16 %v2439, %v2438
    %v3054 = vpack.c.b16 %v2441, %v2440
    %v3055 = vpack.c.b16 %v2443, %v2442
    %v3056 = vpack.c.b16 %v2445, %v2444
    %v3057 = vpack.c.b16 %v2447, %v2446
    %v3058 = vpack.c.b16 %v2449, %v2448
    %v3059 = vpack.c.b16 %v2451, %v2450
    %v3060 = vpack.c.b16 %v2453, %v2452
    %v3061 = vpack.c.b16 %v2455, %v2454
    %v3062 = vpack.c.b16 %v2457, %v2456
    %v3063 = vpack.c.b16 %v2459, %v2458
    %v3064 = vpack.c.b16 %v2461, %v2460
    %v3065 = vpack.c.b16 %v2463, %v2462
    %v3066 = vpack.c.b16 %v2465, %v2464
    %v3067 = vpack.c.b16 %v2467, %v2466
    %v3068 = vpack.c.b16 %v2469, %v2468
    %v3069 = vpack.c.b16 %v2471, %v2470
    %v3070 = vpack.c.b16 %v2473, %v2472
    %v3071 = vpack.c.b16 %v2475, %v2474
    %v3072 = vpack.c.b16 %v2477, %v2476
    %v3073 = vpack.c.b16 %v2479, %v2478
    %v3074 = vpack.c.b16 %v2481, %v2480
    %v3075 = vpack.c.b16 %v2483, %v2482
    %v3076 = vpack.c.b16 %v2485, %v2484
    %v3077 = vpack.c.b16 %v2487, %v2486
    %v3078 = vpack.c.b16 %v2489, %v2488
    %v3079 = vpack.c.b16 %v2491, %v2490
    %v3080 = vpack.c.b16 %v2493, %v2492
    %v3081 = vpack.c.b16 %v2495, %v2494
    %v3082 = vpack.c.b16 %v2497, %v2496
    %v3083 = vpack.c.b16 %v2499, %v2498
    %v3084 = vpack.c.b16 %v2501, %v2500
    %v3085 = vpack.c.b16 %v2503, %v2502
    %v3086 = vpack.c.b16 %v2505, %v2504
    %v3087 = vpack.c.b16 %v2507, %v2506
    %v3088 = vpack.c.b16 %v2509, %v2508
    %v3089 = vpack.c.b16 %v2511, %v2510
    %v3090 = vpack.c.b16 %v2513, %v2512
    %v3091 = vpack.c.b16 %v2515, %v2514
    %v3092 = vpack.c.b16 %v2517, %v2516
    %v3093 = vpack.c.b16 %v2519, %v2518
    %v3094 = vpack.c.b16 %v2521, %v2520
    %v3095 = vpack.c.b16 %v2523, %v2522
    %v3096 = vpack.c.b16 %v2525, %v2524
    %v3097 = vpack.c.b16 %v2527, %v2526
    %v3098 = vpack.c.b16 %v2529, %v2528
    %v3099 = vpack.c.b16 %v2531, %v2530
    %v3100 = vpack.c.b16 %v2533, %v2532
    %v3101 = vpack.c.b16 %v2535, %v2534
    %v3102 = vpack.c.b16 %v2537, %v2536
    %v3103 = vpack.c.b16 %v2539, %v2538
    %v3104 = vpack.c.b16 %v2541, %v2540
    %v3105 = vpack.c.b16 %v2543, %v2542
    %v3106 = vpack.c.b16 %v2545, %v2544
    %v3107 = vpack.c.b16 %v2547, %v2546
    %v3108 = vpack.c.b16 %v2549, %v2548
    %v3109 = vpack.c.b16 %v2551, %v2550
    %v3110 = vpack.c.b16 %v2553, %v2552
    %v3111 = vpack.c.b16 %v2555, %v2554
    %v3112 = vpack.c.b16 %v2557, %v2556
    %v3113 = vpack.c.b16 %v2559, %v2558
    %v3114 = vpack.c.b16 %v2561, %v2560
    %v3115 = vpack.c.b16 %v2563, %v2562
    %v3116 = vpack.c.b16 %v2565, %v2564
    %v3117 = vpack.c.b16 %v2567, %v2566
    %v3118 = vpack.c.b16 %v2569, %v2568
    %v3119 = vpack.c.b16 %v2571, %v2570
    %v3120 = vpack.c.b16 %v2573, %v2572
    %v3121 = vpack.c.b16 %v2575, %v2574
    %v3122 = vpack.c.b16 %v2577, %v2576
    %v3123 = vpack.c.b16 %v2579, %v2578
    %v3124 = vpack.c.b16 %v2581, %v2580
    %v3125 = vpack.c.b16 %v2583, %v2582
    %v3126 = vpack.c.b16 %v2585, %v2584
    %v3127 = vpack.c.b16 %v2587, %v2586
    %v3128 = vpack.c.b16 %v2589, %v2588
    %v3129 = vpack.c.b16 %v2591, %v2590
    %v3130 = vpack.c.b16 %v2593, %v2592
    %v3131 = vpack.c.b16 %v2595, %v2594
    %v3132 = vpack.c.b16 %v2597, %v2596
    %v3133 = vpack.c.b16 %v2599, %v2598
    %v3134 = vpack.c.b16 %v2601, %v2600
    %v3135 = vpack.c.b16 %v2603, %v2602
    %v3136 = vpack.c.b16 %v2605, %v2604
    %v3137 = vpack.c.b16 %v2607, %v2606
    %v3138 = vpack.c.b16 %v2609, %v2608
    %v3139 = vpack.c.b16 %v2611, %v2610
    %v3140 = vpack.c.b16 %v2613, %v2612
    %v3141 = vpack.c.b16 %v2615, %v2614
    %v3142 = vpack.c.b16 %v2617, %v2616
    %v3143 = vpack.c.b16 %v2619, %v2618
    %v3144 = vpack.c.b16 %v2621, %v2620
    %v3145 = vpack.c.b16 %v2623, %v2622
    %v3146 = vpack.c.b16 %v2625, %v2624
    %v3147 = vpack.c.b16 %v2627, %v2626
    %v3148 = vpack.c.b16 %v2629, %v2628
    %v3149 = vpack.c.b16 %v2631, %v2630
    %v3150 = vpack.c.b16 %v2633, %v2632
    %v3151 = vpack.c.b16 %v2635, %v2634
    %v3152 = vpack.c.b16 %v2637, %v2636
    %v3153 = vpack.c.b16 %v2639, %v2638
    %v3154 = vpack.c.b16 %v2641, %v2640
    %v3155 = vpack.c.b16 %v2643, %v2642
    %v3156 = vpack.c.b16 %v2645, %v2644
    %v3157 = vpack.c.b16 %v2647, %v2646
    %v3158 = vpack.c.b16 %v2649, %v2648
    %v3159 = vpack.c.b16 %v2651, %v2650
    %v3160 = vpack.c.b16 %v2653, %v2652
    %v3161 = vpack.c.b16 %v2655, %v2654
    %v3162 = vpack.c.b16 %v2657, %v2656
    %v3163 = vpack.c.b16 %v2659, %v2658
    %v3164 = vpack.c.b16 %v2661, %v2660
    %v3165 = vpack.c.b16 %v2663, %v2662
    %v3166 = vpack.c.b16 %v2665, %v2664
    %v3167 = vpack.c.b16 %v2667, %v2666
    %v3168 = vpack.c.b16 %v2669, %v2668
    %v3169 = vpack.c.b16 %v2671, %v2670
    %v3170 = vpack.c.b16 %v2673, %v2672
    %v3171 = vpack.c.b16 %v2675, %v2674
    %v3172 = vpack.c.b16 %v2677, %v2676
    %v3173 = vpack.c.b16 %v2679, %v2678
    %v3174 = vpack.c.b16 %v2681, %v2680
    %v3175 = vpack.c.b16 %v2683, %v2682
    %v3176 = vpack.c.b16 %v2685, %v2684
    %v3177 = vpack.c.b16 %v2687, %v2686
    %v3178 = vpack.c.b16 %v2689, %v2688
    %v3179 = vpack.c.b16 %v2691, %v2690
    %v3180 = vpack.c.b16 %v2693, %v2692
    %v3181 = vpack.c.b16 %v2695, %v2694
    %v3182 = vpack.c.b16 %v2697, %v2696
    %v3183 = vpack.c.b16 %v2699, %v2698
    %v3184 = vpack.c.b16 %v2701, %v2700
    %v3185 = vpack.c.b16 %v2703, %v2702
    %v3186 = vpack.c.b16 %v2705, %v2704
    %v3187 = vpack.c.b16 %v2707, %v2706
    %v3188 = vpack.c.b16 %v2709, %v2708
    %v3189 = vpack.c.b16 %v2711, %v2710
    %v3190 = vpack.c.b16 %v2713, %v2712
    %v3191 = vpack.c.b16 %v2715, %v2714
    %v3192 = vpack.c.b16 %v2717, %v2716
    %v3193 = vpack.c.b16 %v2719, %v2718
    %v3194 = vpack.c.b16 %v2721, %v2720
    %v3195 = vpack.c.b16 %v2723, %v2722
    %v3196 = vpack.c.b16 %v2725, %v2724
    %v3197 = vpack.c.b16 %v2727, %v2726
    %v3198 = vpack.c.b16 %v2729, %v2728
    %v3199 = vpack.c.b16 %v2731, %v2730
    %v3200 = vpack.c.b16 %v2733, %v2732
    %v3201 = vpack.c.b16 %v2735, %v2734
    %v3202 = vpack.c.b16 %v2737, %v2736
    %v3203 = vpack.c.b16 %v2739, %v2738
    %v3204 = vpack.c.b16 %v2741, %v2740
    %v3205 = vpack.c.b16 %v2743, %v2742
    %v3206 = vpack.c.b16 %v2745, %v2744
    %v3207 = vpack.c.b16 %v2747, %v2746
    %v3208 = vpack.c.b16 %v2749, %v2748
    %v3209 = vpack.c.b16 %v2751, %v2750
    %v3210 = vpack.c.b16 %v2753, %v2752
    %v3211 = vpack.c.b16 %v2755, %v2754
    %v3212 = vpack.c.b16 %v2757, %v2756
    %v3213 = vpack.c.b16 %v2759, %v2758
    %v3214 = vpack.c.b16 %v2761, %v2760
    %v3215 = vpack.c.b16 %v2763, %v2762
    %v3216 = vpack.c.b16 %v2765, %v2764
    %v3217 = vpack.c.b16 %v2767, %v2766
    %v3218 = vpack.c.b16 %v2769, %v2768
    %v3219 = vpack.c.b16 %v2771, %v2770
    %v3220 = vpack.c.b16 %v2773, %v2772
    %v3221 = vpack.c.b16 %v2775, %v2774
    %v3222 = vpack.c.b16 %v2777, %v2776
    %v3223 = vpack.c.b16 %v2779, %v2778
    %v3224 = vpack.c.b16 %v2781, %v2780
    %v3225 = vpack.c.b16 %v2783, %v2782
    %v3226 = vpack.c.b16 %v2785, %v2784
    %v3227 = vpack.c.b16 %v2787, %v2786
    %v3228 = vpack.c.b16 %v2789, %v2788
    %v3229 = vpack.c.b16 %v2791, %v2790
    %v3230 = vpack.c.b16 %v2793, %v2792
    %v3231 = vpack.c.b16 %v2795, %v2794
    %v3232 = vpack.c.b16 %v2797, %v2796
    %v3233 = vpack.c.b16 %v2799, %v2798
    %v3234 = vpack.c.b16 %v2801, %v2800
    %v3235 = vpack.c.b16 %v2803, %v2802
    %v3236 = vpack.c.b16 %v2805, %v2804
    %v3237 = vpack.c.b16 %v2807, %v2806
    %v3238 = vpack.c.b16 %v2809, %v2808
    %v3239 = vpack.c.b16 %v2811, %v2810
    %v3240 = vpack.c.b16 %v2813, %v2812
    %v3241 = vpack.c.b16 %v2815, %v2814
    %v3242 = vpack.c.b16 %v2817, %v2816
    %v3243 = vpack.c.b16 %v2819, %v2818
    %3668 = vmatprep.subr.bf16.mxu0 0
    %3669 = vmatpush1.bf16.msra.mxu0 %v2820
    %3670 = vmatprep.subr.bf16.mxu0 0
    %3671 = vmatpush1.bf16.msra.mxu0 %v2821
    %3672 = vmatprep.subr.bf16.mxu0 0
    %3673 = vmatpush1.bf16.msra.mxu0 %v2822
    %3674 = vmatprep.subr.bf16.mxu0 0
    %3675 = vmatpush1.bf16.msra.mxu0 %v2823
    %3676 = vmatprep.subr.bf16.mxu0 0
    %3677 = vmatpush1.bf16.msra.mxu0 %v2824
    %3678 = vmatprep.subr.bf16.mxu0 0
    %3679 = vmatpush1.bf16.msra.mxu0 %v2825
    %3680 = vmatprep.subr.bf16.mxu0 0
    %3681 = vmatpush1.bf16.msra.mxu0 %v2826
    %3682 = vmatprep.subr.bf16.mxu0 0
    %3683 = vmatpush1.bf16.msra.mxu0 %v2827
    %3684 = vmatprep.subr.bf16.mxu0 0
    %3685 = vmatpush1.bf16.msra.mxu0 %v2828
    %3686 = vmatprep.subr.bf16.mxu0 0
    %3687 = vmatpush1.bf16.msra.mxu0 %v2829
    %3688 = vmatprep.subr.bf16.mxu0 0
    %3689 = vmatpush1.bf16.msra.mxu0 %v2830
    %3690 = vmatprep.subr.bf16.mxu0 0
    %3691 = vmatpush1.bf16.msra.mxu0 %v2831
    %3692 = vmatprep.subr.bf16.mxu0 0
    %3693 = vmatpush1.bf16.msra.mxu0 %v2832
    %3694 = vmatprep.subr.bf16.mxu0 0
    %3695 = vmatpush1.bf16.msra.mxu0 %v2833
    %3696 = vmatprep.subr.bf16.mxu0 0
    %3697 = vmatpush1.bf16.msra.mxu0 %v2834
    %3698 = vmatprep.subr.bf16.mxu0 0
    %3699 = vmatpush1.bf16.msra.mxu0 %v2835
    %3700 = vmatprep.mubr.bf16.mxu0 %v1019
    %3701 = vmatmul.mubr.bf16.gmra.mrb[0].mxu0 %v1018
    %v3702 = vpop.f32.mrb[0].mxu0
    %v3703 = vadd.f32 %v937, %v3702
    %v3704 = vpop.f32.mrb[0].mxu0
    %v3705 = vpop.f32.mrb[0].mxu0
    %v3706 = vpop.f32.mrb[0].mxu0
    %3707 = vdwg.mxu0
    %3708 = vmatprep.subr.bf16.mxu0 0
    %3709 = vmatpush1.bf16.msra.mxu0 %v2836
    %3710 = vmatprep.subr.bf16.mxu0 0
    %3711 = vmatpush1.bf16.msra.mxu0 %v2837
    %3712 = vmatprep.subr.bf16.mxu0 0
    %3713 = vmatpush1.bf16.msra.mxu0 %v2838
    %3714 = vmatprep.subr.bf16.mxu0 0
    %3715 = vmatpush1.bf16.msra.mxu0 %v2839
    %3716 = vmatprep.subr.bf16.mxu0 0
    %3717 = vmatpush1.bf16.msra.mxu0 %v2840
    %3718 = vmatprep.subr.bf16.mxu0 0
    %3719 = vmatpush1.bf16.msra.mxu0 %v2841
    %3720 = vmatprep.subr.bf16.mxu0 0
    %3721 = vmatpush1.bf16.msra.mxu0 %v2842
    %3722 = vmatprep.subr.bf16.mxu0 0
    %3723 = vmatpush1.bf16.msra.mxu0 %v2843
    %3724 = vmatprep.subr.bf16.mxu0 0
    %3725 = vmatpush1.bf16.msra.mxu0 %v2844
    %3726 = vmatprep.subr.bf16.mxu0 0
    %3727 = vmatpush1.bf16.msra.mxu0 %v2845
    %3728 = vmatprep.subr.bf16.mxu0 0
    %3729 = vmatpush1.bf16.msra.mxu0 %v2846
    %3730 = vmatprep.subr.bf16.mxu0 0
    %3731 = vmatpush1.bf16.msra.mxu0 %v2847
    %3732 = vmatprep.subr.bf16.mxu0 0
    %3733 = vmatpush1.bf16.msra.mxu0 %v2848
    %3734 = vmatprep.subr.bf16.mxu0 0
    %3735 = vmatpush1.bf16.msra.mxu0 %v2849
    %3736 = vmatprep.subr.bf16.mxu0 0
    %3737 = vmatpush1.bf16.msra.mxu0 %v2850
    %3738 = vmatprep.subr.bf16.mxu0 0
    %3739 = vmatpush1.bf16.msra.mxu0 %v2851
    %3740 = vmatprep.mubr.bf16.mxu0 %v1021
    %3741 = vmatmul.mubr.bf16.gmra.mrb[0].mxu0 %v1020
    %v3742 = vpop.f32.mrb[0].mxu0
    %v3743 = vadd.f32 %v3703, %v3742
    %v3744 = vpop.f32.mrb[0].mxu0
    %v3745 = vpop.f32.mrb[0].mxu0
    %v3746 = vpop.f32.mrb[0].mxu0
    %3747 = vdwg.mxu0
    %3748 = vmatprep.subr.bf16.mxu0 0
    %3749 = vmatpush1.bf16.msra.mxu0 %v2852
    %3750 = vmatprep.subr.bf16.mxu0 0
    %3751 = vmatpush1.bf16.msra.mxu0 %v2853
    %3752 = vmatprep.subr.bf16.mxu0 0
    %3753 = vmatpush1.bf16.msra.mxu0 %v2854
    %3754 = vmatprep.subr.bf16.mxu0 0
    %3755 = vmatpush1.bf16.msra.mxu0 %v2855
    %3756 = vmatprep.subr.bf16.mxu0 0
    %3757 = vmatpush1.bf16.msra.mxu0 %v2856
    %3758 = vmatprep.subr.bf16.mxu0 0
    %3759 = vmatpush1.bf16.msra.mxu0 %v2857
    %3760 = vmatprep.subr.bf16.mxu0 0
    %3761 = vmatpush1.bf16.msra.mxu0 %v2858
    %3762 = vmatprep.subr.bf16.mxu0 0
    %3763 = vmatpush1.bf16.msra.mxu0 %v2859
    %3764 = vmatprep.subr.bf16.mxu0 0
    %3765 = vmatpush1.bf16.msra.mxu0 %v2860
    %3766 = vmatprep.subr.bf16.mxu0 0
    %3767 = vmatpush1.bf16.msra.mxu0 %v2861
    %3768 = vmatprep.subr.bf16.mxu0 0
    %3769 = vmatpush1.bf16.msra.mxu0 %v2862
    %3770 = vmatprep.subr.bf16.mxu0 0
    %3771 = vmatpush1.bf16.msra.mxu0 %v2863
    %3772 = vmatprep.subr.bf16.mxu0 0
    %3773 = vmatpush1.bf16.msra.mxu0 %v2864
    %3774 = vmatprep.subr.bf16.mxu0 0
    %3775 = vmatpush1.bf16.msra.mxu0 %v2865
    %3776 = vmatprep.subr.bf16.mxu0 0
    %3777 = vmatpush1.bf16.msra.mxu0 %v2866
    %3778 = vmatprep.subr.bf16.mxu0 0
    %3779 = vmatpush1.bf16.msra.mxu0 %v2867
    %3780 = vmatprep.mubr.bf16.mxu0 %v1023
    %3781 = vmatmul.mubr.bf16.gmra.mrb[0].mxu0 %v1022
    %v3782 = vpop.f32.mrb[0].mxu0
    %v3783 = vadd.f32 %v3743, %v3782
    %v3784 = vpop.f32.mrb[0].mxu0
    %v3785 = vpop.f32.mrb[0].mxu0
    %v3786 = vpop.f32.mrb[0].mxu0
    %3787 = vdwg.mxu0
    %3788 = vmatprep.subr.bf16.mxu0 0
    %3789 = vmatpush1.bf16.msra.mxu0 %v2868
    %3790 = vmatprep.subr.bf16.mxu0 0
    %3791 = vmatpush1.bf16.msra.mxu0 %v2869
    %3792 = vmatprep.subr.bf16.mxu0 0
    %3793 = vmatpush1.bf16.msra.mxu0 %v2870
    %3794 = vmatprep.subr.bf16.mxu0 0
    %3795 = vmatpush1.bf16.msra.mxu0 %v2871
    %3796 = vmatprep.subr.bf16.mxu0 0
    %3797 = vmatpush1.bf16.msra.mxu0 %v2872
    %3798 = vmatprep.subr.bf16.mxu0 0
    %3799 = vmatpush1.bf16.msra.mxu0 %v2873
    %3800 = vmatprep.subr.bf16.mxu0 0
    %3801 = vmatpush1.bf16.msra.mxu0 %v2874
    %3802 = vmatprep.subr.bf16.mxu0 0
    %3803 = vmatpush1.bf16.msra.mxu0 %v2875
    %3804 = vmatprep.subr.bf16.mxu0 0
    %3805 = vmatpush1.bf16.msra.mxu0 %v2876
    %3806 = vmatprep.subr.bf16.mxu0 0
    %3807 = vmatpush1.bf16.msra.mxu0 %v2877
    %3808 = vmatprep.subr.bf16.mxu0 0
    %3809 = vmatpush1.bf16.msra.mxu0 %v2878
    %3810 = vmatprep.subr.bf16.mxu0 0
    %3811 = vmatpush1.bf16.msra.mxu0 %v2879
    %3812 = vmatprep.subr.bf16.mxu0 0
    %3813 = vmatpush1.bf16.msra.mxu0 %v2880
    %3814 = vmatprep.subr.bf16.mxu0 0
    %3815 = vmatpush1.bf16.msra.mxu0 %v2881
    %3816 = vmatprep.subr.bf16.mxu0 0
    %3817 = vmatpush1.bf16.msra.mxu0 %v2882
    %3818 = vmatprep.subr.bf16.mxu0 0
    %3819 = vmatpush1.bf16.msra.mxu0 %v2883
    %3820 = vmatprep.mubr.bf16.mxu0 %v1025
    %3821 = vmatmul.mubr.bf16.gmra.mrb[0].mxu0 %v1024
    %v3822 = vpop.f32.mrb[0].mxu0
    %v3823 = vadd.f32 %v3783, %v3822
    %v3824 = vpop.f32.mrb[0].mxu0
    %v3825 = vpop.f32.mrb[0].mxu0
    %v3826 = vpop.f32.mrb[0].mxu0
    %3827 = vdwg.mxu0
    %3828 = vmatprep.subr.bf16.mxu0 0
    %3829 = vmatpush1.bf16.msra.mxu0 %v2884
    %3830 = vmatprep.subr.bf16.mxu0 0
    %3831 = vmatpush1.bf16.msra.mxu0 %v2885
    %3832 = vmatprep.subr.bf16.mxu0 0
    %3833 = vmatpush1.bf16.msra.mxu0 %v2886
    %3834 = vmatprep.subr.bf16.mxu0 0
    %3835 = vmatpush1.bf16.msra.mxu0 %v2887
    %3836 = vmatprep.subr.bf16.mxu0 0
    %3837 = vmatpush1.bf16.msra.mxu0 %v2888
    %3838 = vmatprep.subr.bf16.mxu0 0
    %3839 = vmatpush1.bf16.msra.mxu0 %v2889
    %3840 = vmatprep.subr.bf16.mxu0 0
    %3841 = vmatpush1.bf16.msra.mxu0 %v2890
    %3842 = vmatprep.subr.bf16.mxu0 0
    %3843 = vmatpush1.bf16.msra.mxu0 %v2891
    %3844 = vmatprep.subr.bf16.mxu0 0
    %3845 = vmatpush1.bf16.msra.mxu0 %v2892
    %3846 = vmatprep.subr.bf16.mxu0 0
    %3847 = vmatpush1.bf16.msra.mxu0 %v2893
    %3848 = vmatprep.subr.bf16.mxu0 0
    %3849 = vmatpush1.bf16.msra.mxu0 %v2894
    %3850 = vmatprep.subr.bf16.mxu0 0
    %3851 = vmatpush1.bf16.msra.mxu0 %v2895
    %3852 = vmatprep.subr.bf16.mxu0 0
    %3853 = vmatpush1.bf16.msra.mxu0 %v2896
    %3854 = vmatprep.subr.bf16.mxu0 0
    %3855 = vmatpush1.bf16.msra.mxu0 %v2897
    %3856 = vmatprep.subr.bf16.mxu0 0
    %3857 = vmatpush1.bf16.msra.mxu0 %v2898
    %3858 = vmatprep.subr.bf16.mxu0 0
    %3859 = vmatpush1.bf16.msra.mxu0 %v2899
    %3860 = vmatprep.mubr.bf16.mxu0 %v1027
    %3861 = vmatmul.mubr.bf16.gmra.mrb[0].mxu0 %v1026
    %v3862 = vpop.f32.mrb[0].mxu0
    %v3863 = vadd.f32 %v3823, %v3862
    %v3864 = vpop.f32.mrb[0].mxu0
    %v3865 = vpop.f32.mrb[0].mxu0
    %v3866 = vpop.f32.mrb[0].mxu0
    %3867 = vdwg.mxu0
    %3868 = vmatprep.subr.bf16.mxu0 0
    %3869 = vmatpush1.bf16.msra.mxu0 %v2900
    %3870 = vmatprep.subr.bf16.mxu0 0
    %3871 = vmatpush1.bf16.msra.mxu0 %v2901
    %3872 = vmatprep.subr.bf16.mxu0 0
    %3873 = vmatpush1.bf16.msra.mxu0 %v2902
    %3874 = vmatprep.subr.bf16.mxu0 0
    %3875 = vmatpush1.bf16.msra.mxu0 %v2903
    %3876 = vmatprep.subr.bf16.mxu0 0
    %3877 = vmatpush1.bf16.msra.mxu0 %v2904
    %3878 = vmatprep.subr.bf16.mxu0 0
    %3879 = vmatpush1.bf16.msra.mxu0 %v2905
    %3880 = vmatprep.subr.bf16.mxu0 0
    %3881 = vmatpush1.bf16.msra.mxu0 %v2906
    %3882 = vmatprep.subr.bf16.mxu0 0
    %3883 = vmatpush1.bf16.msra.mxu0 %v2907
    %3884 = vmatprep.subr.bf16.mxu0 0
    %3885 = vmatpush1.bf16.msra.mxu0 %v2908
    %3886 = vmatprep.subr.bf16.mxu0 0
    %3887 = vmatpush1.bf16.msra.mxu0 %v2909
    %3888 = vmatprep.subr.bf16.mxu0 0
    %3889 = vmatpush1.bf16.msra.mxu0 %v2910
    %3890 = vmatprep.subr.bf16.mxu0 0
    %3891 = vmatpush1.bf16.msra.mxu0 %v2911
    %3892 = vmatprep.subr.bf16.mxu0 0
    %3893 = vmatpush1.bf16.msra.mxu0 %v2912
    %3894 = vmatprep.subr.bf16.mxu0 0
    %3895 = vmatpush1.bf16.msra.mxu0 %v2913
    %3896 = vmatprep.subr.bf16.mxu0 0
    %3897 = vmatpush1.bf16.msra.mxu0 %v2914
    %3898 = vmatprep.subr.bf16.mxu0 0
    %3899 = vmatpush1.bf16.msra.mxu0 %v2915
    %3900 = vmatprep.mubr.bf16.mxu0 %v1029
    %3901 = vmatmul.mubr.bf16.gmra.mrb[0].mxu0 %v1028
    %v3902 = vpop.f32.mrb[0].mxu0
    %v3903 = vadd.f32 %v3863, %v3902
    %v3904 = vpop.f32.mrb[0].mxu0
    %v3905 = vpop.f32.mrb[0].mxu0
    %v3906 = vpop.f32.mrb[0].mxu0
    %3907 = vdwg.mxu0
    %3908 = vmatprep.subr.bf16.mxu0 0
    %3909 = vmatpush1.bf16.msra.mxu0 %v2916
    %3910 = vmatprep.subr.bf16.mxu0 0
    %3911 = vmatpush1.bf16.msra.mxu0 %v2917
    %3912 = vmatprep.subr.bf16.mxu0 0
    %3913 = vmatpush1.bf16.msra.mxu0 %v2918
    %3914 = vmatprep.subr.bf16.mxu0 0
    %3915 = vmatpush1.bf16.msra.mxu0 %v2919
    %3916 = vmatprep.subr.bf16.mxu0 0
    %3917 = vmatpush1.bf16.msra.mxu0 %v2920
    %3918 = vmatprep.subr.bf16.mxu0 0
    %3919 = vmatpush1.bf16.msra.mxu0 %v2921
    %3920 = vmatprep.subr.bf16.mxu0 0
    %3921 = vmatpush1.bf16.msra.mxu0 %v2922
    %3922 = vmatprep.subr.bf16.mxu0 0
    %3923 = vmatpush1.bf16.msra.mxu0 %v2923
    %3924 = vmatprep.subr.bf16.mxu0 0
    %3925 = vmatpush1.bf16.msra.mxu0 %v2924
    %3926 = vmatprep.subr.bf16.mxu0 0
    %3927 = vmatpush1.bf16.msra.mxu0 %v2925
    %3928 = vmatprep.subr.bf16.mxu0 0
    %3929 = vmatpush1.bf16.msra.mxu0 %v2926
    %3930 = vmatprep.subr.bf16.mxu0 0
    %3931 = vmatpush1.bf16.msra.mxu0 %v2927
    %3932 = vmatprep.subr.bf16.mxu0 0
    %3933 = vmatpush1.bf16.msra.mxu0 %v2928
    %3934 = vmatprep.subr.bf16.mxu0 0
    %3935 = vmatpush1.bf16.msra.mxu0 %v2929
    %3936 = vmatprep.subr.bf16.mxu0 0
    %3937 = vmatpush1.bf16.msra.mxu0 %v2930
    %3938 = vmatprep.subr.bf16.mxu0 0
    %3939 = vmatpush1.bf16.msra.mxu0 %v2931
    %3940 = vmatprep.mubr.bf16.mxu0 %v1031
    %3941 = vmatmul.mubr.bf16.gmra.mrb[0].mxu0 %v1030
    %v3942 = vpop.f32.mrb[0].mxu0
    %v3943 = vadd.f32 %v3903, %v3942
    %v3944 = vpop.f32.mrb[0].mxu0
    %v3945 = vpop.f32.mrb[0].mxu0
    %v3946 = vpop.f32.mrb[0].mxu0
    %3947 = vdwg.mxu0
    %3948 = vmatprep.subr.bf16.mxu0 0
    %3949 = vmatpush1.bf16.msra.mxu0 %v2932
    %3950 = vmatprep.subr.bf16.mxu0 0
    %3951 = vmatpush1.bf16.msra.mxu0 %v2933
    %3952 = vmatprep.subr.bf16.mxu0 0
    %3953 = vmatpush1.bf16.msra.mxu0 %v2934
    %3954 = vmatprep.subr.bf16.mxu0 0
    %3955 = vmatpush1.bf16.msra.mxu0 %v2935
    %3956 = vmatprep.subr.bf16.mxu0 0
    %3957 = vmatpush1.bf16.msra.mxu0 %v2936
    %3958 = vmatprep.subr.bf16.mxu0 0
    %3959 = vmatpush1.bf16.msra.mxu0 %v2937
    %3960 = vmatprep.subr.bf16.mxu0 0
    %3961 = vmatpush1.bf16.msra.mxu0 %v2938
    %3962 = vmatprep.subr.bf16.mxu0 0
    %3963 = vmatpush1.bf16.msra.mxu0 %v2939
    %3964 = vmatprep.subr.bf16.mxu0 0
    %3965 = vmatpush1.bf16.msra.mxu0 %v2940
    %3966 = vmatprep.subr.bf16.mxu0 0
    %3967 = vmatpush1.bf16.msra.mxu0 %v2941
    %3968 = vmatprep.subr.bf16.mxu0 0
    %3969 = vmatpush1.bf16.msra.mxu0 %v2942
    %3970 = vmatprep.subr.bf16.mxu0 0
    %3971 = vmatpush1.bf16.msra.mxu0 %v2943
    %3972 = vmatprep.subr.bf16.mxu0 0
    %3973 = vmatpush1.bf16.msra.mxu0 %v2944
    %3974 = vmatprep.subr.bf16.mxu0 0
    %3975 = vmatpush1.bf16.msra.mxu0 %v2945
    %3976 = vmatprep.subr.bf16.mxu0 0
    %3977 = vmatpush1.bf16.msra.mxu0 %v2946
    %3978 = vmatprep.subr.bf16.mxu0 0
    %3979 = vmatpush1.bf16.msra.mxu0 %v2947
    %3980 = vmatprep.mubr.bf16.mxu0 %v1033
    %3981 = vmatmul.mubr.bf16.gmra.mrb[0].mxu0 %v1032
    %v3982 = vpop.f32.mrb[0].mxu0
    %v3983 = vadd.f32 %v3943, %v3982
    %v3984 = vpop.f32.mrb[0].mxu0
    %v3985 = vpop.f32.mrb[0].mxu0
    %v3986 = vpop.f32.mrb[0].mxu0
    %3987 = vdwg.mxu0
    %3988 = vmatprep.subr.bf16.mxu0 0
    %3989 = vmatpush1.bf16.msra.mxu0 %v2948
    %3990 = vmatprep.subr.bf16.mxu0 0
    %3991 = vmatpush1.bf16.msra.mxu0 %v2949
    %3992 = vmatprep.subr.bf16.mxu0 0
    %3993 = vmatpush1.bf16.msra.mxu0 %v2950
    %3994 = vmatprep.subr.bf16.mxu0 0
    %3995 = vmatpush1.bf16.msra.mxu0 %v2951
    %3996 = vmatprep.subr.bf16.mxu0 0
    %3997 = vmatpush1.bf16.msra.mxu0 %v2952
    %3998 = vmatprep.subr.bf16.mxu0 0
    %3999 = vmatpush1.bf16.msra.mxu0 %v2953
    %4000 = vmatprep.subr.bf16.mxu0 0
    %4001 = vmatpush1.bf16.msra.mxu0 %v2954
    %4002 = vmatprep.subr.bf16.mxu0 0
    %4003 = vmatpush1.bf16.msra.mxu0 %v2955
    %4004 = vmatprep.subr.bf16.mxu0 0
    %4005 = vmatpush1.bf16.msra.mxu0 %v2956
    %4006 = vmatprep.subr.bf16.mxu0 0
    %4007 = vmatpush1.bf16.msra.mxu0 %v2957
    %4008 = vmatprep.subr.bf16.mxu0 0
    %4009 = vmatpush1.bf16.msra.mxu0 %v2958
    %4010 = vmatprep.subr.bf16.mxu0 0
    %4011 = vmatpush1.bf16.msra.mxu0 %v2959
    %4012 = vmatprep.subr.bf16.mxu0 0
    %4013 = vmatpush1.bf16.msra.mxu0 %v2960
    %4014 = vmatprep.subr.bf16.mxu0 0
    %4015 = vmatpush1.bf16.msra.mxu0 %v2961
    %4016 = vmatprep.subr.bf16.mxu0 0
    %4017 = vmatpush1.bf16.msra.mxu0 %v2962
    %4018 = vmatprep.subr.bf16.mxu0 0
    %4019 = vmatpush1.bf16.msra.mxu0 %v2963
    %4020 = vmatprep.mubr.bf16.mxu0 %v1035
    %4021 = vmatmul.mubr.bf16.gmra.mrb[0].mxu0 %v1034
    %v4022 = vpop.f32.mrb[0].mxu0
    %v4023 = vadd.f32 %v3983, %v4022
    %v4024 = vpop.f32.mrb[0].mxu0
    %v4025 = vpop.f32.mrb[0].mxu0
    %v4026 = vpop.f32.mrb[0].mxu0
    %4027 = vdwg.mxu0
    %4028 = vmatprep.subr.bf16.mxu0 0
    %4029 = vmatpush1.bf16.msra.mxu0 %v2964
    %4030 = vmatprep.subr.bf16.mxu0 0
    %4031 = vmatpush1.bf16.msra.mxu0 %v2965
    %4032 = vmatprep.subr.bf16.mxu0 0
    %4033 = vmatpush1.bf16.msra.mxu0 %v2966
    %4034 = vmatprep.subr.bf16.mxu0 0
    %4035 = vmatpush1.bf16.msra.mxu0 %v2967
    %4036 = vmatprep.subr.bf16.mxu0 0
    %4037 = vmatpush1.bf16.msra.mxu0 %v2968
    %4038 = vmatprep.subr.bf16.mxu0 0
    %4039 = vmatpush1.bf16.msra.mxu0 %v2969
    %4040 = vmatprep.subr.bf16.mxu0 0
    %4041 = vmatpush1.bf16.msra.mxu0 %v2970
    %4042 = vmatprep.subr.bf16.mxu0 0
    %4043 = vmatpush1.bf16.msra.mxu0 %v2971
    %4044 = vmatprep.subr.bf16.mxu0 0
    %4045 = vmatpush1.bf16.msra.mxu0 %v2972
    %4046 = vmatprep.subr.bf16.mxu0 0
    %4047 = vmatpush1.bf16.msra.mxu0 %v2973
    %4048 = vmatprep.subr.bf16.mxu0 0
    %4049 = vmatpush1.bf16.msra.mxu0 %v2974
    %4050 = vmatprep.subr.bf16.mxu0 0
    %4051 = vmatpush1.bf16.msra.mxu0 %v2975
    %4052 = vmatprep.subr.bf16.mxu0 0
    %4053 = vmatpush1.bf16.msra.mxu0 %v2976
    %4054 = vmatprep.subr.bf16.mxu0 0
    %4055 = vmatpush1.bf16.msra.mxu0 %v2977
    %4056 = vmatprep.subr.bf16.mxu0 0
    %4057 = vmatpush1.bf16.msra.mxu0 %v2978
    %4058 = vmatprep.subr.bf16.mxu0 0
    %4059 = vmatpush1.bf16.msra.mxu0 %v2979
    %4060 = vmatprep.mubr.bf16.mxu0 %v1037
    %4061 = vmatmul.mubr.bf16.gmra.mrb[0].mxu0 %v1036
    %v4062 = vpop.f32.mrb[0].mxu0
    %v4063 = vadd.f32 %v4023, %v4062
    %v4064 = vpop.f32.mrb[0].mxu0
    %v4065 = vpop.f32.mrb[0].mxu0
    %v4066 = vpop.f32.mrb[0].mxu0
    %4067 = vdwg.mxu0
    %4068 = vmatprep.subr.bf16.mxu0 0
    %4069 = vmatpush1.bf16.msra.mxu0 %v2980
    %4070 = vmatprep.subr.bf16.mxu0 0
    %4071 = vmatpush1.bf16.msra.mxu0 %v2981
    %4072 = vmatprep.subr.bf16.mxu0 0
    %4073 = vmatpush1.bf16.msra.mxu0 %v2982
    %4074 = vmatprep.subr.bf16.mxu0 0
    %4075 = vmatpush1.bf16.msra.mxu0 %v2983
    %4076 = vmatprep.subr.bf16.mxu0 0
    %4077 = vmatpush1.bf16.msra.mxu0 %v2984
    %4078 = vmatprep.subr.bf16.mxu0 0
    %4079 = vmatpush1.bf16.msra.mxu0 %v2985
    %4080 = vmatprep.subr.bf16.mxu0 0
    %4081 = vmatpush1.bf16.msra.mxu0 %v2986
    %4082 = vmatprep.subr.bf16.mxu0 0
    %4083 = vmatpush1.bf16.msra.mxu0 %v2987
    %4084 = vmatprep.subr.bf16.mxu0 0
    %4085 = vmatpush1.bf16.msra.mxu0 %v2988
    %4086 = vmatprep.subr.bf16.mxu0 0
    %4087 = vmatpush1.bf16.msra.mxu0 %v2989
    %4088 = vmatprep.subr.bf16.mxu0 0
    %4089 = vmatpush1.bf16.msra.mxu0 %v2990
    %4090 = vmatprep.subr.bf16.mxu0 0
    %4091 = vmatpush1.bf16.msra.mxu0 %v2991
    %4092 = vmatprep.subr.bf16.mxu0 0
    %4093 = vmatpush1.bf16.msra.mxu0 %v2992
    %4094 = vmatprep.subr.bf16.mxu0 0
    %4095 = vmatpush1.bf16.msra.mxu0 %v2993
    %4096 = vmatprep.subr.bf16.mxu0 0
    %4097 = vmatpush1.bf16.msra.mxu0 %v2994
    %4098 = vmatprep.subr.bf16.mxu0 0
    %4099 = vmatpush1.bf16.msra.mxu0 %v2995
    %4100 = vmatprep.mubr.bf16.mxu0 %v1039
    %4101 = vmatmul.mubr.bf16.gmra.mrb[0].mxu0 %v1038
    %v4102 = vpop.f32.mrb[0].mxu0
    %v4103 = vadd.f32 %v4063, %v4102
    %v4104 = vpop.f32.mrb[0].mxu0
    %v4105 = vpop.f32.mrb[0].mxu0
    %v4106 = vpop.f32.mrb[0].mxu0
    %4107 = vdwg.mxu0
    %4108 = vmatprep.subr.bf16.mxu0 0
    %4109 = vmatpush1.bf16.msra.mxu0 %v2996
    %4110 = vmatprep.subr.bf16.mxu0 0
    %4111 = vmatpush1.bf16.msra.mxu0 %v2997
    %4112 = vmatprep.subr.bf16.mxu0 0
    %4113 = vmatpush1.bf16.msra.mxu0 %v2998
    %4114 = vmatprep.subr.bf16.mxu0 0
    %4115 = vmatpush1.bf16.msra.mxu0 %v2999
    %4116 = vmatprep.subr.bf16.mxu0 0
    %4117 = vmatpush1.bf16.msra.mxu0 %v3000
    %4118 = vmatprep.subr.bf16.mxu0 0
    %4119 = vmatpush1.bf16.msra.mxu0 %v3001
    %4120 = vmatprep.subr.bf16.mxu0 0
    %4121 = vmatpush1.bf16.msra.mxu0 %v3002
    %4122 = vmatprep.subr.bf16.mxu0 0
    %4123 = vmatpush1.bf16.msra.mxu0 %v3003
    %4124 = vmatprep.subr.bf16.mxu0 0
    %4125 = vmatpush1.bf16.msra.mxu0 %v3004
    %4126 = vmatprep.subr.bf16.mxu0 0
    %4127 = vmatpush1.bf16.msra.mxu0 %v3005
    %4128 = vmatprep.subr.bf16.mxu0 0
    %4129 = vmatpush1.bf16.msra.mxu0 %v3006
    %4130 = vmatprep.subr.bf16.mxu0 0
    %4131 = vmatpush1.bf16.msra.mxu0 %v3007
    %4132 = vmatprep.subr.bf16.mxu0 0
    %4133 = vmatpush1.bf16.msra.mxu0 %v3008
    %4134 = vmatprep.subr.bf16.mxu0 0
    %4135 = vmatpush1.bf16.msra.mxu0 %v3009
    %4136 = vmatprep.subr.bf16.mxu0 0
    %4137 = vmatpush1.bf16.msra.mxu0 %v3010
    %4138 = vmatprep.subr.bf16.mxu0 0
    %4139 = vmatpush1.bf16.msra.mxu0 %v3011
    %4140 = vmatprep.mubr.bf16.mxu0 %v1041
    %4141 = vmatmul.mubr.bf16.gmra.mrb[0].mxu0 %v1040
    %v4142 = vpop.f32.mrb[0].mxu0
    %v4143 = vadd.f32 %v4103, %v4142
    %v4144 = vpop.f32.mrb[0].mxu0
    %v4145 = vpop.f32.mrb[0].mxu0
    %v4146 = vpop.f32.mrb[0].mxu0
    %4147 = vdwg.mxu0
    %4148 = vmatprep.subr.bf16.mxu0 0
    %4149 = vmatpush1.bf16.msra.mxu0 %v3012
    %4150 = vmatprep.subr.bf16.mxu0 0
    %4151 = vmatpush1.bf16.msra.mxu0 %v3013
    %4152 = vmatprep.subr.bf16.mxu0 0
    %4153 = vmatpush1.bf16.msra.mxu0 %v3014
    %4154 = vmatprep.subr.bf16.mxu0 0
    %4155 = vmatpush1.bf16.msra.mxu0 %v3015
    %4156 = vmatprep.subr.bf16.mxu0 0
    %4157 = vmatpush1.bf16.msra.mxu0 %v3016
    %4158 = vmatprep.subr.bf16.mxu0 0
    %4159 = vmatpush1.bf16.msra.mxu0 %v3017
    %4160 = vmatprep.subr.bf16.mxu0 0
    %4161 = vmatpush1.bf16.msra.mxu0 %v3018
    %4162 = vmatprep.subr.bf16.mxu0 0
    %4163 = vmatpush1.bf16.msra.mxu0 %v3019
    %4164 = vmatprep.subr.bf16.mxu0 0
    %4165 = vmatpush1.bf16.msra.mxu0 %v3020
    %4166 = vmatprep.subr.bf16.mxu0 0
    %4167 = vmatpush1.bf16.msra.mxu0 %v3021
    %4168 = vmatprep.subr.bf16.mxu0 0
    %4169 = vmatpush1.bf16.msra.mxu0 %v3022
    %4170 = vmatprep.subr.bf16.mxu0 0
    %4171 = vmatpush1.bf16.msra.mxu0 %v3023
    %4172 = vmatprep.subr.bf16.mxu0 0
    %4173 = vmatpush1.bf16.msra.mxu0 %v3024
    %4174 = vmatprep.subr.bf16.mxu0 0
    %4175 = vmatpush1.bf16.msra.mxu0 %v3025
    %4176 = vmatprep.subr.bf16.mxu0 0
    %4177 = vmatpush1.bf16.msra.mxu0 %v3026
    %4178 = vmatprep.subr.bf16.mxu0 0
    %4179 = vmatpush1.bf16.msra.mxu0 %v3027
    %4180 = vmatprep.mubr.bf16.mxu0 %v1043
    %4181 = vmatmul.mubr.bf16.gmra.mrb[0].mxu0 %v1042
    %v4182 = vpop.f32.mrb[0].mxu0
    %v4183 = vadd.f32 %v4143, %v4182
    %v4184 = vpop.f32.mrb[0].mxu0
    %v4185 = vpop.f32.mrb[0].mxu0
    %v4186 = vpop.f32.mrb[0].mxu0
    %4187 = vdwg.mxu0
    %4188 = vmatprep.subr.bf16.mxu0 0
    %4189 = vmatpush1.bf16.msra.mxu0 %v3028
    %4190 = vmatprep.subr.bf16.mxu0 0
    %4191 = vmatpush1.bf16.msra.mxu0 %v3029
    %4192 = vmatprep.subr.bf16.mxu0 0
    %4193 = vmatpush1.bf16.msra.mxu0 %v3030
    %4194 = vmatprep.subr.bf16.mxu0 0
    %4195 = vmatpush1.bf16.msra.mxu0 %v3031
    %4196 = vmatprep.subr.bf16.mxu0 0
    %4197 = vmatpush1.bf16.msra.mxu0 %v3032
    %4198 = vmatprep.subr.bf16.mxu0 0
    %4199 = vmatpush1.bf16.msra.mxu0 %v3033
    %4200 = vmatprep.subr.bf16.mxu0 0
    %4201 = vmatpush1.bf16.msra.mxu0 %v3034
    %4202 = vmatprep.subr.bf16.mxu0 0
    %4203 = vmatpush1.bf16.msra.mxu0 %v3035
    %4204 = vmatprep.subr.bf16.mxu0 0
    %4205 = vmatpush1.bf16.msra.mxu0 %v3036
    %4206 = vmatprep.subr.bf16.mxu0 0
    %4207 = vmatpush1.bf16.msra.mxu0 %v3037
    %4208 = vmatprep.subr.bf16.mxu0 0
    %4209 = vmatpush1.bf16.msra.mxu0 %v3038
    %4210 = vmatprep.subr.bf16.mxu0 0
    %4211 = vmatpush1.bf16.msra.mxu0 %v3039
    %4212 = vmatprep.subr.bf16.mxu0 0
    %4213 = vmatpush1.bf16.msra.mxu0 %v3040
    %4214 = vmatprep.subr.bf16.mxu0 0
    %4215 = vmatpush1.bf16.msra.mxu0 %v3041
    %4216 = vmatprep.subr.bf16.mxu0 0
    %4217 = vmatpush1.bf16.msra.mxu0 %v3042
    %4218 = vmatprep.subr.bf16.mxu0 0
    %4219 = vmatpush1.bf16.msra.mxu0 %v3043
    %4220 = vmatprep.mubr.bf16.mxu0 %v1045
    %4221 = vmatmul.mubr.bf16.gmra.mrb[0].mxu0 %v1044
    %v4222 = vpop.f32.mrb[0].mxu0
    %v4223 = vadd.f32 %v4183, %v4222
    %v4224 = vpop.f32.mrb[0].mxu0
    %v4225 = vpop.f32.mrb[0].mxu0
    %v4226 = vpop.f32.mrb[0].mxu0
    %4227 = vdwg.mxu0
    %4228 = vmatprep.subr.bf16.mxu0 0
    %4229 = vmatpush1.bf16.msra.mxu0 %v3044
    %4230 = vmatprep.subr.bf16.mxu0 0
    %4231 = vmatpush1.bf16.msra.mxu0 %v3045
    %4232 = vmatprep.subr.bf16.mxu0 0
    %4233 = vmatpush1.bf16.msra.mxu0 %v3046
    %4234 = vmatprep.subr.bf16.mxu0 0
    %4235 = vmatpush1.bf16.msra.mxu0 %v3047
    %4236 = vmatprep.subr.bf16.mxu0 0
    %4237 = vmatpush1.bf16.msra.mxu0 %v3048
    %4238 = vmatprep.subr.bf16.mxu0 0
    %4239 = vmatpush1.bf16.msra.mxu0 %v3049
    %4240 = vmatprep.subr.bf16.mxu0 0
    %4241 = vmatpush1.bf16.msra.mxu0 %v3050
    %4242 = vmatprep.subr.bf16.mxu0 0
    %4243 = vmatpush1.bf16.msra.mxu0 %v3051
    %4244 = vmatprep.subr.bf16.mxu0 0
    %4245 = vmatpush1.bf16.msra.mxu0 %v3052
    %4246 = vmatprep.subr.bf16.mxu0 0
    %4247 = vmatpush1.bf16.msra.mxu0 %v3053
    %4248 = vmatprep.subr.bf16.mxu0 0
    %4249 = vmatpush1.bf16.msra.mxu0 %v3054
    %4250 = vmatprep.subr.bf16.mxu0 0
    %4251 = vmatpush1.bf16.msra.mxu0 %v3055
    %4252 = vmatprep.subr.bf16.mxu0 0
    %4253 = vmatpush1.bf16.msra.mxu0 %v3056
    %4254 = vmatprep.subr.bf16.mxu0 0
    %4255 = vmatpush1.bf16.msra.mxu0 %v3057
    %4256 = vmatprep.subr.bf16.mxu0 0
    %4257 = vmatpush1.bf16.msra.mxu0 %v3058
    %4258 = vmatprep.subr.bf16.mxu0 0
    %4259 = vmatpush1.bf16.msra.mxu0 %v3059
    %4260 = vmatprep.mubr.bf16.mxu0 %v1047
    %4261 = vmatmul.mubr.bf16.gmra.mrb[0].mxu0 %v1046
    %v4262 = vpop.f32.mrb[0].mxu0
    %v4263 = vadd.f32 %v4223, %v4262
    %v4264 = vpop.f32.mrb[0].mxu0
    %v4265 = vpop.f32.mrb[0].mxu0
    %v4266 = vpop.f32.mrb[0].mxu0
    %4267 = vdwg.mxu0
    %4268 = vmatprep.subr.bf16.mxu0 0
    %4269 = vmatpush1.bf16.msra.mxu0 %v3060
    %4270 = vmatprep.subr.bf16.mxu0 0
    %4271 = vmatpush1.bf16.msra.mxu0 %v3061
    %4272 = vmatprep.subr.bf16.mxu0 0
    %4273 = vmatpush1.bf16.msra.mxu0 %v3062
    %4274 = vmatprep.subr.bf16.mxu0 0
    %4275 = vmatpush1.bf16.msra.mxu0 %v3063
    %4276 = vmatprep.subr.bf16.mxu0 0
    %4277 = vmatpush1.bf16.msra.mxu0 %v3064
    %4278 = vmatprep.subr.bf16.mxu0 0
    %4279 = vmatpush1.bf16.msra.mxu0 %v3065
    %4280 = vmatprep.subr.bf16.mxu0 0
    %4281 = vmatpush1.bf16.msra.mxu0 %v3066
    %4282 = vmatprep.subr.bf16.mxu0 0
    %4283 = vmatpush1.bf16.msra.mxu0 %v3067
    %4284 = vmatprep.subr.bf16.mxu0 0
    %4285 = vmatpush1.bf16.msra.mxu0 %v3068
    %4286 = vmatprep.subr.bf16.mxu0 0
    %4287 = vmatpush1.bf16.msra.mxu0 %v3069
    %4288 = vmatprep.subr.bf16.mxu0 0
    %4289 = vmatpush1.bf16.msra.mxu0 %v3070
    %4290 = vmatprep.subr.bf16.mxu0 0
    %4291 = vmatpush1.bf16.msra.mxu0 %v3071
    %4292 = vmatprep.subr.bf16.mxu0 0
    %4293 = vmatpush1.bf16.msra.mxu0 %v3072
    %4294 = vmatprep.subr.bf16.mxu0 0
    %4295 = vmatpush1.bf16.msra.mxu0 %v3073
    %4296 = vmatprep.subr.bf16.mxu0 0
    %4297 = vmatpush1.bf16.msra.mxu0 %v3074
    %4298 = vmatprep.subr.bf16.mxu0 0
    %4299 = vmatpush1.bf16.msra.mxu0 %v3075
    %4300 = vmatprep.mubr.bf16.mxu0 %v1049
    %4301 = vmatmul.mubr.bf16.gmra.mrb[0].mxu0 %v1048
    %v4302 = vpop.f32.mrb[0].mxu0
    %v4303 = vadd.f32 %v4263, %v4302
    %v4304 = vpop.f32.mrb[0].mxu0
    %v4305 = vpop.f32.mrb[0].mxu0
    %v4306 = vpop.f32.mrb[0].mxu0
    %4307 = vdwg.mxu0
    %4308 = vmatprep.subr.bf16.mxu0 0
    %4309 = vmatpush1.bf16.msra.mxu0 %v3076
    %4310 = vmatprep.subr.bf16.mxu0 0
    %4311 = vmatpush1.bf16.msra.mxu0 %v3077
    %4312 = vmatprep.subr.bf16.mxu0 0
    %4313 = vmatpush1.bf16.msra.mxu0 %v3078
    %4314 = vmatprep.subr.bf16.mxu0 0
    %4315 = vmatpush1.bf16.msra.mxu0 %v3079
    %4316 = vmatprep.subr.bf16.mxu0 0
    %4317 = vmatpush1.bf16.msra.mxu0 %v3080
    %4318 = vmatprep.subr.bf16.mxu0 0
    %4319 = vmatpush1.bf16.msra.mxu0 %v3081
    %4320 = vmatprep.subr.bf16.mxu0 0
    %4321 = vmatpush1.bf16.msra.mxu0 %v3082
    %4322 = vmatprep.subr.bf16.mxu0 0
    %4323 = vmatpush1.bf16.msra.mxu0 %v3083
    %4324 = vmatprep.subr.bf16.mxu0 0
    %4325 = vmatpush1.bf16.msra.mxu0 %v3084
    %4326 = vmatprep.subr.bf16.mxu0 0
    %4327 = vmatpush1.bf16.msra.mxu0 %v3085
    %4328 = vmatprep.subr.bf16.mxu0 0
    %4329 = vmatpush1.bf16.msra.mxu0 %v3086
    %4330 = vmatprep.subr.bf16.mxu0 0
    %4331 = vmatpush1.bf16.msra.mxu0 %v3087
    %4332 = vmatprep.subr.bf16.mxu0 0
    %4333 = vmatpush1.bf16.msra.mxu0 %v3088
    %4334 = vmatprep.subr.bf16.mxu0 0
    %4335 = vmatpush1.bf16.msra.mxu0 %v3089
    %4336 = vmatprep.subr.bf16.mxu0 0
    %4337 = vmatpush1.bf16.msra.mxu0 %v3090
    %4338 = vmatprep.subr.bf16.mxu0 0
    %4339 = vmatpush1.bf16.msra.mxu0 %v3091
    %4340 = vmatprep.mubr.bf16.mxu0 %v1051
    %4341 = vmatmul.mubr.bf16.gmra.mrb[0].mxu0 %v1050
    %v4342 = vpop.f32.mrb[0].mxu0
    %v4343 = vadd.f32 %v4303, %v4342
    %v4344 = vpop.f32.mrb[0].mxu0
    %v4345 = vpop.f32.mrb[0].mxu0
    %v4346 = vpop.f32.mrb[0].mxu0
    %4347 = vdwg.mxu0
    %4348 = vmatprep.subr.bf16.mxu0 0
    %4349 = vmatpush1.bf16.msra.mxu0 %v3092
    %4350 = vmatprep.subr.bf16.mxu0 0
    %4351 = vmatpush1.bf16.msra.mxu0 %v3093
    %4352 = vmatprep.subr.bf16.mxu0 0
    %4353 = vmatpush1.bf16.msra.mxu0 %v3094
    %4354 = vmatprep.subr.bf16.mxu0 0
    %4355 = vmatpush1.bf16.msra.mxu0 %v3095
    %4356 = vmatprep.subr.bf16.mxu0 0
    %4357 = vmatpush1.bf16.msra.mxu0 %v3096
    %4358 = vmatprep.subr.bf16.mxu0 0
    %4359 = vmatpush1.bf16.msra.mxu0 %v3097
    %4360 = vmatprep.subr.bf16.mxu0 0
    %4361 = vmatpush1.bf16.msra.mxu0 %v3098
    %4362 = vmatprep.subr.bf16.mxu0 0
    %4363 = vmatpush1.bf16.msra.mxu0 %v3099
    %4364 = vmatprep.subr.bf16.mxu0 0
    %4365 = vmatpush1.bf16.msra.mxu0 %v3100
    %4366 = vmatprep.subr.bf16.mxu0 0
    %4367 = vmatpush1.bf16.msra.mxu0 %v3101
    %4368 = vmatprep.subr.bf16.mxu0 0
    %4369 = vmatpush1.bf16.msra.mxu0 %v3102
    %4370 = vmatprep.subr.bf16.mxu0 0
    %4371 = vmatpush1.bf16.msra.mxu0 %v3103
    %4372 = vmatprep.subr.bf16.mxu0 0
    %4373 = vmatpush1.bf16.msra.mxu0 %v3104
    %4374 = vmatprep.subr.bf16.mxu0 0
    %4375 = vmatpush1.bf16.msra.mxu0 %v3105
    %4376 = vmatprep.subr.bf16.mxu0 0
    %4377 = vmatpush1.bf16.msra.mxu0 %v3106
    %4378 = vmatprep.subr.bf16.mxu0 0
    %4379 = vmatpush1.bf16.msra.mxu0 %v3107
    %4380 = vmatprep.mubr.bf16.mxu0 %v1053
    %4381 = vmatmul.mubr.bf16.gmra.mrb[0].mxu0 %v1052
    %v4382 = vpop.f32.mrb[0].mxu0
    %v4383 = vadd.f32 %v4343, %v4382
    %v4384 = vpop.f32.mrb[0].mxu0
    %v4385 = vpop.f32.mrb[0].mxu0
    %v4386 = vpop.f32.mrb[0].mxu0
    %4387 = vdwg.mxu0
    %4388 = vmatprep.subr.bf16.mxu0 0
    %4389 = vmatpush1.bf16.msra.mxu0 %v3108
    %4390 = vmatprep.subr.bf16.mxu0 0
    %4391 = vmatpush1.bf16.msra.mxu0 %v3109
    %4392 = vmatprep.subr.bf16.mxu0 0
    %4393 = vmatpush1.bf16.msra.mxu0 %v3110
    %4394 = vmatprep.subr.bf16.mxu0 0
    %4395 = vmatpush1.bf16.msra.mxu0 %v3111
    %4396 = vmatprep.subr.bf16.mxu0 0
    %4397 = vmatpush1.bf16.msra.mxu0 %v3112
    %4398 = vmatprep.subr.bf16.mxu0 0
    %4399 = vmatpush1.bf16.msra.mxu0 %v3113
    %4400 = vmatprep.subr.bf16.mxu0 0
    %4401 = vmatpush1.bf16.msra.mxu0 %v3114
    %4402 = vmatprep.subr.bf16.mxu0 0
    %4403 = vmatpush1.bf16.msra.mxu0 %v3115
    %4404 = vmatprep.subr.bf16.mxu0 0
    %4405 = vmatpush1.bf16.msra.mxu0 %v3116
    %4406 = vmatprep.subr.bf16.mxu0 0
    %4407 = vmatpush1.bf16.msra.mxu0 %v3117
    %4408 = vmatprep.subr.bf16.mxu0 0
    %4409 = vmatpush1.bf16.msra.mxu0 %v3118
    %4410 = vmatprep.subr.bf16.mxu0 0
    %4411 = vmatpush1.bf16.msra.mxu0 %v3119
    %4412 = vmatprep.subr.bf16.mxu0 0
    %4413 = vmatpush1.bf16.msra.mxu0 %v3120
    %4414 = vmatprep.subr.bf16.mxu0 0
    %4415 = vmatpush1.bf16.msra.mxu0 %v3121
    %4416 = vmatprep.subr.bf16.mxu0 0
    %4417 = vmatpush1.bf16.msra.mxu0 %v3122
    %4418 = vmatprep.subr.bf16.mxu0 0
    %4419 = vmatpush1.bf16.msra.mxu0 %v3123
    %4420 = vmatprep.mubr.bf16.mxu0 %v1055
    %4421 = vmatmul.mubr.bf16.gmra.mrb[0].mxu0 %v1054
    %v4422 = vpop.f32.mrb[0].mxu0
    %v4423 = vadd.f32 %v4383, %v4422
    %v4424 = vpop.f32.mrb[0].mxu0
    %v4425 = vpop.f32.mrb[0].mxu0
    %v4426 = vpop.f32.mrb[0].mxu0
    %4427 = vdwg.mxu0
    %4428 = vmatprep.subr.bf16.mxu0 0
    %4429 = vmatpush1.bf16.msra.mxu0 %v3124
    %4430 = vmatprep.subr.bf16.mxu0 0
    %4431 = vmatpush1.bf16.msra.mxu0 %v3125
    %4432 = vmatprep.subr.bf16.mxu0 0
    %4433 = vmatpush1.bf16.msra.mxu0 %v3126
    %4434 = vmatprep.subr.bf16.mxu0 0
    %4435 = vmatpush1.bf16.msra.mxu0 %v3127
    %4436 = vmatprep.subr.bf16.mxu0 0
    %4437 = vmatpush1.bf16.msra.mxu0 %v3128
    %4438 = vmatprep.subr.bf16.mxu0 0
    %4439 = vmatpush1.bf16.msra.mxu0 %v3129
    %4440 = vmatprep.subr.bf16.mxu0 0
    %4441 = vmatpush1.bf16.msra.mxu0 %v3130
    %4442 = vmatprep.subr.bf16.mxu0 0
    %4443 = vmatpush1.bf16.msra.mxu0 %v3131
    %4444 = vmatprep.subr.bf16.mxu0 0
    %4445 = vmatpush1.bf16.msra.mxu0 %v3132
    %4446 = vmatprep.subr.bf16.mxu0 0
    %4447 = vmatpush1.bf16.msra.mxu0 %v3133
    %4448 = vmatprep.subr.bf16.mxu0 0
    %4449 = vmatpush1.bf16.msra.mxu0 %v3134
    %4450 = vmatprep.subr.bf16.mxu0 0
    %4451 = vmatpush1.bf16.msra.mxu0 %v3135
    %4452 = vmatprep.subr.bf16.mxu0 0
    %4453 = vmatpush1.bf16.msra.mxu0 %v3136
    %4454 = vmatprep.subr.bf16.mxu0 0
    %4455 = vmatpush1.bf16.msra.mxu0 %v3137
    %4456 = vmatprep.subr.bf16.mxu0 0
    %4457 = vmatpush1.bf16.msra.mxu0 %v3138
    %4458 = vmatprep.subr.bf16.mxu0 0
    %4459 = vmatpush1.bf16.msra.mxu0 %v3139
    %4460 = vmatprep.mubr.bf16.mxu0 %v1057
    %4461 = vmatmul.mubr.bf16.gmra.mrb[0].mxu0 %v1056
    %v4462 = vpop.f32.mrb[0].mxu0
    %v4463 = vadd.f32 %v4423, %v4462
    %v4464 = vpop.f32.mrb[0].mxu0
    %v4465 = vpop.f32.mrb[0].mxu0
    %v4466 = vpop.f32.mrb[0].mxu0
    %4467 = vdwg.mxu0
    %4468 = vmatprep.subr.bf16.mxu0 0
    %4469 = vmatpush1.bf16.msra.mxu0 %v3140
    %4470 = vmatprep.subr.bf16.mxu0 0
    %4471 = vmatpush1.bf16.msra.mxu0 %v3141
    %4472 = vmatprep.subr.bf16.mxu0 0
    %4473 = vmatpush1.bf16.msra.mxu0 %v3142
    %4474 = vmatprep.subr.bf16.mxu0 0
    %4475 = vmatpush1.bf16.msra.mxu0 %v3143
    %4476 = vmatprep.subr.bf16.mxu0 0
    %4477 = vmatpush1.bf16.msra.mxu0 %v3144
    %4478 = vmatprep.subr.bf16.mxu0 0
    %4479 = vmatpush1.bf16.msra.mxu0 %v3145
    %4480 = vmatprep.subr.bf16.mxu0 0
    %4481 = vmatpush1.bf16.msra.mxu0 %v3146
    %4482 = vmatprep.subr.bf16.mxu0 0
    %4483 = vmatpush1.bf16.msra.mxu0 %v3147
    %4484 = vmatprep.subr.bf16.mxu0 0
    %4485 = vmatpush1.bf16.msra.mxu0 %v3148
    %4486 = vmatprep.subr.bf16.mxu0 0
    %4487 = vmatpush1.bf16.msra.mxu0 %v3149
    %4488 = vmatprep.subr.bf16.mxu0 0
    %4489 = vmatpush1.bf16.msra.mxu0 %v3150
    %4490 = vmatprep.subr.bf16.mxu0 0
    %4491 = vmatpush1.bf16.msra.mxu0 %v3151
    %4492 = vmatprep.subr.bf16.mxu0 0
    %4493 = vmatpush1.bf16.msra.mxu0 %v3152
    %4494 = vmatprep.subr.bf16.mxu0 0
    %4495 = vmatpush1.bf16.msra.mxu0 %v3153
    %4496 = vmatprep.subr.bf16.mxu0 0
    %4497 = vmatpush1.bf16.msra.mxu0 %v3154
    %4498 = vmatprep.subr.bf16.mxu0 0
    %4499 = vmatpush1.bf16.msra.mxu0 %v3155
    %4500 = vmatprep.mubr.bf16.mxu0 %v1059
    %4501 = vmatmul.mubr.bf16.gmra.mrb[0].mxu0 %v1058
    %v4502 = vpop.f32.mrb[0].mxu0
    %v4503 = vadd.f32 %v4463, %v4502
    %v4504 = vpop.f32.mrb[0].mxu0
    %v4505 = vpop.f32.mrb[0].mxu0
    %v4506 = vpop.f32.mrb[0].mxu0
    %4507 = vdwg.mxu0
    %4508 = vmatprep.subr.bf16.mxu0 0
    %4509 = vmatpush1.bf16.msra.mxu0 %v3156
    %4510 = vmatprep.subr.bf16.mxu0 0
    %4511 = vmatpush1.bf16.msra.mxu0 %v3157
    %4512 = vmatprep.subr.bf16.mxu0 0
    %4513 = vmatpush1.bf16.msra.mxu0 %v3158
    %4514 = vmatprep.subr.bf16.mxu0 0
    %4515 = vmatpush1.bf16.msra.mxu0 %v3159
    %4516 = vmatprep.subr.bf16.mxu0 0
    %4517 = vmatpush1.bf16.msra.mxu0 %v3160
    %4518 = vmatprep.subr.bf16.mxu0 0
    %4519 = vmatpush1.bf16.msra.mxu0 %v3161
    %4520 = vmatprep.subr.bf16.mxu0 0
    %4521 = vmatpush1.bf16.msra.mxu0 %v3162
    %4522 = vmatprep.subr.bf16.mxu0 0
    %4523 = vmatpush1.bf16.msra.mxu0 %v3163
    %4524 = vmatprep.subr.bf16.mxu0 0
    %4525 = vmatpush1.bf16.msra.mxu0 %v3164
    %4526 = vmatprep.subr.bf16.mxu0 0
    %4527 = vmatpush1.bf16.msra.mxu0 %v3165
    %4528 = vmatprep.subr.bf16.mxu0 0
    %4529 = vmatpush1.bf16.msra.mxu0 %v3166
    %4530 = vmatprep.subr.bf16.mxu0 0
    %4531 = vmatpush1.bf16.msra.mxu0 %v3167
    %4532 = vmatprep.subr.bf16.mxu0 0
    %4533 = vmatpush1.bf16.msra.mxu0 %v3168
    %4534 = vmatprep.subr.bf16.mxu0 0
    %4535 = vmatpush1.bf16.msra.mxu0 %v3169
    %4536 = vmatprep.subr.bf16.mxu0 0
    %4537 = vmatpush1.bf16.msra.mxu0 %v3170
    %4538 = vmatprep.subr.bf16.mxu0 0
    %4539 = vmatpush1.bf16.msra.mxu0 %v3171
    %4540 = vmatprep.mubr.bf16.mxu0 %v1061
    %4541 = vmatmul.mubr.bf16.gmra.mrb[0].mxu0 %v1060
    %v4542 = vpop.f32.mrb[0].mxu0
    %v4543 = vadd.f32 %v4503, %v4542
    %v4544 = vpop.f32.mrb[0].mxu0
    %v4545 = vpop.f32.mrb[0].mxu0
    %v4546 = vpop.f32.mrb[0].mxu0
    %4547 = vdwg.mxu0
    %4548 = vmatprep.subr.bf16.mxu0 0
    %4549 = vmatpush1.bf16.msra.mxu0 %v3172
    %4550 = vmatprep.subr.bf16.mxu0 0
    %4551 = vmatpush1.bf16.msra.mxu0 %v3173
    %4552 = vmatprep.subr.bf16.mxu0 0
    %4553 = vmatpush1.bf16.msra.mxu0 %v3174
    %4554 = vmatprep.subr.bf16.mxu0 0
    %4555 = vmatpush1.bf16.msra.mxu0 %v3175
    %4556 = vmatprep.subr.bf16.mxu0 0
    %4557 = vmatpush1.bf16.msra.mxu0 %v3176
    %4558 = vmatprep.subr.bf16.mxu0 0
    %4559 = vmatpush1.bf16.msra.mxu0 %v3177
    %4560 = vmatprep.subr.bf16.mxu0 0
    %4561 = vmatpush1.bf16.msra.mxu0 %v3178
    %4562 = vmatprep.subr.bf16.mxu0 0
    %4563 = vmatpush1.bf16.msra.mxu0 %v3179
    %4564 = vmatprep.subr.bf16.mxu0 0
    %4565 = vmatpush1.bf16.msra.mxu0 %v3180
    %4566 = vmatprep.subr.bf16.mxu0 0
    %4567 = vmatpush1.bf16.msra.mxu0 %v3181
    %4568 = vmatprep.subr.bf16.mxu0 0
    %4569 = vmatpush1.bf16.msra.mxu0 %v3182
    %4570 = vmatprep.subr.bf16.mxu0 0
    %4571 = vmatpush1.bf16.msra.mxu0 %v3183
    %4572 = vmatprep.subr.bf16.mxu0 0
    %4573 = vmatpush1.bf16.msra.mxu0 %v3184
    %4574 = vmatprep.subr.bf16.mxu0 0
    %4575 = vmatpush1.bf16.msra.mxu0 %v3185
    %4576 = vmatprep.subr.bf16.mxu0 0
    %4577 = vmatpush1.bf16.msra.mxu0 %v3186
    %4578 = vmatprep.subr.bf16.mxu0 0
    %4579 = vmatpush1.bf16.msra.mxu0 %v3187
    %4580 = vmatprep.mubr.bf16.mxu0 %v1063
    %4581 = vmatmul.mubr.bf16.gmra.mrb[0].mxu0 %v1062
    %v4582 = vpop.f32.mrb[0].mxu0
    %v4583 = vadd.f32 %v4543, %v4582
    %v4584 = vpop.f32.mrb[0].mxu0
    %v4585 = vpop.f32.mrb[0].mxu0
    %v4586 = vpop.f32.mrb[0].mxu0
    %4587 = vdwg.mxu0
    %4588 = vmatprep.subr.bf16.mxu0 0
    %4589 = vmatpush1.bf16.msra.mxu0 %v3188
    %4590 = vmatprep.subr.bf16.mxu0 0
    %4591 = vmatpush1.bf16.msra.mxu0 %v3189
    %4592 = vmatprep.subr.bf16.mxu0 0
    %4593 = vmatpush1.bf16.msra.mxu0 %v3190
    %4594 = vmatprep.subr.bf16.mxu0 0
    %4595 = vmatpush1.bf16.msra.mxu0 %v3191
    %4596 = vmatprep.subr.bf16.mxu0 0
    %4597 = vmatpush1.bf16.msra.mxu0 %v3192
    %4598 = vmatprep.subr.bf16.mxu0 0
    %4599 = vmatpush1.bf16.msra.mxu0 %v3193
    %4600 = vmatprep.subr.bf16.mxu0 0
    %4601 = vmatpush1.bf16.msra.mxu0 %v3194
    %4602 = vmatprep.subr.bf16.mxu0 0
    %4603 = vmatpush1.bf16.msra.mxu0 %v3195
    %4604 = vmatprep.subr.bf16.mxu0 0
    %4605 = vmatpush1.bf16.msra.mxu0 %v3196
    %4606 = vmatprep.subr.bf16.mxu0 0
    %4607 = vmatpush1.bf16.msra.mxu0 %v3197
    %4608 = vmatprep.subr.bf16.mxu0 0
    %4609 = vmatpush1.bf16.msra.mxu0 %v3198
    %4610 = vmatprep.subr.bf16.mxu0 0
    %4611 = vmatpush1.bf16.msra.mxu0 %v3199
    %4612 = vmatprep.subr.bf16.mxu0 0
    %4613 = vmatpush1.bf16.msra.mxu0 %v3200
    %4614 = vmatprep.subr.bf16.mxu0 0
    %4615 = vmatpush1.bf16.msra.mxu0 %v3201
    %4616 = vmatprep.subr.bf16.mxu0 0
    %4617 = vmatpush1.bf16.msra.mxu0 %v3202
    %4618 = vmatprep.subr.bf16.mxu0 0
    %4619 = vmatpush1.bf16.msra.mxu0 %v3203
    %4620 = vmatprep.mubr.bf16.mxu0 %v1065
    %4621 = vmatmul.mubr.bf16.gmra.mrb[0].mxu0 %v1064
    %v4622 = vpop.f32.mrb[0].mxu0
    %v4623 = vadd.f32 %v4583, %v4622
    %v4624 = vpop.f32.mrb[0].mxu0
    %v4625 = vpop.f32.mrb[0].mxu0
    %v4626 = vpop.f32.mrb[0].mxu0
    %4627 = vdwg.mxu0
    %4628 = vmatprep.subr.bf16.mxu0 0
    %4629 = vmatpush1.bf16.msra.mxu0 %v3204
    %4630 = vmatprep.subr.bf16.mxu0 0
    %4631 = vmatpush1.bf16.msra.mxu0 %v3205
    %4632 = vmatprep.subr.bf16.mxu0 0
    %4633 = vmatpush1.bf16.msra.mxu0 %v3206
    %4634 = vmatprep.subr.bf16.mxu0 0
    %4635 = vmatpush1.bf16.msra.mxu0 %v3207
    %4636 = vmatprep.subr.bf16.mxu0 0
    %4637 = vmatpush1.bf16.msra.mxu0 %v3208
    %4638 = vmatprep.subr.bf16.mxu0 0
    %4639 = vmatpush1.bf16.msra.mxu0 %v3209
    %4640 = vmatprep.subr.bf16.mxu0 0
    %4641 = vmatpush1.bf16.msra.mxu0 %v3210
    %4642 = vmatprep.subr.bf16.mxu0 0
    %4643 = vmatpush1.bf16.msra.mxu0 %v3211
    %4644 = vmatprep.subr.bf16.mxu0 0
    %4645 = vmatpush1.bf16.msra.mxu0 %v3212
    %4646 = vmatprep.subr.bf16.mxu0 0
    %4647 = vmatpush1.bf16.msra.mxu0 %v3213
    %4648 = vmatprep.subr.bf16.mxu0 0
    %4649 = vmatpush1.bf16.msra.mxu0 %v3214
    %4650 = vmatprep.subr.bf16.mxu0 0
    %4651 = vmatpush1.bf16.msra.mxu0 %v3215
    %4652 = vmatprep.subr.bf16.mxu0 0
    %4653 = vmatpush1.bf16.msra.mxu0 %v3216
    %4654 = vmatprep.subr.bf16.mxu0 0
    %4655 = vmatpush1.bf16.msra.mxu0 %v3217
    %4656 = vmatprep.subr.bf16.mxu0 0
    %4657 = vmatpush1.bf16.msra.mxu0 %v3218
    %4658 = vmatprep.subr.bf16.mxu0 0
    %4659 = vmatpush1.bf16.msra.mxu0 %v3219
    %4660 = vmatprep.mubr.bf16.mxu0 %v1067
    %4661 = vmatmul.mubr.bf16.gmra.mrb[0].mxu0 %v1066
    %v4662 = vpop.f32.mrb[0].mxu0
    %v4663 = vadd.f32 %v4623, %v4662
    %v4664 = vpop.f32.mrb[0].mxu0
    %v4665 = vpop.f32.mrb[0].mxu0
    %v4666 = vpop.f32.mrb[0].mxu0
    %4667 = vdwg.mxu0
    %4668 = vmatprep.subr.bf16.mxu0 0
    %4669 = vmatpush1.bf16.msra.mxu0 %v3220
    %4670 = vmatprep.subr.bf16.mxu0 0
    %4671 = vmatpush1.bf16.msra.mxu0 %v3221
    %4672 = vmatprep.subr.bf16.mxu0 0
    %4673 = vmatpush1.bf16.msra.mxu0 %v3222
    %4674 = vmatprep.subr.bf16.mxu0 0
    %4675 = vmatpush1.bf16.msra.mxu0 %v3223
    %4676 = vmatprep.subr.bf16.mxu0 0
    %4677 = vmatpush1.bf16.msra.mxu0 %v3224
    %4678 = vmatprep.subr.bf16.mxu0 0
    %4679 = vmatpush1.bf16.msra.mxu0 %v3225
    %4680 = vmatprep.subr.bf16.mxu0 0
    %4681 = vmatpush1.bf16.msra.mxu0 %v3226
    %4682 = vmatprep.subr.bf16.mxu0 0
    %4683 = vmatpush1.bf16.msra.mxu0 %v3227
    %4684 = vmatprep.subr.bf16.mxu0 0
    %4685 = vmatpush1.bf16.msra.mxu0 %v3228
    %4686 = vmatprep.subr.bf16.mxu0 0
    %4687 = vmatpush1.bf16.msra.mxu0 %v3229
    %4688 = vmatprep.subr.bf16.mxu0 0
    %4689 = vmatpush1.bf16.msra.mxu0 %v3230
    %4690 = vmatprep.subr.bf16.mxu0 0
    %4691 = vmatpush1.bf16.msra.mxu0 %v3231
    %4692 = vmatprep.subr.bf16.mxu0 0
    %4693 = vmatpush1.bf16.msra.mxu0 %v3232
    %4694 = vmatprep.subr.bf16.mxu0 0
    %4695 = vmatpush1.bf16.msra.mxu0 %v3233
    %4696 = vmatprep.subr.bf16.mxu0 0
    %4697 = vmatpush1.bf16.msra.mxu0 %v3234
    %4698 = vmatprep.subr.bf16.mxu0 0
    %4699 = vmatpush1.bf16.msra.mxu0 %v3235
    %4700 = vmatprep.mubr.bf16.mxu0 %v1069
    %4701 = vmatmul.mubr.bf16.gmra.mrb[0].mxu0 %v1068
    %v4702 = vpop.f32.mrb[0].mxu0
    %v4703 = vadd.f32 %v4663, %v4702
    %v4704 = vpop.f32.mrb[0].mxu0
    %v4705 = vpop.f32.mrb[0].mxu0
    %v4706 = vpop.f32.mrb[0].mxu0
    %4707 = vdwg.mxu0
    %4708 = vmatprep.subr.bf16.mxu0 0
    %4709 = vmatpush1.bf16.msra.mxu0 %v3236
    %4710 = vmatprep.subr.bf16.mxu0 0
    %4711 = vmatpush1.bf16.msra.mxu0 %v3237
    %4712 = vmatprep.subr.bf16.mxu0 0
    %4713 = vmatpush1.bf16.msra.mxu0 %v3238
    %4714 = vmatprep.subr.bf16.mxu0 0
    %4715 = vmatpush1.bf16.msra.mxu0 %v3239
    %4716 = vmatprep.subr.bf16.mxu0 0
    %4717 = vmatpush1.bf16.msra.mxu0 %v3240
    %4718 = vmatprep.subr.bf16.mxu0 0
    %4719 = vmatpush1.bf16.msra.mxu0 %v3241
    %4720 = vmatprep.subr.bf16.mxu0 0
    %4721 = vmatpush1.bf16.msra.mxu0 %v3242
    %4722 = vmatprep.subr.bf16.mxu0 0
    %4723 = vmatpush1.bf16.msra.mxu0 %v3243
    %4724 = vmatprep.subr.bf16.mxu0 0
    %4725 = vmatpush1.bf16.msra.mxu0 0
    %4726 = vmatprep.subr.bf16.mxu0 0
    %4727 = vmatpush1.bf16.msra.mxu0 0
    %4728 = vmatprep.subr.bf16.mxu0 0
    %4729 = vmatpush1.bf16.msra.mxu0 0
    %4730 = vmatprep.subr.bf16.mxu0 0
    %4731 = vmatpush1.bf16.msra.mxu0 0
    %4732 = vmatprep.subr.bf16.mxu0 0
    %4733 = vmatpush1.bf16.msra.mxu0 0
    %4734 = vmatprep.subr.bf16.mxu0 0
    %4735 = vmatpush1.bf16.msra.mxu0 0
    %4736 = vmatprep.subr.bf16.mxu0 0
    %4737 = vmatpush1.bf16.msra.mxu0 0
    %4738 = vmatprep.subr.bf16.mxu0 0
    %4739 = vmatpush1.bf16.msra.mxu0 0
    %4740 = vmatprep.mubr.bf16.mxu0 0
    %4741 = vmatmul.mubr.bf16.gmra.mrb[0].mxu0 %v1070
    %v4742 = vpop.f32.mrb[0].mxu0
    %v4743 = vadd.f32 %v4703, %v4742
    %v4744 = vpop.f32.mrb[0].mxu0
    %v4745 = vpop.f32.mrb[0].mxu0
    %v4746 = vpop.f32.mrb[0].mxu0
    %4747 = vdwg.mxu0
    %v4748 = vmax.f32 %v4743, 0.0
    %v4749 = vld [vmem:[#allocation5] sm:$0xf]
    %v4750 = vld [vmem:[#allocation5 + $0x4] sm:$0xf]
    %v4751 = vld [vmem:[#allocation5 + $0x8] sm:$0xf]
    %v4752 = vld [vmem:[#allocation5 + $0xc] sm:$0xf]
    %v4753 = vld [vmem:[#allocation5 + $0x10] sm:$0xf]
    %v4754 = vld [vmem:[#allocation5 + $0x14] sm:$0xf]
    %v4755 = vld [vmem:[#allocation5 + $0x18] sm:$0xf]
    %v4756 = vld [vmem:[#allocation5 + $0x1c] sm:$0xf]
    %v4757 = vld [vmem:[#allocation5 + $0x20] sm:$0xf]
    %v4758 = vld [vmem:[#allocation5 + $0x24] sm:$0xf]
    %v4759 = vld [vmem:[#allocation5 + $0x28] sm:$0xf]
    %v4760 = vld [vmem:[#allocation5 + $0x2c] sm:$0xf]
    %v4761 = vld [vmem:[#allocation5 + $0x30] sm:$0xf]
    %v4762 = vld [vmem:[#allocation5 + $0x34] sm:$0xf]
    %v4763 = vld [vmem:[#allocation5 + $0x38] sm:$0xf]
    %v4764 = vld [vmem:[#allocation5 + $0x3c] sm:$0xf]
    %v4765 = vpack.c.bf16 %v4748, %v4748
    %v4766 = vlaneseq
    %v4767 = vshrl.u32 %v4766, 7
    %v4768 = vsub.s32 1, %v4767
    %v4769 = vrot.slane %v58, %v4768
    %v4786 = vunpack.c.l.b16 %v4749
    %v4787 = vunpack.c.l.b16 %v4750
    %v4788 = vunpack.c.l.b16 %v4751
    %v4789 = vunpack.c.l.b16 %v4752
    %v4790 = vunpack.c.l.b16 %v4753
    %v4791 = vunpack.c.l.b16 %v4754
    %v4792 = vunpack.c.l.b16 %v4755
    %v4793 = vunpack.c.l.b16 %v4756
    %v4794 = vunpack.c.l.b16 %v4757
    %v4795 = vunpack.c.l.b16 %v4758
    %v4796 = vunpack.c.l.b16 %v4759
    %v4797 = vunpack.c.l.b16 %v4760
    %v4798 = vunpack.c.l.b16 %v4761
    %v4799 = vunpack.c.l.b16 %v4762
    %v4800 = vunpack.c.l.b16 %v4763
    %v4801 = vunpack.c.l.b16 %v4764
    %v4802 = vpack.c.b16 %v4787, %v4786
    %v4803 = vpack.c.b16 %v4789, %v4788
    %v4804 = vpack.c.b16 %v4791, %v4790
    %v4805 = vpack.c.b16 %v4793, %v4792
    %v4806 = vpack.c.b16 %v4795, %v4794
    %v4807 = vpack.c.b16 %v4797, %v4796
    %v4808 = vpack.c.b16 %v4799, %v4798
    %v4809 = vpack.c.b16 %v4801, %v4800
    %4818 = vmatprep.subr.bf16.mxu0 0
    %4819 = vmatpush1.bf16.msra.mxu0 %v4802
    %4820 = vmatprep.subr.bf16.mxu0 0
    %4821 = vmatpush1.bf16.msra.mxu0 %v4803
    %4822 = vmatprep.subr.bf16.mxu0 0
    %4823 = vmatpush1.bf16.msra.mxu0 %v4804
    %4824 = vmatprep.subr.bf16.mxu0 0
    %4825 = vmatpush1.bf16.msra.mxu0 %v4805
    %4826 = vmatprep.subr.bf16.mxu0 0
    %4827 = vmatpush1.bf16.msra.mxu0 %v4806
    %4828 = vmatprep.subr.bf16.mxu0 0
    %4829 = vmatpush1.bf16.msra.mxu0 %v4807
    %4830 = vmatprep.subr.bf16.mxu0 0
    %4831 = vmatpush1.bf16.msra.mxu0 %v4808
    %4832 = vmatprep.subr.bf16.mxu0 0
    %4833 = vmatpush1.bf16.msra.mxu0 %v4809
    %4834 = vmatprep.subr.bf16.mxu0 0
    %4835 = vmatpush1.bf16.msra.mxu0 0
    %4836 = vmatprep.subr.bf16.mxu0 0
    %4837 = vmatpush1.bf16.msra.mxu0 0
    %4838 = vmatprep.subr.bf16.mxu0 0
    %4839 = vmatpush1.bf16.msra.mxu0 0
    %4840 = vmatprep.subr.bf16.mxu0 0
    %4841 = vmatpush1.bf16.msra.mxu0 0
    %4842 = vmatprep.subr.bf16.mxu0 0
    %4843 = vmatpush1.bf16.msra.mxu0 0
    %4844 = vmatprep.subr.bf16.mxu0 0
    %4845 = vmatpush1.bf16.msra.mxu0 0
    %4846 = vmatprep.subr.bf16.mxu0 0
    %4847 = vmatpush1.bf16.msra.mxu0 0
    %4848 = vmatprep.subr.bf16.mxu0 0
    %4849 = vmatpush1.bf16.msra.mxu0 0
    %4850 = vmatprep.mubr.bf16.mxu0 0
    %4851 = vmatmul.mubr.bf16.gmra.mrb[0].mxu0 %v4765
    %v4852 = vpop.f32.mrb[0].mxu0
    %v4853 = vadd.f32 %v4769, %v4852
    %v4854 = vpop.f32.mrb[0].mxu0
    %v4855 = vpop.f32.mrb[0].mxu0
    %v4856 = vpop.f32.mrb[0].mxu0
    %4857 = vdwg.mxu0
    %v4858 = vmax.f32 %v4853, 0.0
    %v4859 = vld [vmem:[#allocation5 + $0x40] sm:$0xf]
    %v4860 = vld [vmem:[#allocation5 + $0x44] sm:$0xf]
    %v4861 = vld [vmem:[#allocation5 + $0x48] sm:$0xf]
    %v4862 = vld [vmem:[#allocation5 + $0x4c] sm:$0xf]
    %v4863 = vld [vmem:[#allocation5 + $0x50] sm:$0xf]
    %v4864 = vld [vmem:[#allocation5 + $0x54] sm:$0xf]
    %v4865 = vld [vmem:[#allocation5 + $0x58] sm:$0xf]
    %v4866 = vld [vmem:[#allocation5 + $0x5c] sm:$0xf]
    %v4867 = vld [vmem:[#allocation5 + $0x60] sm:$0xf]
    %v4868 = vld [vmem:[#allocation5 + $0x64] sm:$0xf]
    %v4869 = vld [vmem:[#allocation5 + $0x68] sm:$0xf]
    %v4870 = vld [vmem:[#allocation5 + $0x6c] sm:$0xf]
    %v4871 = vld [vmem:[#allocation5 + $0x70] sm:$0xf]
    %v4872 = vld [vmem:[#allocation5 + $0x74] sm:$0xf]
    %v4873 = vld [vmem:[#allocation5 + $0x78] sm:$0xf]
    %v4874 = vld [vmem:[#allocation5 + $0x7c] sm:$0xf]
    %v4875 = vpack.c.bf16 %v4858, %v4858
    %v4876 = vlaneseq
    %v4877 = vshrl.u32 %v4876, 7
    %v4878 = vsub.s32 2, %v4877
    %v4879 = vrot.slane %v58, %v4878
    %v4896 = vunpack.c.l.b16 %v4859
    %v4897 = vunpack.c.l.b16 %v4860
    %v4898 = vunpack.c.l.b16 %v4861
    %v4899 = vunpack.c.l.b16 %v4862
    %v4900 = vunpack.c.l.b16 %v4863
    %v4901 = vunpack.c.l.b16 %v4864
    %v4902 = vunpack.c.l.b16 %v4865
    %v4903 = vunpack.c.l.b16 %v4866
    %v4904 = vunpack.c.l.b16 %v4867
    %v4905 = vunpack.c.l.b16 %v4868
    %v4906 = vunpack.c.l.b16 %v4869
    %v4907 = vunpack.c.l.b16 %v4870
    %v4908 = vunpack.c.l.b16 %v4871
    %v4909 = vunpack.c.l.b16 %v4872
    %v4910 = vunpack.c.l.b16 %v4873
    %v4911 = vunpack.c.l.b16 %v4874
    %v4912 = vpack.c.b16 %v4897, %v4896
    %v4913 = vpack.c.b16 %v4899, %v4898
    %v4914 = vpack.c.b16 %v4901, %v4900
    %v4915 = vpack.c.b16 %v4903, %v4902
    %v4916 = vpack.c.b16 %v4905, %v4904
    %v4917 = vpack.c.b16 %v4907, %v4906
    %v4918 = vpack.c.b16 %v4909, %v4908
    %v4919 = vpack.c.b16 %v4911, %v4910
    %4928 = vmatprep.subr.bf16.mxu0 0
    %4929 = vmatpush1.bf16.msra.mxu0 %v4912
    %4930 = vmatprep.subr.bf16.mxu0 0
    %4931 = vmatpush1.bf16.msra.mxu0 %v4913
    %4932 = vmatprep.subr.bf16.mxu0 0
    %4933 = vmatpush1.bf16.msra.mxu0 %v4914
    %4934 = vmatprep.subr.bf16.mxu0 0
    %4935 = vmatpush1.bf16.msra.mxu0 %v4915
    %4936 = vmatprep.subr.bf16.mxu0 0
    %4937 = vmatpush1.bf16.msra.mxu0 %v4916
    %4938 = vmatprep.subr.bf16.mxu0 0
    %4939 = vmatpush1.bf16.msra.mxu0 %v4917
    %4940 = vmatprep.subr.bf16.mxu0 0
    %4941 = vmatpush1.bf16.msra.mxu0 %v4918
    %4942 = vmatprep.subr.bf16.mxu0 0
    %4943 = vmatpush1.bf16.msra.mxu0 %v4919
    %4944 = vmatprep.subr.bf16.mxu0 0
    %4945 = vmatpush1.bf16.msra.mxu0 0
    %4946 = vmatprep.subr.bf16.mxu0 0
    %4947 = vmatpush1.bf16.msra.mxu0 0
    %4948 = vmatprep.subr.bf16.mxu0 0
    %4949 = vmatpush1.bf16.msra.mxu0 0
    %4950 = vmatprep.subr.bf16.mxu0 0
    %4951 = vmatpush1.bf16.msra.mxu0 0
    %4952 = vmatprep.subr.bf16.mxu0 0
    %4953 = vmatpush1.bf16.msra.mxu0 0
    %4954 = vmatprep.subr.bf16.mxu0 0
    %4955 = vmatpush1.bf16.msra.mxu0 0
    %4956 = vmatprep.subr.bf16.mxu0 0
    %4957 = vmatpush1.bf16.msra.mxu0 0
    %4958 = vmatprep.subr.bf16.mxu0 0
    %4959 = vmatpush1.bf16.msra.mxu0 0
    %4960 = vmatprep.mubr.bf16.mxu0 0
    %4961 = vmatmul.mubr.bf16.gmra.mrb[0].mxu0 %v4875
    %v4962 = vpop.f32.mrb[0].mxu0
    %v4963 = vadd.f32 %v4879, %v4962
    %v4964 = vpop.f32.mrb[0].mxu0
    %v4965 = vpop.f32.mrb[0].mxu0
    %v4966 = vpop.f32.mrb[0].mxu0
    %4967 = vdwg.mxu0
    %v4968 = vmax.f32 %v4963, 0.0
    %v4969 = vld [vmem:[#allocation5 + $0x80] sm:$0xf]
    %v4970 = vld [vmem:[#allocation5 + $0x84] sm:$0xf]
    %v4971 = vld [vmem:[#allocation5 + $0x88] sm:$0xf]
    %v4972 = vld [vmem:[#allocation5 + $0x8c] sm:$0xf]
    %v4973 = vld [vmem:[#allocation5 + $0x90] sm:$0xf]
    %v4974 = vld [vmem:[#allocation5 + $0x94] sm:$0xf]
    %v4975 = vld [vmem:[#allocation5 + $0x98] sm:$0xf]
    %v4976 = vld [vmem:[#allocation5 + $0x9c] sm:$0xf]
    %v4977 = vld [vmem:[#allocation5 + $0xa0] sm:$0xf]
    %v4978 = vld [vmem:[#allocation5 + $0xa4] sm:$0xf]
    %v4979 = vld [vmem:[#allocation5 + $0xa8] sm:$0xf]
    %v4980 = vld [vmem:[#allocation5 + $0xac] sm:$0xf]
    %v4981 = vld [vmem:[#allocation5 + $0xb0] sm:$0xf]
    %v4982 = vld [vmem:[#allocation5 + $0xb4] sm:$0xf]
    %v4983 = vld [vmem:[#allocation5 + $0xb8] sm:$0xf]
    %v4984 = vld [vmem:[#allocation5 + $0xbc] sm:$0xf]
    %v4985 = vpack.c.bf16 %v4968, %v4968
    %v4986 = vlaneseq
    %v4987 = vshrl.u32 %v4986, 7
    %v4988 = vsub.s32 3, %v4987
    %v4989 = vrot.slane %v58, %v4988
    %v5006 = vunpack.c.l.b16 %v4969
    %v5007 = vunpack.c.l.b16 %v4970
    %v5008 = vunpack.c.l.b16 %v4971
    %v5009 = vunpack.c.l.b16 %v4972
    %v5010 = vunpack.c.l.b16 %v4973
    %v5011 = vunpack.c.l.b16 %v4974
    %v5012 = vunpack.c.l.b16 %v4975
    %v5013 = vunpack.c.l.b16 %v4976
    %v5014 = vunpack.c.l.b16 %v4977
    %v5015 = vunpack.c.l.b16 %v4978
    %v5016 = vunpack.c.l.b16 %v4979
    %v5017 = vunpack.c.l.b16 %v4980
    %v5018 = vunpack.c.l.b16 %v4981
    %v5019 = vunpack.c.l.b16 %v4982
    %v5020 = vunpack.c.l.b16 %v4983
    %v5021 = vunpack.c.l.b16 %v4984
    %v5022 = vpack.c.b16 %v5007, %v5006
    %v5023 = vpack.c.b16 %v5009, %v5008
    %v5024 = vpack.c.b16 %v5011, %v5010
    %v5025 = vpack.c.b16 %v5013, %v5012
    %v5026 = vpack.c.b16 %v5015, %v5014
    %v5027 = vpack.c.b16 %v5017, %v5016
    %v5028 = vpack.c.b16 %v5019, %v5018
    %v5029 = vpack.c.b16 %v5021, %v5020
    %5038 = vmatprep.subr.bf16.mxu0 0
    %5039 = vmatpush1.bf16.msra.mxu0 %v5022
    %5040 = vmatprep.subr.bf16.mxu0 0
    %5041 = vmatpush1.bf16.msra.mxu0 %v5023
    %5042 = vmatprep.subr.bf16.mxu0 0
    %5043 = vmatpush1.bf16.msra.mxu0 %v5024
    %5044 = vmatprep.subr.bf16.mxu0 0
    %5045 = vmatpush1.bf16.msra.mxu0 %v5025
    %5046 = vmatprep.subr.bf16.mxu0 0
    %5047 = vmatpush1.bf16.msra.mxu0 %v5026
    %5048 = vmatprep.subr.bf16.mxu0 0
    %5049 = vmatpush1.bf16.msra.mxu0 %v5027
    %5050 = vmatprep.subr.bf16.mxu0 0
    %5051 = vmatpush1.bf16.msra.mxu0 %v5028
    %5052 = vmatprep.subr.bf16.mxu0 0
    %5053 = vmatpush1.bf16.msra.mxu0 %v5029
    %5054 = vmatprep.subr.bf16.mxu0 0
    %5055 = vmatpush1.bf16.msra.mxu0 0
    %5056 = vmatprep.subr.bf16.mxu0 0
    %5057 = vmatpush1.bf16.msra.mxu0 0
    %5058 = vmatprep.subr.bf16.mxu0 0
    %5059 = vmatpush1.bf16.msra.mxu0 0
    %5060 = vmatprep.subr.bf16.mxu0 0
    %5061 = vmatpush1.bf16.msra.mxu0 0
    %5062 = vmatprep.subr.bf16.mxu0 0
    %5063 = vmatpush1.bf16.msra.mxu0 0
    %5064 = vmatprep.subr.bf16.mxu0 0
    %5065 = vmatpush1.bf16.msra.mxu0 0
    %5066 = vmatprep.subr.bf16.mxu0 0
    %5067 = vmatpush1.bf16.msra.mxu0 0
    %5068 = vmatprep.subr.bf16.mxu0 0
    %5069 = vmatpush1.bf16.msra.mxu0 0
    %5070 = vmatprep.mubr.bf16.mxu0 0
    %5071 = vmatmul.mubr.bf16.gmra.mrb[0].mxu0 %v4985
    %v5072 = vpop.f32.mrb[0].mxu0
    %v5073 = vadd.f32 %v4989, %v5072
    %v5074 = vpop.f32.mrb[0].mxu0
    %v5075 = vpop.f32.mrb[0].mxu0
    %v5076 = vpop.f32.mrb[0].mxu0
    %5077 = vdwg.mxu0
    %v5078 = vmax.f32 %v5073, 0.0
    %v5079 = vld [vmem:[#allocation5 + $0xc0] sm:$0xf]
    %v5080 = vld [vmem:[#allocation5 + $0xc4] sm:$0xf]
    %v5081 = vld [vmem:[#allocation5 + $0xc8] sm:$0xf]
    %v5082 = vld [vmem:[#allocation5 + $0xcc] sm:$0xf]
    %v5083 = vld [vmem:[#allocation5 + $0xd0] sm:$0xf]
    %v5084 = vld [vmem:[#allocation5 + $0xd4] sm:$0xf]
    %v5085 = vld [vmem:[#allocation5 + $0xd8] sm:$0xf]
    %v5086 = vld [vmem:[#allocation5 + $0xdc] sm:$0xf]
    %v5087 = vld [vmem:[#allocation5 + $0xe0] sm:$0xf]
    %v5088 = vld [vmem:[#allocation5 + $0xe4] sm:$0xf]
    %v5089 = vld [vmem:[#allocation5 + $0xe8] sm:$0xf]
    %v5090 = vld [vmem:[#allocation5 + $0xec] sm:$0xf]
    %v5091 = vld [vmem:[#allocation5 + $0xf0] sm:$0xf]
    %v5092 = vld [vmem:[#allocation5 + $0xf4] sm:$0xf]
    %v5093 = vld [vmem:[#allocation5 + $0xf8] sm:$0xf]
    %v5094 = vld [vmem:[#allocation5 + $0xfc] sm:$0xf]
    %v5095 = vpack.c.bf16 %v5078, %v5078
    %v5096 = vlaneseq
    %v5097 = vshrl.u32 %v5096, 7
    %v5098 = vsub.s32 4, %v5097
    %v5099 = vrot.slane %v58, %v5098
    %v5116 = vunpack.c.l.b16 %v5079
    %v5117 = vunpack.c.l.b16 %v5080
    %v5118 = vunpack.c.l.b16 %v5081
    %v5119 = vunpack.c.l.b16 %v5082
    %v5120 = vunpack.c.l.b16 %v5083
    %v5121 = vunpack.c.l.b16 %v5084
    %v5122 = vunpack.c.l.b16 %v5085
    %v5123 = vunpack.c.l.b16 %v5086
    %v5124 = vunpack.c.l.b16 %v5087
    %v5125 = vunpack.c.l.b16 %v5088
    %v5126 = vunpack.c.l.b16 %v5089
    %v5127 = vunpack.c.l.b16 %v5090
    %v5128 = vunpack.c.l.b16 %v5091
    %v5129 = vunpack.c.l.b16 %v5092
    %v5130 = vunpack.c.l.b16 %v5093
    %v5131 = vunpack.c.l.b16 %v5094
    %v5132 = vpack.c.b16 %v5117, %v5116
    %v5133 = vpack.c.b16 %v5119, %v5118
    %v5134 = vpack.c.b16 %v5121, %v5120
    %v5135 = vpack.c.b16 %v5123, %v5122
    %v5136 = vpack.c.b16 %v5125, %v5124
    %v5137 = vpack.c.b16 %v5127, %v5126
    %v5138 = vpack.c.b16 %v5129, %v5128
    %v5139 = vpack.c.b16 %v5131, %v5130
    %5148 = vmatprep.subr.bf16.mxu0 0
    %5149 = vmatpush1.bf16.msra.mxu0 %v5132
    %5150 = vmatprep.subr.bf16.mxu0 0
    %5151 = vmatpush1.bf16.msra.mxu0 %v5133
    %5152 = vmatprep.subr.bf16.mxu0 0
    %5153 = vmatpush1.bf16.msra.mxu0 %v5134
    %5154 = vmatprep.subr.bf16.mxu0 0
    %5155 = vmatpush1.bf16.msra.mxu0 %v5135
    %5156 = vmatprep.subr.bf16.mxu0 0
    %5157 = vmatpush1.bf16.msra.mxu0 %v5136
    %5158 = vmatprep.subr.bf16.mxu0 0
    %5159 = vmatpush1.bf16.msra.mxu0 %v5137
    %5160 = vmatprep.subr.bf16.mxu0 0
    %5161 = vmatpush1.bf16.msra.mxu0 %v5138
    %5162 = vmatprep.subr.bf16.mxu0 0
    %5163 = vmatpush1.bf16.msra.mxu0 %v5139
    %5164 = vmatprep.subr.bf16.mxu0 0
    %5165 = vmatpush1.bf16.msra.mxu0 0
    %5166 = vmatprep.subr.bf16.mxu0 0
    %5167 = vmatpush1.bf16.msra.mxu0 0
    %5168 = vmatprep.subr.bf16.mxu0 0
    %5169 = vmatpush1.bf16.msra.mxu0 0
    %5170 = vmatprep.subr.bf16.mxu0 0
    %5171 = vmatpush1.bf16.msra.mxu0 0
    %5172 = vmatprep.subr.bf16.mxu0 0
    %5173 = vmatpush1.bf16.msra.mxu0 0
    %5174 = vmatprep.subr.bf16.mxu0 0
    %5175 = vmatpush1.bf16.msra.mxu0 0
    %5176 = vmatprep.subr.bf16.mxu0 0
    %5177 = vmatpush1.bf16.msra.mxu0 0
    %5178 = vmatprep.subr.bf16.mxu0 0
    %5179 = vmatpush1.bf16.msra.mxu0 0
    %5180 = vmatprep.mubr.bf16.mxu0 0
    %5181 = vmatmul.mubr.bf16.gmra.mrb[0].mxu0 %v5095
    %v5182 = vpop.f32.mrb[0].mxu0
    %v5183 = vadd.f32 %v5099, %v5182
    %v5184 = vpop.f32.mrb[0].mxu0
    %v5185 = vpop.f32.mrb[0].mxu0
    %v5186 = vpop.f32.mrb[0].mxu0
    %5187 = vdwg.mxu0
    %5188 = vst [vmem:[#allocation8] sm:$0xff] %v5183
    // Predicated region
    $region30: #{roixroi_forward.1} parent=1 // pred_check
      _
    $region31: #{roixroi_forward.1} parent=1 // pred_check_branch
      %5190 = sbr.rel (0) target = $region33
    $region32: #{roixroi_forward.1} parent=1 // pred_region
      %s5192 = ssub.s32 128, 128
      %5193 = vsyncadd [#allocation4], %s5192
      %s5195 = sshll.u32 [#allocation8], 4
      %s5196 = int_to_ptr.vmem [resolvable:$true] %s5195
      %5198 = dma.vmem_to_hbm [thread:$0]  %s5196, 128, %s4, [#allocation4]
    $region33: #{roixroi_forward.1} parent=1 // pred_fallthru
      _
    // Predicated region
    $region34: #{roixroi_forward.1} parent=1 // pred_check
      _
    $region35: #{roixroi_forward.1} parent=1 // pred_check_branch
      %5200 = sbr.rel (0) target = $region37
    $region36: #{roixroi_forward.1} parent=1 // pred_region
      %5201 = dma.done [#allocation4], 128
    $region37: #{roixroi_forward.1} parent=1 // pred_fallthru
      _
    %5202 = vsyncpa [#allocation3], 1
    %5203 = vsyncpa [#allocation6], 1
    %5204 = vsyncpa [#allocation4], 1

</llo_original>
